<compile_context>
chip_gen: v5e
topology: v5e:2x2
jax: 0.10.0
libtpu: 0.0.40
codegen_flags: <defaults>
</compile_context>

<pallas_src>
import functools

import numpy as np
import jax
import jax.numpy as jnp
from jax import lax
from jax.experimental import pallas as pl
from jax.experimental.pallas import tpu as pltpu


# ----------------------------------------------------------------------------
# Helpers
# ----------------------------------------------------------------------------
def _shift_lanes(a, s):
    """result[..., i] = a[..., (i + s) % L] for a static shift s.

    Wrapped positions are exactly the ones zeroed by the boundary masks, so a
    circular shift is sufficient.  Implemented as two static lane slices + a
    concatenate (unambiguous semantics, robust Mosaic lowering).
    """
    L = a.shape[-1]
    k = s % L
    if k == 0:
        return a
    return jnp.concatenate([a[..., k:], a[..., :k]], axis=-1)


def _make_tap_masks(H, W):
    """(9, H*W) f32 validity masks for the 9 taps of a 3x3 'same' conv."""
    ys, xs = np.meshgrid(np.arange(H), np.arange(W), indexing="ij")
    rows = []
    for k in range(9):
        dy, dx = k // 3 - 1, k % 3 - 1
        valid = ((ys + dy >= 0) & (ys + dy < H) &
                 (xs + dx >= 0) & (xs + dx < W))
        rows.append(valid.reshape(-1))
    return jnp.asarray(np.stack(rows).astype(np.float32))


# ----------------------------------------------------------------------------
# The single fused kernel
# ----------------------------------------------------------------------------
def _vae_fused_kernel(x_ref, masks_ref, wenc_ref, benc_ref, wms_ref, bms_ref,
                      eps_ref, wfz_ref, bfz_ref, wdec_ref, bdec_ref,
                      xrec_ref, musig_ref, *, width, z_dim):
    n, _, hw = x_ref.shape
    cf = wenc_ref.shape[1]
    masks = masks_ref[...]                                     # (9, HW) f32

    def conv3x3(act, w_taps, bias):
        # act: (n, c_in, hw) f32; w_taps: (9, c_out, c_in) f32; bias (1,c_out,1)
        c_out, c_in = w_taps.shape[1], w_taps.shape[2]
        acc = jnp.zeros((n, c_out, hw), jnp.float32)
        for k in range(9):                                     # 9 taps, static
            dy, dx = k // 3 - 1, k % 3 - 1
            tap = _shift_lanes(act, dy * width + dx)           # (n, c_in, hw)
            wk = jnp.broadcast_to(w_taps[k], (n, c_out, c_in))
            part = jnp.einsum("noc,nch->noh", wk, tap,
                              preferred_element_type=jnp.float32)
            acc = acc + part * masks[k:k + 1].reshape(1, 1, hw)
        return acc + bias

    # ---------------- encoder conv + ReLU (f32) ----------------
    h = jnp.maximum(conv3x3(x_ref[...], wenc_ref[...], benc_ref[...]), 0.0)

    # ---------------- latent path (bf16 weights, f32 accumulation) ----------
    # [mu | log_sigma2]: one batched contraction over (channel, spatial).
    h_t = jnp.transpose(h, (1, 0, 2)).astype(jnp.bfloat16)     # (cf, n, hw)
    ms = jnp.einsum("cns,cst->cnt", h_t, wms_ref[...],
                    preferred_element_type=jnp.float32).sum(axis=0)
    ms = ms + bms_ref[...]                                     # (n, 2*z_dim)
    musig_ref[...] = ms                                        # split in wrapper

    mu = ms[:, :z_dim]
    log_sigma2 = ms[:, z_dim:]
    # NOTE: like the PyTorch reference, log_sigma2 is not clamped; exp() can
    # overflow for extreme values if this path is reused during training.
    z = mu + jnp.exp(0.5 * log_sigma2) * eps_ref[...]

    # f_z: one batched contraction, produced directly in planar layout.
    z_b = jnp.broadcast_to(z.astype(jnp.bfloat16)[None], (cf, n, z_dim))
    hz_c = jnp.einsum("cnz,czs->cns", z_b, wfz_ref[...],
                      preferred_element_type=jnp.float32) + bfz_ref[...]
    hz = jnp.transpose(hz_c, (1, 0, 2))                        # (n, cf, hw)

    # ---------------- decoder conv + tanh ----------------
    xrec_ref[...] = jnp.tanh(conv3x3(hz, wdec_ref[...], bdec_ref[...]))


# ----------------------------------------------------------------------------
# Parameters: PyTorch-layout init + one-time packing into kernel layouts.
# ----------------------------------------------------------------------------
def init_vae_params(key, in_ch, feat_ch, H, W, z_dim):
    n_features = feat_ch * H * W
    ks = jax.random.split(key, 10)

    def unif(k, shape, fan_in):
        bound = 1.0 / jnp.sqrt(fan_in)
        return jax.random.uniform(k, shape, jnp.float32, -bound, bound)

    p = {}
    p["enc_w"] = unif(ks[0], (feat_ch, in_ch, 3, 3), in_ch * 9)
    p["enc_b"] = unif(ks[1], (feat_ch,), in_ch * 9)
    p["dec_w"] = unif(ks[2], (in_ch, feat_ch, 3, 3), feat_ch * 9)
    p["dec_b"] = unif(ks[3], (in_ch,), feat_ch * 9)
    p["mu_w"] = unif(ks[4], (n_features, z_dim), n_features)
    p["mu_b"] = unif(ks[5], (z_dim,), n_features)
    p["sig_w"] = unif(ks[6], (n_features, z_dim), n_features)
    p["sig_b"] = unif(ks[7], (z_dim,), n_features)
    p["fz_w"] = unif(ks[8], (z_dim, n_features), z_dim)
    p["fz_b"] = unif(ks[9], (n_features,), z_dim)
    return p


def pack_params(p, H, W, z_dim):
    feat_ch, in_ch = p["enc_w"].shape[0], p["enc_w"].shape[1]
    HW = H * W
    q = {}
    # Conv weights as (tap, Cout, Cin); f32 (tiny, keeps conv path exact).
    q["wenc"] = jnp.transpose(p["enc_w"], (2, 3, 0, 1)).reshape(
        9, feat_ch, in_ch).astype(jnp.float32)
    q["benc"] = p["enc_b"].reshape(1, feat_ch, 1).astype(jnp.float32)
    q["wdec"] = jnp.transpose(p["dec_w"], (2, 3, 0, 1)).reshape(
        9, in_ch, feat_ch).astype(jnp.float32)
    q["bdec"] = p["dec_b"].reshape(1, in_ch, 1).astype(jnp.float32)
    # [mu | log_sigma2] weights, per-channel blocks, bf16 (dominant HBM bytes).
    wms = jnp.concatenate([p["mu_w"], p["sig_w"]], axis=1)        # (nf, 2Z)
    q["wms"] = wms.reshape(feat_ch, HW, 2 * z_dim).astype(jnp.bfloat16)
    q["bms"] = jnp.concatenate([p["mu_b"], p["sig_b"]]).reshape(
        1, 2 * z_dim).astype(jnp.float32)
    # f_z weights, per-channel blocks, bf16.
    q["wfz"] = p["fz_w"].reshape(z_dim, feat_ch, HW).transpose(
        1, 0, 2).astype(jnp.bfloat16)                             # (Cf, Z, HW)
    q["bfz"] = p["fz_b"].reshape(feat_ch, 1, HW).astype(jnp.float32)
    q["masks"] = _make_tap_masks(H, W)                            # (9, HW)
    return q


# ----------------------------------------------------------------------------
# Forward pass: one pallas_call, wrapper does only reshapes.
# ----------------------------------------------------------------------------
def vae_forward(packed, x_nchw, eps):
    N, Cin, H, W = x_nchw.shape
    Cf = packed["wenc"].shape[1]
    Z = eps.shape[1]
    HW = H * W
    x3 = x_nchw.reshape(N, Cin, HW).astype(jnp.float32)

    args = (x3, packed["masks"], packed["wenc"], packed["benc"],
            packed["wms"], packed["bms"], eps.astype(jnp.float32),
            packed["wfz"], packed["bfz"], packed["wdec"], packed["bdec"])

    flops = int(2 * (2 * 9 * N * HW * Cf * Cin)     # encoder + decoder conv
                + 2 * N * Cf * HW * 2 * Z           # [mu | log_sigma2]
                + 2 * N * Z * Cf * HW)              # f_z
    transcend = int(N * Z + N * Cin * HW)           # exp + tanh
    bytes_accessed = int(sum(a.size * a.dtype.itemsize for a in args)
                         + N * Cin * HW * 4 + N * 2 * Z * 4)

    def full(a):
        nd = a.ndim
        return pl.BlockSpec(a.shape, lambda i, _nd=nd: (0,) * _nd)

    out_shapes = (jax.ShapeDtypeStruct((N, Cin, HW), jnp.float32),
                  jax.ShapeDtypeStruct((N, 2 * Z), jnp.float32))
    out_specs = [pl.BlockSpec((N, Cin, HW), lambda i: (0, 0, 0)),
                 pl.BlockSpec((N, 2 * Z), lambda i: (0, 0))]

    xrec3, musig = pl.pallas_call(
        functools.partial(_vae_fused_kernel, width=W, z_dim=Z),
        out_shape=out_shapes,
        grid_spec=pltpu.PrefetchScalarGridSpec(
            num_scalar_prefetch=0,
            grid=(1,),
            in_specs=[full(a) for a in args],
            out_specs=out_specs,
        ),
        compiler_params=pltpu.CompilerParams(
            dimension_semantics=("arbitrary",)),
        cost_estimate=pl.CostEstimate(flops=flops,
                                      transcendentals=transcend,
                                      bytes_accessed=bytes_accessed),
    )(*args)

    x_rec = xrec3.reshape(N, Cin, H, W)
    mu = musig[:, :Z]
    log_sigma2 = musig[:, Z:]
    return x_rec, mu, log_sigma2


# ----------------------------------------------------------------------------
# Pure-JAX f32 reference (PyTorch semantics) for a numerical self-check.
# ----------------------------------------------------------------------------
def vae_forward_ref(p, x, eps):
    N, Cin, H, W = x.shape
    Cf = p["enc_w"].shape[0]
    dn = ("NCHW", "OIHW", "NCHW")
    h = lax.conv_general_dilated(x, p["enc_w"], (1, 1), ((1, 1), (1, 1)),
                                 dimension_numbers=dn)
    h = jax.nn.relu(h + p["enc_b"].reshape(1, Cf, 1, 1))
    hf = h.reshape(N, -1)
    mu = hf @ p["mu_w"] + p["mu_b"]
    ls = hf @ p["sig_w"] + p["sig_b"]
    z = mu + jnp.exp(0.5 * ls) * eps
    hz = (z @ p["fz_w"] + p["fz_b"]).reshape(N, Cf, H, W)
    xr = lax.conv_general_dilated(hz, p["dec_w"], (1, 1), ((1, 1), (1, 1)),
                                  dimension_numbers=dn)
    return jnp.tanh(xr + p["dec_b"].reshape(1, Cin, 1, 1)), mu, ls


if __name__ == "__main__":
    # batch=2, in_size=(4, 16, 16), encoder feature channels=8, z_dim=16
    N, C, H, W = 2, 4, 16, 16
    FEAT_CH, Z_DIM = 8, 16

    key = jax.random.PRNGKey(0)
    k_param, k_x, k_eps = jax.random.split(key, 3)

    raw_params = init_vae_params(k_param, C, FEAT_CH, H, W, Z_DIM)
    packed = pack_params(raw_params, H, W, Z_DIM)      # one-time layout pack
    x = jax.random.normal(k_x, (N, C, H, W), jnp.float32)
    # TODO(synk): torch.randn_like noise is passed in as `eps`; could be moved
    # in-kernel with pltpu.prng_seed + pltpu.stateful_normal.
    eps = jax.random.normal(k_eps, (N, Z_DIM), jnp.float32)

    fwd = jax.jit(vae_forward)
    x_rec, mu, log_sigma2 = fwd(packed, x, eps)
    jax.block_until_ready((x_rec, mu, log_sigma2))

    assert x_rec.shape == (N, C, H, W)
    assert mu.shape == (N, Z_DIM)
    assert log_sigma2.shape == (N, Z_DIM)
    assert bool(jnp.all(jnp.isfinite(x_rec)))

    # Numerical self-check vs. pure-JAX f32 reference (only deliberate
    # deviation: bf16-stored latent weights / bf16 latent-matmul operands).
    xr_ref, mu_ref, ls_ref = vae_forward_ref(raw_params, x, eps)
    assert bool(jnp.allclose(mu, mu_ref, atol=5e-2))
    assert bool(jnp.allclose(log_sigma2, ls_ref, atol=5e-2))
    assert bool(jnp.allclose(x_rec, xr_ref, atol=5e-2))

    print("KERNEL_OK")
</pallas_src>

<mosaic_0001>
module attributes {stable_mosaic.version = 11 : i64} {
  func.func @_vae_fused_kernel(%arg0: i32, %arg1: memref<2x4x256xf32, #tpu.memory_space<vmem>>, %arg2: memref<9x256xf32, #tpu.memory_space<vmem>>, %arg3: memref<9x8x4xf32, #tpu.memory_space<vmem>>, %arg4: memref<1x8x1xf32, #tpu.memory_space<vmem>>, %arg5: memref<8x256x32xbf16, #tpu.memory_space<vmem>>, %arg6: memref<1x32xf32, #tpu.memory_space<vmem>>, %arg7: memref<2x16xf32, #tpu.memory_space<vmem>>, %arg8: memref<8x16x256xbf16, #tpu.memory_space<vmem>>, %arg9: memref<8x1x256xf32, #tpu.memory_space<vmem>>, %arg10: memref<9x4x8xf32, #tpu.memory_space<vmem>>, %arg11: memref<1x4x1xf32, #tpu.memory_space<vmem>>, %arg12: memref<2x4x256xf32, #tpu.memory_space<vmem>>, %arg13: memref<2x32xf32, #tpu.memory_space<vmem>>) attributes {dimension_semantics = [#tpu.dimension_semantics<arbitrary>], iteration_bounds = array<i64: 1>, scalar_prefetch = 0 : i64, scratch_operands = 0 : i64, tpu.core_type = #tpu.core_type<tc>, window_params = [{pipeline_mode = #tpu.pipeline_mode<synchronous>, transform_indices = @transform_0, window_bounds = array<i64: 2, 4, 256>}, {pipeline_mode = #tpu.pipeline_mode<synchronous>, transform_indices = @transform_1, window_bounds = array<i64: 9, 256>}, {pipeline_mode = #tpu.pipeline_mode<synchronous>, transform_indices = @transform_2, window_bounds = array<i64: 9, 8, 4>}, {pipeline_mode = #tpu.pipeline_mode<synchronous>, transform_indices = @transform_3, window_bounds = array<i64: 1, 8, 1>}, {pipeline_mode = #tpu.pipeline_mode<synchronous>, transform_indices = @transform_4, window_bounds = array<i64: 8, 256, 32>}, {pipeline_mode = #tpu.pipeline_mode<synchronous>, transform_indices = @transform_5, window_bounds = array<i64: 1, 32>}, {pipeline_mode = #tpu.pipeline_mode<synchronous>, transform_indices = @transform_6, window_bounds = array<i64: 2, 16>}, {pipeline_mode = #tpu.pipeline_mode<synchronous>, transform_indices = @transform_7, window_bounds = array<i64: 8, 16, 256>}, {pipeline_mode = #tpu.pipeline_mode<synchronous>, transform_indices = @transform_8, window_bounds = array<i64: 8, 1, 256>}, {pipeline_mode = #tpu.pipeline_mode<synchronous>, transform_indices = @transform_9, window_bounds = array<i64: 9, 4, 8>}, {pipeline_mode = #tpu.pipeline_mode<synchronous>, transform_indices = @transform_10, window_bounds = array<i64: 1, 4, 1>}, {pipeline_mode = #tpu.pipeline_mode<synchronous>, transform_indices = @transform_11, window_bounds = array<i64: 2, 4, 256>}, {pipeline_mode = #tpu.pipeline_mode<synchronous>, transform_indices = @transform_12, window_bounds = array<i64: 2, 32>}]} {
    %c0 = arith.constant 0 : index
    %c0_0 = arith.constant 0 : index
    %0 = vector.load %arg2[%c0, %c0_0] : memref<9x256xf32, #tpu.memory_space<vmem>>, vector<9x256xf32>
    %c0_1 = arith.constant 0 : index
    %c0_2 = arith.constant 0 : index
    %c0_3 = arith.constant 0 : index
    %1 = vector.load %arg1[%c0_1, %c0_2, %c0_3] : memref<2x4x256xf32, #tpu.memory_space<vmem>>, vector<2x4x256xf32>
    %c0_4 = arith.constant 0 : index
    %c0_5 = arith.constant 0 : index
    %c0_6 = arith.constant 0 : index
    %2 = vector.load %arg3[%c0_4, %c0_5, %c0_6] : memref<9x8x4xf32, #tpu.memory_space<vmem>>, vector<9x8x4xf32>
    %c0_7 = arith.constant 0 : index
    %c0_8 = arith.constant 0 : index
    %c0_9 = arith.constant 0 : index
    %3 = vector.load %arg4[%c0_7, %c0_8, %c0_9] : memref<1x8x1xf32, #tpu.memory_space<vmem>>, vector<1x8x1xf32>
    %cst = arith.constant 0.000000e+00 : f32
    %4 = vector.broadcast %cst : f32 to vector<2x8x256xf32>
    %5 = vector.extract_strided_slice %1 {offsets = [0, 0, 239], sizes = [2, 4, 17], strides = [1, 1, 1]} : vector<2x4x256xf32> to vector<2x4x17xf32>
    %6 = vector.extract_strided_slice %1 {offsets = [0, 0, 0], sizes = [2, 4, 239], strides = [1, 1, 1]} : vector<2x4x256xf32> to vector<2x4x239xf32>
    %7 = tpu.concatenate %5, %6 in 2 : vector<2x4x17xf32>, vector<2x4x239xf32> -> vector<2x4x256xf32>
    %8 = vector.extract_strided_slice %2 {offsets = [0, 0, 0], sizes = [1, 8, 4], strides = [1, 1, 1]} : vector<9x8x4xf32> to vector<1x8x4xf32>
    %9 = vector.shape_cast %8 : vector<1x8x4xf32> to vector<8x4xf32>
    %10 = vector.shape_cast %9 : vector<8x4xf32> to vector<1x8x4xf32>
    %11 = vector.broadcast %10 : vector<1x8x4xf32> to vector<2x8x4xf32>
    "tpu.trace_start"() <{level = 10 : i32, message = "noc,nch->noh"}> : () -> ()
    %cst_10 = arith.constant dense<0.000000e+00> : vector<2x8x256xf32>
    %12 = tpu.matmul %11, %7, %cst_10 {dimension_numbers = #tpu.dot_dimension_numbers<[2], [1], [1], [2], [0, 0, 0, 1, 1, 2], [0], [0]>} : vector<2x8x4xf32>, vector<2x4x256xf32>, vector<2x8x256xf32> -> vector<2x8x256xf32>
    "tpu.trace_stop"() : () -> ()
    %13 = vector.extract_strided_slice %0 {offsets = [0, 0], sizes = [1, 256], strides = [1, 1]} : vector<9x256xf32> to vector<1x256xf32>
    %14 = vector.shape_cast %13 : vector<1x256xf32> to vector<1x1x256xf32>
    %15 = vector.broadcast %14 : vector<1x1x256xf32> to vector<2x8x256xf32>
    %16 = arith.mulf %12, %15 : vector<2x8x256xf32>
    %17 = arith.addf %4, %16 : vector<2x8x256xf32>
    %18 = vector.extract_strided_slice %1 {offsets = [0, 0, 240], sizes = [2, 4, 16], strides = [1, 1, 1]} : vector<2x4x256xf32> to vector<2x4x16xf32>
    %19 = vector.extract_strided_slice %1 {offsets = [0, 0, 0], sizes = [2, 4, 240], strides = [1, 1, 1]} : vector<2x4x256xf32> to vector<2x4x240xf32>
    %20 = tpu.concatenate %18, %19 in 2 : vector<2x4x16xf32>, vector<2x4x240xf32> -> vector<2x4x256xf32>
    %21 = vector.extract_strided_slice %2 {offsets = [1, 0, 0], sizes = [1, 8, 4], strides = [1, 1, 1]} : vector<9x8x4xf32> to vector<1x8x4xf32>
    %22 = vector.shape_cast %21 : vector<1x8x4xf32> to vector<8x4xf32>
    %23 = vector.shape_cast %22 : vector<8x4xf32> to vector<1x8x4xf32>
    %24 = vector.broadcast %23 : vector<1x8x4xf32> to vector<2x8x4xf32>
    "tpu.trace_start"() <{level = 10 : i32, message = "noc,nch->noh"}> : () -> ()
    %cst_11 = arith.constant dense<0.000000e+00> : vector<2x8x256xf32>
    %25 = tpu.matmul %24, %20, %cst_11 {dimension_numbers = #tpu.dot_dimension_numbers<[2], [1], [1], [2], [0, 0, 0, 1, 1, 2], [0], [0]>} : vector<2x8x4xf32>, vector<2x4x256xf32>, vector<2x8x256xf32> -> vector<2x8x256xf32>
    "tpu.trace_stop"() : () -> ()
    %26 = vector.extract_strided_slice %0 {offsets = [1, 0], sizes = [1, 256], strides = [1, 1]} : vector<9x256xf32> to vector<1x256xf32>
    %27 = vector.shape_cast %26 : vector<1x256xf32> to vector<1x1x256xf32>
    %28 = vector.broadcast %27 : vector<1x1x256xf32> to vector<2x8x256xf32>
    %29 = arith.mulf %25, %28 : vector<2x8x256xf32>
    %30 = arith.addf %17, %29 : vector<2x8x256xf32>
    %31 = vector.extract_strided_slice %1 {offsets = [0, 0, 241], sizes = [2, 4, 15], strides = [1, 1, 1]} : vector<2x4x256xf32> to vector<2x4x15xf32>
    %32 = vector.extract_strided_slice %1 {offsets = [0, 0, 0], sizes = [2, 4, 241], strides = [1, 1, 1]} : vector<2x4x256xf32> to vector<2x4x241xf32>
    %33 = tpu.concatenate %31, %32 in 2 : vector<2x4x15xf32>, vector<2x4x241xf32> -> vector<2x4x256xf32>
    %34 = vector.extract_strided_slice %2 {offsets = [2, 0, 0], sizes = [1, 8, 4], strides = [1, 1, 1]} : vector<9x8x4xf32> to vector<1x8x4xf32>
    %35 = vector.shape_cast %34 : vector<1x8x4xf32> to vector<8x4xf32>
    %36 = vector.shape_cast %35 : vector<8x4xf32> to vector<1x8x4xf32>
    %37 = vector.broadcast %36 : vector<1x8x4xf32> to vector<2x8x4xf32>
    "tpu.trace_start"() <{level = 10 : i32, message = "noc,nch->noh"}> : () -> ()
    %cst_12 = arith.constant dense<0.000000e+00> : vector<2x8x256xf32>
    %38 = tpu.matmul %37, %33, %cst_12 {dimension_numbers = #tpu.dot_dimension_numbers<[2], [1], [1], [2], [0, 0, 0, 1, 1, 2], [0], [0]>} : vector<2x8x4xf32>, vector<2x4x256xf32>, vector<2x8x256xf32> -> vector<2x8x256xf32>
    "tpu.trace_stop"() : () -> ()
    %39 = vector.extract_strided_slice %0 {offsets = [2, 0], sizes = [1, 256], strides = [1, 1]} : vector<9x256xf32> to vector<1x256xf32>
    %40 = vector.shape_cast %39 : vector<1x256xf32> to vector<1x1x256xf32>
    %41 = vector.broadcast %40 : vector<1x1x256xf32> to vector<2x8x256xf32>
    %42 = arith.mulf %38, %41 : vector<2x8x256xf32>
    %43 = arith.addf %30, %42 : vector<2x8x256xf32>
    %44 = vector.extract_strided_slice %1 {offsets = [0, 0, 255], sizes = [2, 4, 1], strides = [1, 1, 1]} : vector<2x4x256xf32> to vector<2x4x1xf32>
    %45 = vector.extract_strided_slice %1 {offsets = [0, 0, 0], sizes = [2, 4, 255], strides = [1, 1, 1]} : vector<2x4x256xf32> to vector<2x4x255xf32>
    %46 = tpu.concatenate %44, %45 in 2 : vector<2x4x1xf32>, vector<2x4x255xf32> -> vector<2x4x256xf32>
    %47 = vector.extract_strided_slice %2 {offsets = [3, 0, 0], sizes = [1, 8, 4], strides = [1, 1, 1]} : vector<9x8x4xf32> to vector<1x8x4xf32>
    %48 = vector.shape_cast %47 : vector<1x8x4xf32> to vector<8x4xf32>
    %49 = vector.shape_cast %48 : vector<8x4xf32> to vector<1x8x4xf32>
    %50 = vector.broadcast %49 : vector<1x8x4xf32> to vector<2x8x4xf32>
    "tpu.trace_start"() <{level = 10 : i32, message = "noc,nch->noh"}> : () -> ()
    %cst_13 = arith.constant dense<0.000000e+00> : vector<2x8x256xf32>
    %51 = tpu.matmul %50, %46, %cst_13 {dimension_numbers = #tpu.dot_dimension_numbers<[2], [1], [1], [2], [0, 0, 0, 1, 1, 2], [0], [0]>} : vector<2x8x4xf32>, vector<2x4x256xf32>, vector<2x8x256xf32> -> vector<2x8x256xf32>
    "tpu.trace_stop"() : () -> ()
    %52 = vector.extract_strided_slice %0 {offsets = [3, 0], sizes = [1, 256], strides = [1, 1]} : vector<9x256xf32> to vector<1x256xf32>
    %53 = vector.shape_cast %52 : vector<1x256xf32> to vector<1x1x256xf32>
    %54 = vector.broadcast %53 : vector<1x1x256xf32> to vector<2x8x256xf32>
    %55 = arith.mulf %51, %54 : vector<2x8x256xf32>
    %56 = arith.addf %43, %55 : vector<2x8x256xf32>
    %57 = vector.extract_strided_slice %2 {offsets = [4, 0, 0], sizes = [1, 8, 4], strides = [1, 1, 1]} : vector<9x8x4xf32> to vector<1x8x4xf32>
    %58 = vector.shape_cast %57 : vector<1x8x4xf32> to vector<8x4xf32>
    %59 = vector.shape_cast %58 : vector<8x4xf32> to vector<1x8x4xf32>
    %60 = vector.broadcast %59 : vector<1x8x4xf32> to vector<2x8x4xf32>
    "tpu.trace_start"() <{level = 10 : i32, message = "noc,nch->noh"}> : () -> ()
    %cst_14 = arith.constant dense<0.000000e+00> : vector<2x8x256xf32>
    %61 = tpu.matmul %60, %1, %cst_14 {dimension_numbers = #tpu.dot_dimension_numbers<[2], [1], [1], [2], [0, 0, 0, 1, 1, 2], [0], [0]>} : vector<2x8x4xf32>, vector<2x4x256xf32>, vector<2x8x256xf32> -> vector<2x8x256xf32>
    "tpu.trace_stop"() : () -> ()
    %62 = vector.extract_strided_slice %0 {offsets = [4, 0], sizes = [1, 256], strides = [1, 1]} : vector<9x256xf32> to vector<1x256xf32>
    %63 = vector.shape_cast %62 : vector<1x256xf32> to vector<1x1x256xf32>
    %64 = vector.broadcast %63 : vector<1x1x256xf32> to vector<2x8x256xf32>
    %65 = arith.mulf %61, %64 : vector<2x8x256xf32>
    %66 = arith.addf %56, %65 : vector<2x8x256xf32>
    %67 = vector.extract_strided_slice %1 {offsets = [0, 0, 1], sizes = [2, 4, 255], strides = [1, 1, 1]} : vector<2x4x256xf32> to vector<2x4x255xf32>
    %68 = vector.extract_strided_slice %1 {offsets = [0, 0, 0], sizes = [2, 4, 1], strides = [1, 1, 1]} : vector<2x4x256xf32> to vector<2x4x1xf32>
    %69 = tpu.concatenate %67, %68 in 2 : vector<2x4x255xf32>, vector<2x4x1xf32> -> vector<2x4x256xf32>
    %70 = vector.extract_strided_slice %2 {offsets = [5, 0, 0], sizes = [1, 8, 4], strides = [1, 1, 1]} : vector<9x8x4xf32> to vector<1x8x4xf32>
    %71 = vector.shape_cast %70 : vector<1x8x4xf32> to vector<8x4xf32>
    %72 = vector.shape_cast %71 : vector<8x4xf32> to vector<1x8x4xf32>
    %73 = vector.broadcast %72 : vector<1x8x4xf32> to vector<2x8x4xf32>
    "tpu.trace_start"() <{level = 10 : i32, message = "noc,nch->noh"}> : () -> ()
    %cst_15 = arith.constant dense<0.000000e+00> : vector<2x8x256xf32>
    %74 = tpu.matmul %73, %69, %cst_15 {dimension_numbers = #tpu.dot_dimension_numbers<[2], [1], [1], [2], [0, 0, 0, 1, 1, 2], [0], [0]>} : vector<2x8x4xf32>, vector<2x4x256xf32>, vector<2x8x256xf32> -> vector<2x8x256xf32>
    "tpu.trace_stop"() : () -> ()
    %75 = vector.extract_strided_slice %0 {offsets = [5, 0], sizes = [1, 256], strides = [1, 1]} : vector<9x256xf32> to vector<1x256xf32>
    %76 = vector.shape_cast %75 : vector<1x256xf32> to vector<1x1x256xf32>
    %77 = vector.broadcast %76 : vector<1x1x256xf32> to vector<2x8x256xf32>
    %78 = arith.mulf %74, %77 : vector<2x8x256xf32>
    %79 = arith.addf %66, %78 : vector<2x8x256xf32>
    %80 = vector.extract_strided_slice %1 {offsets = [0, 0, 15], sizes = [2, 4, 241], strides = [1, 1, 1]} : vector<2x4x256xf32> to vector<2x4x241xf32>
    %81 = vector.extract_strided_slice %1 {offsets = [0, 0, 0], sizes = [2, 4, 15], strides = [1, 1, 1]} : vector<2x4x256xf32> to vector<2x4x15xf32>
    %82 = tpu.concatenate %80, %81 in 2 : vector<2x4x241xf32>, vector<2x4x15xf32> -> vector<2x4x256xf32>
    %83 = vector.extract_strided_slice %2 {offsets = [6, 0, 0], sizes = [1, 8, 4], strides = [1, 1, 1]} : vector<9x8x4xf32> to vector<1x8x4xf32>
    %84 = vector.shape_cast %83 : vector<1x8x4xf32> to vector<8x4xf32>
    %85 = vector.shape_cast %84 : vector<8x4xf32> to vector<1x8x4xf32>
    %86 = vector.broadcast %85 : vector<1x8x4xf32> to vector<2x8x4xf32>
    "tpu.trace_start"() <{level = 10 : i32, message = "noc,nch->noh"}> : () -> ()
    %cst_16 = arith.constant dense<0.000000e+00> : vector<2x8x256xf32>
    %87 = tpu.matmul %86, %82, %cst_16 {dimension_numbers = #tpu.dot_dimension_numbers<[2], [1], [1], [2], [0, 0, 0, 1, 1, 2], [0], [0]>} : vector<2x8x4xf32>, vector<2x4x256xf32>, vector<2x8x256xf32> -> vector<2x8x256xf32>
    "tpu.trace_stop"() : () -> ()
    %88 = vector.extract_strided_slice %0 {offsets = [6, 0], sizes = [1, 256], strides = [1, 1]} : vector<9x256xf32> to vector<1x256xf32>
    %89 = vector.shape_cast %88 : vector<1x256xf32> to vector<1x1x256xf32>
    %90 = vector.broadcast %89 : vector<1x1x256xf32> to vector<2x8x256xf32>
    %91 = arith.mulf %87, %90 : vector<2x8x256xf32>
    %92 = arith.addf %79, %91 : vector<2x8x256xf32>
    %93 = vector.extract_strided_slice %1 {offsets = [0, 0, 16], sizes = [2, 4, 240], strides = [1, 1, 1]} : vector<2x4x256xf32> to vector<2x4x240xf32>
    %94 = vector.extract_strided_slice %1 {offsets = [0, 0, 0], sizes = [2, 4, 16], strides = [1, 1, 1]} : vector<2x4x256xf32> to vector<2x4x16xf32>
    %95 = tpu.concatenate %93, %94 in 2 : vector<2x4x240xf32>, vector<2x4x16xf32> -> vector<2x4x256xf32>
    %96 = vector.extract_strided_slice %2 {offsets = [7, 0, 0], sizes = [1, 8, 4], strides = [1, 1, 1]} : vector<9x8x4xf32> to vector<1x8x4xf32>
    %97 = vector.shape_cast %96 : vector<1x8x4xf32> to vector<8x4xf32>
    %98 = vector.shape_cast %97 : vector<8x4xf32> to vector<1x8x4xf32>
    %99 = vector.broadcast %98 : vector<1x8x4xf32> to vector<2x8x4xf32>
    "tpu.trace_start"() <{level = 10 : i32, message = "noc,nch->noh"}> : () -> ()
    %cst_17 = arith.constant dense<0.000000e+00> : vector<2x8x256xf32>
    %100 = tpu.matmul %99, %95, %cst_17 {dimension_numbers = #tpu.dot_dimension_numbers<[2], [1], [1], [2], [0, 0, 0, 1, 1, 2], [0], [0]>} : vector<2x8x4xf32>, vector<2x4x256xf32>, vector<2x8x256xf32> -> vector<2x8x256xf32>
    "tpu.trace_stop"() : () -> ()
    %101 = vector.extract_strided_slice %0 {offsets = [7, 0], sizes = [1, 256], strides = [1, 1]} : vector<9x256xf32> to vector<1x256xf32>
    %102 = vector.shape_cast %101 : vector<1x256xf32> to vector<1x1x256xf32>
    %103 = vector.broadcast %102 : vector<1x1x256xf32> to vector<2x8x256xf32>
    %104 = arith.mulf %100, %103 : vector<2x8x256xf32>
    %105 = arith.addf %92, %104 : vector<2x8x256xf32>
    %106 = vector.extract_strided_slice %1 {offsets = [0, 0, 17], sizes = [2, 4, 239], strides = [1, 1, 1]} : vector<2x4x256xf32> to vector<2x4x239xf32>
    %107 = vector.extract_strided_slice %1 {offsets = [0, 0, 0], sizes = [2, 4, 17], strides = [1, 1, 1]} : vector<2x4x256xf32> to vector<2x4x17xf32>
    %108 = tpu.concatenate %106, %107 in 2 : vector<2x4x239xf32>, vector<2x4x17xf32> -> vector<2x4x256xf32>
    %109 = vector.extract_strided_slice %2 {offsets = [8, 0, 0], sizes = [1, 8, 4], strides = [1, 1, 1]} : vector<9x8x4xf32> to vector<1x8x4xf32>
    %110 = vector.shape_cast %109 : vector<1x8x4xf32> to vector<8x4xf32>
    %111 = vector.shape_cast %110 : vector<8x4xf32> to vector<1x8x4xf32>
    %112 = vector.broadcast %111 : vector<1x8x4xf32> to vector<2x8x4xf32>
    "tpu.trace_start"() <{level = 10 : i32, message = "noc,nch->noh"}> : () -> ()
    %cst_18 = arith.constant dense<0.000000e+00> : vector<2x8x256xf32>
    %113 = tpu.matmul %112, %108, %cst_18 {dimension_numbers = #tpu.dot_dimension_numbers<[2], [1], [1], [2], [0, 0, 0, 1, 1, 2], [0], [0]>} : vector<2x8x4xf32>, vector<2x4x256xf32>, vector<2x8x256xf32> -> vector<2x8x256xf32>
    "tpu.trace_stop"() : () -> ()
    %114 = vector.extract_strided_slice %0 {offsets = [8, 0], sizes = [1, 256], strides = [1, 1]} : vector<9x256xf32> to vector<1x256xf32>
    %115 = vector.shape_cast %114 : vector<1x256xf32> to vector<1x1x256xf32>
    %116 = vector.broadcast %115 : vector<1x1x256xf32> to vector<2x8x256xf32>
    %117 = arith.mulf %113, %116 : vector<2x8x256xf32>
    %118 = arith.addf %105, %117 : vector<2x8x256xf32>
    %119 = vector.broadcast %3 : vector<1x8x1xf32> to vector<2x8x256xf32>
    %120 = arith.addf %118, %119 : vector<2x8x256xf32>
    %cst_19 = arith.constant 0.000000e+00 : f32
    %121 = vector.broadcast %cst_19 : f32 to vector<2x8x256xf32>
    %122 = arith.maximumf %120, %121 : vector<2x8x256xf32>
    %123 = tpu.transpose %122, [1, 0, 2] : vector<2x8x256xf32> -> vector<8x2x256xf32>
    %124 = arith.truncf %123 : vector<8x2x256xf32> to vector<8x2x256xbf16>
    %c0_20 = arith.constant 0 : index
    %c0_21 = arith.constant 0 : index
    %c0_22 = arith.constant 0 : index
    %125 = vector.load %arg5[%c0_20, %c0_21, %c0_22] : memref<8x256x32xbf16, #tpu.memory_space<vmem>>, vector<8x256x32xbf16>
    "tpu.trace_start"() <{level = 10 : i32, message = "cns,cst->cnt"}> : () -> ()
    %cst_23 = arith.constant dense<0.000000e+00> : vector<8x2x32xf32>
    %126 = tpu.matmul %124, %125, %cst_23 {dimension_numbers = #tpu.dot_dimension_numbers<[2], [1], [1], [2], [0, 0, 0, 1, 1, 2], [0], [0]>} : vector<8x2x256xbf16>, vector<8x256x32xbf16>, vector<8x2x32xf32> -> vector<8x2x32xf32>
    "tpu.trace_stop"() : () -> ()
    %cst_24 = arith.constant dense<0.000000e+00> : vector<2x32xf32>
    %127 = vector.multi_reduction <add>, %126, %cst_24 [0] : vector<8x2x32xf32> to vector<2x32xf32>
    %c0_25 = arith.constant 0 : index
    %c0_26 = arith.constant 0 : index
    %128 = vector.load %arg6[%c0_25, %c0_26] : memref<1x32xf32, #tpu.memory_space<vmem>>, vector<1x32xf32>
    %129 = vector.broadcast %128 : vector<1x32xf32> to vector<2x32xf32>
    %130 = arith.addf %127, %129 : vector<2x32xf32>
    %c0_27 = arith.constant 0 : index
    %c0_28 = arith.constant 0 : index
    %131 = vector.load %arg13[%c0_27, %c0_28] : memref<2x32xf32, #tpu.memory_space<vmem>>, vector<2x32xf32>
    tpu.vector_store %arg13[%c0_27, %c0_28], %130 {strides = array<i32>} : memref<2x32xf32, #tpu.memory_space<vmem>>, vector<2x32xf32>,
    %132 = vector.extract_strided_slice %130 {offsets = [0, 0], sizes = [2, 16], strides = [1, 1]} : vector<2x32xf32> to vector<2x16xf32>
    %133 = vector.extract_strided_slice %130 {offsets = [0, 16], sizes = [2, 16], strides = [1, 1]} : vector<2x32xf32> to vector<2x16xf32>
    %cst_29 = arith.constant 5.000000e-01 : f32
    %134 = vector.broadcast %cst_29 : f32 to vector<2x16xf32>
    %135 = arith.mulf %134, %133 : vector<2x16xf32>
    %136 = math.exp %135 : vector<2x16xf32>
    %c0_30 = arith.constant 0 : index
    %c0_31 = arith.constant 0 : index
    %137 = vector.load %arg7[%c0_30, %c0_31] : memref<2x16xf32, #tpu.memory_space<vmem>>, vector<2x16xf32>
    %138 = arith.mulf %136, %137 : vector<2x16xf32>
    %139 = arith.addf %132, %138 : vector<2x16xf32>
    %140 = arith.truncf %139 : vector<2x16xf32> to vector<2x16xbf16>
    %141 = vector.shape_cast %140 : vector<2x16xbf16> to vector<1x2x16xbf16>
    %142 = vector.shape_cast %141 : vector<1x2x16xbf16> to vector<1x2x16xbf16>
    %143 = vector.broadcast %142 : vector<1x2x16xbf16> to vector<8x2x16xbf16>
    %c0_32 = arith.constant 0 : index
    %c0_33 = arith.constant 0 : index
    %c0_34 = arith.constant 0 : index
    %144 = vector.load %arg8[%c0_32, %c0_33, %c0_34] : memref<8x16x256xbf16, #tpu.memory_space<vmem>>, vector<8x16x256xbf16>
    "tpu.trace_start"() <{level = 10 : i32, message = "cnz,czs->cns"}> : () -> ()
    %cst_35 = arith.constant dense<0.000000e+00> : vector<8x2x256xf32>
    %145 = tpu.matmul %143, %144, %cst_35 {dimension_numbers = #tpu.dot_dimension_numbers<[2], [1], [1], [2], [0, 0, 0, 1, 1, 2], [0], [0]>} : vector<8x2x16xbf16>, vector<8x16x256xbf16>, vector<8x2x256xf32> -> vector<8x2x256xf32>
    "tpu.trace_stop"() : () -> ()
    %c0_36 = arith.constant 0 : index
    %c0_37 = arith.constant 0 : index
    %c0_38 = arith.constant 0 : index
    %146 = vector.load %arg9[%c0_36, %c0_37, %c0_38] : memref<8x1x256xf32, #tpu.memory_space<vmem>>, vector<8x1x256xf32>
    %147 = vector.broadcast %146 : vector<8x1x256xf32> to vector<8x2x256xf32>
    %148 = arith.addf %145, %147 : vector<8x2x256xf32>
    %149 = tpu.transpose %148, [1, 0, 2] : vector<8x2x256xf32> -> vector<2x8x256xf32>
    %c0_39 = arith.constant 0 : index
    %c0_40 = arith.constant 0 : index
    %c0_41 = arith.constant 0 : index
    %150 = vector.load %arg10[%c0_39, %c0_40, %c0_41] : memref<9x4x8xf32, #tpu.memory_space<vmem>>, vector<9x4x8xf32>
    %c0_42 = arith.constant 0 : index
    %c0_43 = arith.constant 0 : index
    %c0_44 = arith.constant 0 : index
    %151 = vector.load %arg11[%c0_42, %c0_43, %c0_44] : memref<1x4x1xf32, #tpu.memory_space<vmem>>, vector<1x4x1xf32>
    %cst_45 = arith.constant 0.000000e+00 : f32
    %152 = vector.broadcast %cst_45 : f32 to vector<2x4x256xf32>
    %153 = vector.extract_strided_slice %149 {offsets = [0, 0, 239], sizes = [2, 8, 17], strides = [1, 1, 1]} : vector<2x8x256xf32> to vector<2x8x17xf32>
    %154 = vector.extract_strided_slice %149 {offsets = [0, 0, 0], sizes = [2, 8, 239], strides = [1, 1, 1]} : vector<2x8x256xf32> to vector<2x8x239xf32>
    %155 = tpu.concatenate %153, %154 in 2 : vector<2x8x17xf32>, vector<2x8x239xf32> -> vector<2x8x256xf32>
    %156 = vector.extract_strided_slice %150 {offsets = [0, 0, 0], sizes = [1, 4, 8], strides = [1, 1, 1]} : vector<9x4x8xf32> to vector<1x4x8xf32>
    %157 = vector.shape_cast %156 : vector<1x4x8xf32> to vector<4x8xf32>
    %158 = vector.shape_cast %157 : vector<4x8xf32> to vector<1x4x8xf32>
    %159 = vector.broadcast %158 : vector<1x4x8xf32> to vector<2x4x8xf32>
    "tpu.trace_start"() <{level = 10 : i32, message = "noc,nch->noh"}> : () -> ()
    %cst_46 = arith.constant dense<0.000000e+00> : vector<2x4x256xf32>
    %160 = tpu.matmul %159, %155, %cst_46 {dimension_numbers = #tpu.dot_dimension_numbers<[2], [1], [1], [2], [0, 0, 0, 1, 1, 2], [0], [0]>} : vector<2x4x8xf32>, vector<2x8x256xf32>, vector<2x4x256xf32> -> vector<2x4x256xf32>
    "tpu.trace_stop"() : () -> ()
    %161 = vector.extract_strided_slice %0 {offsets = [0, 0], sizes = [1, 256], strides = [1, 1]} : vector<9x256xf32> to vector<1x256xf32>
    %162 = vector.shape_cast %161 : vector<1x256xf32> to vector<1x1x256xf32>
    %163 = vector.broadcast %162 : vector<1x1x256xf32> to vector<2x4x256xf32>
    %164 = arith.mulf %160, %163 : vector<2x4x256xf32>
    %165 = arith.addf %152, %164 : vector<2x4x256xf32>
    %166 = vector.extract_strided_slice %149 {offsets = [0, 0, 240], sizes = [2, 8, 16], strides = [1, 1, 1]} : vector<2x8x256xf32> to vector<2x8x16xf32>
    %167 = vector.extract_strided_slice %149 {offsets = [0, 0, 0], sizes = [2, 8, 240], strides = [1, 1, 1]} : vector<2x8x256xf32> to vector<2x8x240xf32>
    %168 = tpu.concatenate %166, %167 in 2 : vector<2x8x16xf32>, vector<2x8x240xf32> -> vector<2x8x256xf32>
    %169 = vector.extract_strided_slice %150 {offsets = [1, 0, 0], sizes = [1, 4, 8], strides = [1, 1, 1]} : vector<9x4x8xf32> to vector<1x4x8xf32>
    %170 = vector.shape_cast %169 : vector<1x4x8xf32> to vector<4x8xf32>
    %171 = vector.shape_cast %170 : vector<4x8xf32> to vector<1x4x8xf32>
    %172 = vector.broadcast %171 : vector<1x4x8xf32> to vector<2x4x8xf32>
    "tpu.trace_start"() <{level = 10 : i32, message = "noc,nch->noh"}> : () -> ()
    %cst_47 = arith.constant dense<0.000000e+00> : vector<2x4x256xf32>
    %173 = tpu.matmul %172, %168, %cst_47 {dimension_numbers = #tpu.dot_dimension_numbers<[2], [1], [1], [2], [0, 0, 0, 1, 1, 2], [0], [0]>} : vector<2x4x8xf32>, vector<2x8x256xf32>, vector<2x4x256xf32> -> vector<2x4x256xf32>
    "tpu.trace_stop"() : () -> ()
    %174 = vector.extract_strided_slice %0 {offsets = [1, 0], sizes = [1, 256], strides = [1, 1]} : vector<9x256xf32> to vector<1x256xf32>
    %175 = vector.shape_cast %174 : vector<1x256xf32> to vector<1x1x256xf32>
    %176 = vector.broadcast %175 : vector<1x1x256xf32> to vector<2x4x256xf32>
    %177 = arith.mulf %173, %176 : vector<2x4x256xf32>
    %178 = arith.addf %165, %177 : vector<2x4x256xf32>
    %179 = vector.extract_strided_slice %149 {offsets = [0, 0, 241], sizes = [2, 8, 15], strides = [1, 1, 1]} : vector<2x8x256xf32> to vector<2x8x15xf32>
    %180 = vector.extract_strided_slice %149 {offsets = [0, 0, 0], sizes = [2, 8, 241], strides = [1, 1, 1]} : vector<2x8x256xf32> to vector<2x8x241xf32>
    %181 = tpu.concatenate %179, %180 in 2 : vector<2x8x15xf32>, vector<2x8x241xf32> -> vector<2x8x256xf32>
    %182 = vector.extract_strided_slice %150 {offsets = [2, 0, 0], sizes = [1, 4, 8], strides = [1, 1, 1]} : vector<9x4x8xf32> to vector<1x4x8xf32>
    %183 = vector.shape_cast %182 : vector<1x4x8xf32> to vector<4x8xf32>
    %184 = vector.shape_cast %183 : vector<4x8xf32> to vector<1x4x8xf32>
    %185 = vector.broadcast %184 : vector<1x4x8xf32> to vector<2x4x8xf32>
    "tpu.trace_start"() <{level = 10 : i32, message = "noc,nch->noh"}> : () -> ()
    %cst_48 = arith.constant dense<0.000000e+00> : vector<2x4x256xf32>
    %186 = tpu.matmul %185, %181, %cst_48 {dimension_numbers = #tpu.dot_dimension_numbers<[2], [1], [1], [2], [0, 0, 0, 1, 1, 2], [0], [0]>} : vector<2x4x8xf32>, vector<2x8x256xf32>, vector<2x4x256xf32> -> vector<2x4x256xf32>
    "tpu.trace_stop"() : () -> ()
    %187 = vector.extract_strided_slice %0 {offsets = [2, 0], sizes = [1, 256], strides = [1, 1]} : vector<9x256xf32> to vector<1x256xf32>
    %188 = vector.shape_cast %187 : vector<1x256xf32> to vector<1x1x256xf32>
    %189 = vector.broadcast %188 : vector<1x1x256xf32> to vector<2x4x256xf32>
    %190 = arith.mulf %186, %189 : vector<2x4x256xf32>
    %191 = arith.addf %178, %190 : vector<2x4x256xf32>
    %192 = vector.extract_strided_slice %149 {offsets = [0, 0, 255], sizes = [2, 8, 1], strides = [1, 1, 1]} : vector<2x8x256xf32> to vector<2x8x1xf32>
    %193 = vector.extract_strided_slice %149 {offsets = [0, 0, 0], sizes = [2, 8, 255], strides = [1, 1, 1]} : vector<2x8x256xf32> to vector<2x8x255xf32>
    %194 = tpu.concatenate %192, %193 in 2 : vector<2x8x1xf32>, vector<2x8x255xf32> -> vector<2x8x256xf32>
    %195 = vector.extract_strided_slice %150 {offsets = [3, 0, 0], sizes = [1, 4, 8], strides = [1, 1, 1]} : vector<9x4x8xf32> to vector<1x4x8xf32>
    %196 = vector.shape_cast %195 : vector<1x4x8xf32> to vector<4x8xf32>
    %197 = vector.shape_cast %196 : vector<4x8xf32> to vector<1x4x8xf32>
    %198 = vector.broadcast %197 : vector<1x4x8xf32> to vector<2x4x8xf32>
    "tpu.trace_start"() <{level = 10 : i32, message = "noc,nch->noh"}> : () -> ()
    %cst_49 = arith.constant dense<0.000000e+00> : vector<2x4x256xf32>
    %199 = tpu.matmul %198, %194, %cst_49 {dimension_numbers = #tpu.dot_dimension_numbers<[2], [1], [1], [2], [0, 0, 0, 1, 1, 2], [0], [0]>} : vector<2x4x8xf32>, vector<2x8x256xf32>, vector<2x4x256xf32> -> vector<2x4x256xf32>
    "tpu.trace_stop"() : () -> ()
    %200 = vector.extract_strided_slice %0 {offsets = [3, 0], sizes = [1, 256], strides = [1, 1]} : vector<9x256xf32> to vector<1x256xf32>
    %201 = vector.shape_cast %200 : vector<1x256xf32> to vector<1x1x256xf32>
    %202 = vector.broadcast %201 : vector<1x1x256xf32> to vector<2x4x256xf32>
    %203 = arith.mulf %199, %202 : vector<2x4x256xf32>
    %204 = arith.addf %191, %203 : vector<2x4x256xf32>
    %205 = vector.extract_strided_slice %150 {offsets = [4, 0, 0], sizes = [1, 4, 8], strides = [1, 1, 1]} : vector<9x4x8xf32> to vector<1x4x8xf32>
    %206 = vector.shape_cast %205 : vector<1x4x8xf32> to vector<4x8xf32>
    %207 = vector.shape_cast %206 : vector<4x8xf32> to vector<1x4x8xf32>
    %208 = vector.broadcast %207 : vector<1x4x8xf32> to vector<2x4x8xf32>
    "tpu.trace_start"() <{level = 10 : i32, message = "noc,nch->noh"}> : () -> ()
    %cst_50 = arith.constant dense<0.000000e+00> : vector<2x4x256xf32>
    %209 = tpu.matmul %208, %149, %cst_50 {dimension_numbers = #tpu.dot_dimension_numbers<[2], [1], [1], [2], [0, 0, 0, 1, 1, 2], [0], [0]>} : vector<2x4x8xf32>, vector<2x8x256xf32>, vector<2x4x256xf32> -> vector<2x4x256xf32>
    "tpu.trace_stop"() : () -> ()
    %210 = vector.extract_strided_slice %0 {offsets = [4, 0], sizes = [1, 256], strides = [1, 1]} : vector<9x256xf32> to vector<1x256xf32>
    %211 = vector.shape_cast %210 : vector<1x256xf32> to vector<1x1x256xf32>
    %212 = vector.broadcast %211 : vector<1x1x256xf32> to vector<2x4x256xf32>
    %213 = arith.mulf %209, %212 : vector<2x4x256xf32>
    %214 = arith.addf %204, %213 : vector<2x4x256xf32>
    %215 = vector.extract_strided_slice %149 {offsets = [0, 0, 1], sizes = [2, 8, 255], strides = [1, 1, 1]} : vector<2x8x256xf32> to vector<2x8x255xf32>
    %216 = vector.extract_strided_slice %149 {offsets = [0, 0, 0], sizes = [2, 8, 1], strides = [1, 1, 1]} : vector<2x8x256xf32> to vector<2x8x1xf32>
    %217 = tpu.concatenate %215, %216 in 2 : vector<2x8x255xf32>, vector<2x8x1xf32> -> vector<2x8x256xf32>
    %218 = vector.extract_strided_slice %150 {offsets = [5, 0, 0], sizes = [1, 4, 8], strides = [1, 1, 1]} : vector<9x4x8xf32> to vector<1x4x8xf32>
    %219 = vector.shape_cast %218 : vector<1x4x8xf32> to vector<4x8xf32>
    %220 = vector.shape_cast %219 : vector<4x8xf32> to vector<1x4x8xf32>
    %221 = vector.broadcast %220 : vector<1x4x8xf32> to vector<2x4x8xf32>
    "tpu.trace_start"() <{level = 10 : i32, message = "noc,nch->noh"}> : () -> ()
    %cst_51 = arith.constant dense<0.000000e+00> : vector<2x4x256xf32>
    %222 = tpu.matmul %221, %217, %cst_51 {dimension_numbers = #tpu.dot_dimension_numbers<[2], [1], [1], [2], [0, 0, 0, 1, 1, 2], [0], [0]>} : vector<2x4x8xf32>, vector<2x8x256xf32>, vector<2x4x256xf32> -> vector<2x4x256xf32>
    "tpu.trace_stop"() : () -> ()
    %223 = vector.extract_strided_slice %0 {offsets = [5, 0], sizes = [1, 256], strides = [1, 1]} : vector<9x256xf32> to vector<1x256xf32>
    %224 = vector.shape_cast %223 : vector<1x256xf32> to vector<1x1x256xf32>
    %225 = vector.broadcast %224 : vector<1x1x256xf32> to vector<2x4x256xf32>
    %226 = arith.mulf %222, %225 : vector<2x4x256xf32>
    %227 = arith.addf %214, %226 : vector<2x4x256xf32>
    %228 = vector.extract_strided_slice %149 {offsets = [0, 0, 15], sizes = [2, 8, 241], strides = [1, 1, 1]} : vector<2x8x256xf32> to vector<2x8x241xf32>
    %229 = vector.extract_strided_slice %149 {offsets = [0, 0, 0], sizes = [2, 8, 15], strides = [1, 1, 1]} : vector<2x8x256xf32> to vector<2x8x15xf32>
    %230 = tpu.concatenate %228, %229 in 2 : vector<2x8x241xf32>, vector<2x8x15xf32> -> vector<2x8x256xf32>
    %231 = vector.extract_strided_slice %150 {offsets = [6, 0, 0], sizes = [1, 4, 8], strides = [1, 1, 1]} : vector<9x4x8xf32> to vector<1x4x8xf32>
    %232 = vector.shape_cast %231 : vector<1x4x8xf32> to vector<4x8xf32>
    %233 = vector.shape_cast %232 : vector<4x8xf32> to vector<1x4x8xf32>
    %234 = vector.broadcast %233 : vector<1x4x8xf32> to vector<2x4x8xf32>
    "tpu.trace_start"() <{level = 10 : i32, message = "noc,nch->noh"}> : () -> ()
    %cst_52 = arith.constant dense<0.000000e+00> : vector<2x4x256xf32>
    %235 = tpu.matmul %234, %230, %cst_52 {dimension_numbers = #tpu.dot_dimension_numbers<[2], [1], [1], [2], [0, 0, 0, 1, 1, 2], [0], [0]>} : vector<2x4x8xf32>, vector<2x8x256xf32>, vector<2x4x256xf32> -> vector<2x4x256xf32>
    "tpu.trace_stop"() : () -> ()
    %236 = vector.extract_strided_slice %0 {offsets = [6, 0], sizes = [1, 256], strides = [1, 1]} : vector<9x256xf32> to vector<1x256xf32>
    %237 = vector.shape_cast %236 : vector<1x256xf32> to vector<1x1x256xf32>
    %238 = vector.broadcast %237 : vector<1x1x256xf32> to vector<2x4x256xf32>
    %239 = arith.mulf %235, %238 : vector<2x4x256xf32>
    %240 = arith.addf %227, %239 : vector<2x4x256xf32>
    %241 = vector.extract_strided_slice %149 {offsets = [0, 0, 16], sizes = [2, 8, 240], strides = [1, 1, 1]} : vector<2x8x256xf32> to vector<2x8x240xf32>
    %242 = vector.extract_strided_slice %149 {offsets = [0, 0, 0], sizes = [2, 8, 16], strides = [1, 1, 1]} : vector<2x8x256xf32> to vector<2x8x16xf32>
    %243 = tpu.concatenate %241, %242 in 2 : vector<2x8x240xf32>, vector<2x8x16xf32> -> vector<2x8x256xf32>
    %244 = vector.extract_strided_slice %150 {offsets = [7, 0, 0], sizes = [1, 4, 8], strides = [1, 1, 1]} : vector<9x4x8xf32> to vector<1x4x8xf32>
    %245 = vector.shape_cast %244 : vector<1x4x8xf32> to vector<4x8xf32>
    %246 = vector.shape_cast %245 : vector<4x8xf32> to vector<1x4x8xf32>
    %247 = vector.broadcast %246 : vector<1x4x8xf32> to vector<2x4x8xf32>
    "tpu.trace_start"() <{level = 10 : i32, message = "noc,nch->noh"}> : () -> ()
    %cst_53 = arith.constant dense<0.000000e+00> : vector<2x4x256xf32>
    %248 = tpu.matmul %247, %243, %cst_53 {dimension_numbers = #tpu.dot_dimension_numbers<[2], [1], [1], [2], [0, 0, 0, 1, 1, 2], [0], [0]>} : vector<2x4x8xf32>, vector<2x8x256xf32>, vector<2x4x256xf32> -> vector<2x4x256xf32>
    "tpu.trace_stop"() : () -> ()
    %249 = vector.extract_strided_slice %0 {offsets = [7, 0], sizes = [1, 256], strides = [1, 1]} : vector<9x256xf32> to vector<1x256xf32>
    %250 = vector.shape_cast %249 : vector<1x256xf32> to vector<1x1x256xf32>
    %251 = vector.broadcast %250 : vector<1x1x256xf32> to vector<2x4x256xf32>
    %252 = arith.mulf %248, %251 : vector<2x4x256xf32>
    %253 = arith.addf %240, %252 : vector<2x4x256xf32>
    %254 = vector.extract_strided_slice %149 {offsets = [0, 0, 17], sizes = [2, 8, 239], strides = [1, 1, 1]} : vector<2x8x256xf32> to vector<2x8x239xf32>
    %255 = vector.extract_strided_slice %149 {offsets = [0, 0, 0], sizes = [2, 8, 17], strides = [1, 1, 1]} : vector<2x8x256xf32> to vector<2x8x17xf32>
    %256 = tpu.concatenate %254, %255 in 2 : vector<2x8x239xf32>, vector<2x8x17xf32> -> vector<2x8x256xf32>
    %257 = vector.extract_strided_slice %150 {offsets = [8, 0, 0], sizes = [1, 4, 8], strides = [1, 1, 1]} : vector<9x4x8xf32> to vector<1x4x8xf32>
    %258 = vector.shape_cast %257 : vector<1x4x8xf32> to vector<4x8xf32>
    %259 = vector.shape_cast %258 : vector<4x8xf32> to vector<1x4x8xf32>
    %260 = vector.broadcast %259 : vector<1x4x8xf32> to vector<2x4x8xf32>
    "tpu.trace_start"() <{level = 10 : i32, message = "noc,nch->noh"}> : () -> ()
    %cst_54 = arith.constant dense<0.000000e+00> : vector<2x4x256xf32>
    %261 = tpu.matmul %260, %256, %cst_54 {dimension_numbers = #tpu.dot_dimension_numbers<[2], [1], [1], [2], [0, 0, 0, 1, 1, 2], [0], [0]>} : vector<2x4x8xf32>, vector<2x8x256xf32>, vector<2x4x256xf32> -> vector<2x4x256xf32>
    "tpu.trace_stop"() : () -> ()
    %262 = vector.extract_strided_slice %0 {offsets = [8, 0], sizes = [1, 256], strides = [1, 1]} : vector<9x256xf32> to vector<1x256xf32>
    %263 = vector.shape_cast %262 : vector<1x256xf32> to vector<1x1x256xf32>
    %264 = vector.broadcast %263 : vector<1x1x256xf32> to vector<2x4x256xf32>
    %265 = arith.mulf %261, %264 : vector<2x4x256xf32>
    %266 = arith.addf %253, %265 : vector<2x4x256xf32>
    %267 = vector.broadcast %151 : vector<1x4x1xf32> to vector<2x4x256xf32>
    %268 = arith.addf %266, %267 : vector<2x4x256xf32>
    %269 = math.tanh %268 : vector<2x4x256xf32>
    %c0_55 = arith.constant 0 : index
    %c0_56 = arith.constant 0 : index
    %c0_57 = arith.constant 0 : index
    %270 = vector.load %arg12[%c0_55, %c0_56, %c0_57] : memref<2x4x256xf32, #tpu.memory_space<vmem>>, vector<2x4x256xf32>
    tpu.vector_store %arg12[%c0_55, %c0_56, %c0_57], %269 {strides = array<i32>} : memref<2x4x256xf32, #tpu.memory_space<vmem>>, vector<2x4x256xf32>,
    return
  }
  func.func @transform_0(%arg0: i32) -> (i32, i32, i32) {
    %c0_i32 = arith.constant 0 : i32
    %c0_i32_0 = arith.constant 0 : i32
    %c0_i32_1 = arith.constant 0 : i32
    %c0_i32_2 = arith.constant 0 : i32
    return %c0_i32, %c0_i32_0, %c0_i32_1 : i32, i32, i32
  }
  func.func @transform_1(%arg0: i32) -> (i32, i32) {
    %c0_i32 = arith.constant 0 : i32
    %c0_i32_0 = arith.constant 0 : i32
    %c0_i32_1 = arith.constant 0 : i32
    return %c0_i32, %c0_i32_0 : i32, i32
  }
  func.func @transform_2(%arg0: i32) -> (i32, i32, i32) {
    %c0_i32 = arith.constant 0 : i32
    %c0_i32_0 = arith.constant 0 : i32
    %c0_i32_1 = arith.constant 0 : i32
    %c0_i32_2 = arith.constant 0 : i32
    return %c0_i32, %c0_i32_0, %c0_i32_1 : i32, i32, i32
  }
  func.func @transform_3(%arg0: i32) -> (i32, i32, i32) {
    %c0_i32 = arith.constant 0 : i32
    %c0_i32_0 = arith.constant 0 : i32
    %c0_i32_1 = arith.constant 0 : i32
    %c0_i32_2 = arith.constant 0 : i32
    return %c0_i32, %c0_i32_0, %c0_i32_1 : i32, i32, i32
  }
  func.func @transform_4(%arg0: i32) -> (i32, i32, i32) {
    %c0_i32 = arith.constant 0 : i32
    %c0_i32_0 = arith.constant 0 : i32
    %c0_i32_1 = arith.constant 0 : i32
    %c0_i32_2 = arith.constant 0 : i32
    return %c0_i32, %c0_i32_0, %c0_i32_1 : i32, i32, i32
  }
  func.func @transform_5(%arg0: i32) -> (i32, i32) {
    %c0_i32 = arith.constant 0 : i32
    %c0_i32_0 = arith.constant 0 : i32
    %c0_i32_1 = arith.constant 0 : i32
    return %c0_i32, %c0_i32_0 : i32, i32
  }
  func.func @transform_6(%arg0: i32) -> (i32, i32) {
    %c0_i32 = arith.constant 0 : i32
    %c0_i32_0 = arith.constant 0 : i32
    %c0_i32_1 = arith.constant 0 : i32
    return %c0_i32, %c0_i32_0 : i32, i32
  }
  func.func @transform_7(%arg0: i32) -> (i32, i32, i32) {
    %c0_i32 = arith.constant 0 : i32
    %c0_i32_0 = arith.constant 0 : i32
    %c0_i32_1 = arith.constant 0 : i32
    %c0_i32_2 = arith.constant 0 : i32
    return %c0_i32, %c0_i32_0, %c0_i32_1 : i32, i32, i32
  }
  func.func @transform_8(%arg0: i32) -> (i32, i32, i32) {
    %c0_i32 = arith.constant 0 : i32
    %c0_i32_0 = arith.constant 0 : i32
    %c0_i32_1 = arith.constant 0 : i32
    %c0_i32_2 = arith.constant 0 : i32
    return %c0_i32, %c0_i32_0, %c0_i32_1 : i32, i32, i32
  }
  func.func @transform_9(%arg0: i32) -> (i32, i32, i32) {
    %c0_i32 = arith.constant 0 : i32
    %c0_i32_0 = arith.constant 0 : i32
    %c0_i32_1 = arith.constant 0 : i32
    %c0_i32_2 = arith.constant 0 : i32
    return %c0_i32, %c0_i32_0, %c0_i32_1 : i32, i32, i32
  }
  func.func @transform_10(%arg0: i32) -> (i32, i32, i32) {
    %c0_i32 = arith.constant 0 : i32
    %c0_i32_0 = arith.constant 0 : i32
    %c0_i32_1 = arith.constant 0 : i32
    %c0_i32_2 = arith.constant 0 : i32
    return %c0_i32, %c0_i32_0, %c0_i32_1 : i32, i32, i32
  }
  func.func @transform_11(%arg0: i32) -> (i32, i32, i32) {
    %c0_i32 = arith.constant 0 : i32
    %c0_i32_0 = arith.constant 0 : i32
    %c0_i32_1 = arith.constant 0 : i32
    %c0_i32_2 = arith.constant 0 : i32
    return %c0_i32, %c0_i32_0, %c0_i32_1 : i32, i32, i32
  }
  func.func @transform_12(%arg0: i32) -> (i32, i32) {
    %c0_i32 = arith.constant 0 : i32
    %c0_i32_0 = arith.constant 0 : i32
    %c0_i32_1 = arith.constant 0 : i32
    return %c0_i32, %c0_i32_0 : i32, i32
  }
}

</mosaic_0001>

<llo_original>
// kernel: vae_forward.1
$region0: #{vae_forward.1}
  #allocation0 [shape = 'u32[]', space=smem, size = 0x4, offset = 0x4, fixed_abs, tag = 'smem constant byte address 0x4 - core index']
  #allocation1 [shape = 'u32[72,128]{1,0:T(1,128)}', space=vmem, size = 0x9000, scoped, tag = 'internal scratch']
  %s0 = inlined_call_operand.vmem [shape: f32[2,4,256], index: 0, kind: input, shape index: {}]
  %s1 = inlined_call_operand.vmem [shape: f32[9,256], index: 1, kind: input, shape index: {}]
  %s2 = inlined_call_operand.vmem [shape: f32[9,8,4], index: 2, kind: input, shape index: {}]
  %s3 = inlined_call_operand.vmem [shape: f32[1,8,1], index: 3, kind: input, shape index: {}]
  %s4 = inlined_call_operand.vmem [shape: bf16[8,256,32], index: 4, kind: input, shape index: {}]
  %s5 = inlined_call_operand.vmem [shape: f32[1,32], index: 5, kind: input, shape index: {}]
  %s6 = inlined_call_operand.vmem [shape: f32[2,16], index: 6, kind: input, shape index: {}]
  %s7 = inlined_call_operand.vmem [shape: bf16[8,16,256], index: 7, kind: input, shape index: {}]
  %s8 = inlined_call_operand.vmem [shape: f32[8,1,256], index: 8, kind: input, shape index: {}]
  %s9 = inlined_call_operand.vmem [shape: f32[9,4,8], index: 9, kind: input, shape index: {}]
  %s10 = inlined_call_operand.vmem [shape: f32[1,4,1], index: 10, kind: input, shape index: {}]
  %s11 = inlined_call_operand.vmem [shape: f32[2,4,256], index: 11, kind: output, shape index: {0}]
  %s12 = inlined_call_operand.vmem [shape: f32[2,32], index: 12, kind: output, shape index: {1}]
  %13 = xla_tuple %s11, %s12
  %s14 = sld [smem:[#allocation0]]
  $region62: #{vae_forward.1} parent=0
    _
  %s16 = ssub.s32 1, %s14
  %s17 = scalar_select 0, %s16, %s14
  // Predicated region
  $region2: #{vae_forward.1} parent=0 // pred_check
    _
  $region3: #{vae_forward.1} parent=0 // pred_check_branch
    %19 = sbr.rel (0) target = $region5
  $region4: #{vae_forward.1} parent=0 // pred_region
    _
  $region5: #{vae_forward.1} parent=0 // pred_fallthru
    _
  // Predicated region
  $region6: #{vae_forward.1} parent=0 // pred_check
    _
  $region7: #{vae_forward.1} parent=0 // pred_check_branch
    %21 = sbr.rel (0) target = $region9
  $region8: #{vae_forward.1} parent=0 // pred_region
    _
  $region9: #{vae_forward.1} parent=0 // pred_fallthru
    _
  // Predicated region
  $region10: #{vae_forward.1} parent=0 // pred_check
    _
  $region11: #{vae_forward.1} parent=0 // pred_check_branch
    %23 = sbr.rel (0) target = $region13
  $region12: #{vae_forward.1} parent=0 // pred_region
    _
  $region13: #{vae_forward.1} parent=0 // pred_fallthru
    _
  // Predicated region
  $region14: #{vae_forward.1} parent=0 // pred_check
    _
  $region15: #{vae_forward.1} parent=0 // pred_check_branch
    %25 = sbr.rel (0) target = $region17
  $region16: #{vae_forward.1} parent=0 // pred_region
    _
  $region17: #{vae_forward.1} parent=0 // pred_fallthru
    _
  // Predicated region
  $region18: #{vae_forward.1} parent=0 // pred_check
    _
  $region19: #{vae_forward.1} parent=0 // pred_check_branch
    %27 = sbr.rel (0) target = $region21
  $region20: #{vae_forward.1} parent=0 // pred_region
    _
  $region21: #{vae_forward.1} parent=0 // pred_fallthru
    _
  // Predicated region
  $region22: #{vae_forward.1} parent=0 // pred_check
    _
  $region23: #{vae_forward.1} parent=0 // pred_check_branch
    %29 = sbr.rel (0) target = $region25
  $region24: #{vae_forward.1} parent=0 // pred_region
    _
  $region25: #{vae_forward.1} parent=0 // pred_fallthru
    _
  // Predicated region
  $region26: #{vae_forward.1} parent=0 // pred_check
    _
  $region27: #{vae_forward.1} parent=0 // pred_check_branch
    %31 = sbr.rel (0) target = $region29
  $region28: #{vae_forward.1} parent=0 // pred_region
    _
  $region29: #{vae_forward.1} parent=0 // pred_fallthru
    _
  // Predicated region
  $region30: #{vae_forward.1} parent=0 // pred_check
    _
  $region31: #{vae_forward.1} parent=0 // pred_check_branch
    %33 = sbr.rel (0) target = $region33
  $region32: #{vae_forward.1} parent=0 // pred_region
    _
  $region33: #{vae_forward.1} parent=0 // pred_fallthru
    _
  // Predicated region
  $region34: #{vae_forward.1} parent=0 // pred_check
    _
  $region35: #{vae_forward.1} parent=0 // pred_check_branch
    %35 = sbr.rel (0) target = $region37
  $region36: #{vae_forward.1} parent=0 // pred_region
    _
  $region37: #{vae_forward.1} parent=0 // pred_fallthru
    _
  // Predicated region
  $region38: #{vae_forward.1} parent=0 // pred_check
    _
  $region39: #{vae_forward.1} parent=0 // pred_check_branch
    %37 = sbr.rel (0) target = $region41
  $region40: #{vae_forward.1} parent=0 // pred_region
    _
  $region41: #{vae_forward.1} parent=0 // pred_fallthru
    _
  // Predicated region
  $region42: #{vae_forward.1} parent=0 // pred_check
    _
  $region43: #{vae_forward.1} parent=0 // pred_check_branch
    %39 = sbr.rel (0) target = $region45
  $region44: #{vae_forward.1} parent=0 // pred_region
    _
  $region45: #{vae_forward.1} parent=0 // pred_fallthru
    _
  %v41 = vld [vmem:[%s1] sm:$0xff]
  %v42 = vld [vmem:[%s1 + $0x8] sm:$0xff]
  %v43 = vld [vmem:[%s1 + $0x10] sm:$0x1]
  %v44 = vld [vmem:[%s1 + $0x18] sm:$0x1]
  %v45 = vld [vmem:[%s0] sm:$0xff]
  %v46 = vld [vmem:[%s0 + $0x8] sm:$0xff]
  %v47 = vld [vmem:[%s2] sm:$0xff]
  %v48 = vld [vmem:[%s2 + $0x8] sm:$0xff]
  %v49 = vld [vmem:[%s2 + $0x10] sm:$0xff]
  %v50 = vld [vmem:[%s2 + $0x18] sm:$0xff]
  %v51 = vld [vmem:[%s2 + $0x20] sm:$0xff]
  %v52 = vld [vmem:[%s2 + $0x28] sm:$0xff]
  %v53 = vld [vmem:[%s2 + $0x30] sm:$0xff]
  %v54 = vld [vmem:[%s2 + $0x38] sm:$0xff]
  %v55 = vld [vmem:[%s2 + $0x40] sm:$0xff]
  %v56 = vld [vmem:[%s3] sm:$0xff]
  %59 = vst [vmem:[#allocation1] ss:$2 sm:$0xff] %v45
  %v60 = vld.sshfl [vmem:[#allocation1 + $0x8] sm:$0xff pattern:$0x75316420]
  %s61 = scalar_lea.vmem [#allocation1], 16
  %62 = vst [vmem:[%s61] ss:$2 sm:$0xff] %v46
  %v63 = vld.sshfl [vmem:[#allocation1 + $0x18] sm:$0xff pattern:$0x75316420]
  %64 = vrot.lane.b32.xlu0 %v60, 17
  %v65 = vpop.permute.xlu0 %64
  %66 = vrot.lane.b32.xlu0 %v63, 17
  %v67 = vpop.permute.xlu0 %66
  %70 = vst [vmem:[#allocation1] ss:$2 sm:$0xff] %v45
  %v71 = vld.sshfl [vmem:[#allocation1] sm:$0xff pattern:$0x75316420]
  %v72 = vld.sshfl [vmem:[#allocation1 + $0x8] sm:$0xff pattern:$0x75316420]
  %s73 = scalar_lea.vmem [#allocation1], 16
  %74 = vst [vmem:[%s73] ss:$2 sm:$0xff] %v46
  %v75 = vld.sshfl [vmem:[#allocation1 + $0x10] sm:$0xff pattern:$0x75316420]
  %v76 = vld.sshfl [vmem:[#allocation1 + $0x18] sm:$0xff pattern:$0x75316420]
  %77 = vrot.lane.b32.xlu0 %v71, 17
  %v78 = vpop.permute.xlu0 %77
  %79 = vrot.lane.b32.xlu0 %v72, 17
  %v80 = vpop.permute.xlu0 %79
  %81 = vrot.lane.b32.xlu0 %v75, 17
  %v82 = vpop.permute.xlu0 %81
  %83 = vrot.lane.b32.xlu0 %v76, 17
  %v84 = vpop.permute.xlu0 %83
  %vm85 = vcmask 138240
  %v86 = vsel %vm85, %v78, %v80
  %v87 = vsel %vm85, %v82, %v84
  %v90 = vsel %vm85, %v65, %v78
  %v91 = vsel %vm85, %v67, %v82
  %vm92 = vcmask 31744
  %v94 = vsel %vm92, %v47, 0
  %vm96 = vcmask 1043456
  %v98 = vsel %vm96, %v90, 0
  %v100 = vsel %vm96, %v86, 0
  %102 = vmatpush.msra.mxu0 0.0
  %103 = vmatpush.msra.mxu0 0.0
  %104 = vmatpush.msra.mxu0 0.0
  %105 = vmatpush.msra.mxu0 0.0
  %106 = vmatpush.msra.mxu0 0.0
  %107 = vmatpush.msra.mxu0 0.0
  %108 = vmatpush.msra.mxu0 0.0
  %109 = vmatpush.msra.mxu0 0.0
  %110 = vmatpush.msra.mxu0 0.0
  %111 = vmatpush.msra.mxu0 0.0
  %112 = vmatpush.msra.mxu0 0.0
  %113 = vmatpush.msra.mxu0 0.0
  %114 = vmatpush.msra.mxu0 0.0
  %115 = vmatpush.msra.mxu0 0.0
  %116 = vmatpush.msra.mxu0 0.0
  %117 = vmatpush.msra.mxu0 %v98
  %118 = vmatmul.f32.gmra.mxu0 %v94
  %v119 = vpop.f32.mrf.mxu0
  %v120 = vadd.f32 0.0, %v119
  %121 = vdwg.mxu0
  %122 = vmatpush.msra.mxu0 0.0
  %123 = vmatpush.msra.mxu0 0.0
  %124 = vmatpush.msra.mxu0 0.0
  %125 = vmatpush.msra.mxu0 0.0
  %126 = vmatpush.msra.mxu0 0.0
  %127 = vmatpush.msra.mxu0 0.0
  %128 = vmatpush.msra.mxu0 0.0
  %129 = vmatpush.msra.mxu0 0.0
  %130 = vmatpush.msra.mxu0 0.0
  %131 = vmatpush.msra.mxu0 0.0
  %132 = vmatpush.msra.mxu0 0.0
  %133 = vmatpush.msra.mxu0 0.0
  %134 = vmatpush.msra.mxu0 0.0
  %135 = vmatpush.msra.mxu0 0.0
  %136 = vmatpush.msra.mxu0 0.0
  %137 = vmatpush.msra.mxu0 %v100
  %138 = vmatmul.f32.gmra.mxu0 %v94
  %v139 = vpop.f32.mrf.mxu0
  %v140 = vadd.f32 0.0, %v139
  %141 = vdwg.mxu0
  %v143 = vsel %vm96, %v91, 0
  %v145 = vsel %vm96, %v87, 0
  %147 = vmatpush.msra.mxu0 0.0
  %148 = vmatpush.msra.mxu0 0.0
  %149 = vmatpush.msra.mxu0 0.0
  %150 = vmatpush.msra.mxu0 0.0
  %151 = vmatpush.msra.mxu0 0.0
  %152 = vmatpush.msra.mxu0 0.0
  %153 = vmatpush.msra.mxu0 0.0
  %154 = vmatpush.msra.mxu0 0.0
  %155 = vmatpush.msra.mxu0 0.0
  %156 = vmatpush.msra.mxu0 0.0
  %157 = vmatpush.msra.mxu0 0.0
  %158 = vmatpush.msra.mxu0 0.0
  %159 = vmatpush.msra.mxu0 0.0
  %160 = vmatpush.msra.mxu0 0.0
  %161 = vmatpush.msra.mxu0 0.0
  %162 = vmatpush.msra.mxu0 %v143
  %163 = vmatmul.f32.gmra.mxu0 %v94
  %v164 = vpop.f32.mrf.mxu0
  %v165 = vadd.f32 0.0, %v164
  %166 = vdwg.mxu0
  %167 = vmatpush.msra.mxu0 0.0
  %168 = vmatpush.msra.mxu0 0.0
  %169 = vmatpush.msra.mxu0 0.0
  %170 = vmatpush.msra.mxu0 0.0
  %171 = vmatpush.msra.mxu0 0.0
  %172 = vmatpush.msra.mxu0 0.0
  %173 = vmatpush.msra.mxu0 0.0
  %174 = vmatpush.msra.mxu0 0.0
  %175 = vmatpush.msra.mxu0 0.0
  %176 = vmatpush.msra.mxu0 0.0
  %177 = vmatpush.msra.mxu0 0.0
  %178 = vmatpush.msra.mxu0 0.0
  %179 = vmatpush.msra.mxu0 0.0
  %180 = vmatpush.msra.mxu0 0.0
  %181 = vmatpush.msra.mxu0 0.0
  %182 = vmatpush.msra.mxu0 %v145
  %183 = vmatmul.f32.gmra.mxu0 %v94
  %v184 = vpop.f32.mrf.mxu0
  %v185 = vadd.f32 0.0, %v184
  %186 = vdwg.mxu0
  %v187 = vperm.slane %v41, 0
  %v188 = vperm.slane %v42, 0
  %v189 = vmul.f32 %v120, %v187
  %v190 = vmul.f32 %v140, %v188
  %v191 = vmul.f32 %v165, %v187
  %v192 = vmul.f32 %v185, %v188
  %v193 = vadd.f32 %v189, 0.0
  %v194 = vadd.f32 %v190, 0.0
  %v195 = vadd.f32 %v191, 0.0
  %v196 = vadd.f32 %v192, 0.0
  %197 = vst [vmem:[#allocation1] ss:$2 sm:$0xff] %v45
  %v198 = vld.sshfl [vmem:[#allocation1 + $0x8] sm:$0xff pattern:$0x75316420]
  %s199 = scalar_lea.vmem [#allocation1], 16
  %200 = vst [vmem:[%s199] ss:$2 sm:$0xff] %v46
  %v201 = vld.sshfl [vmem:[#allocation1 + $0x18] sm:$0xff pattern:$0x75316420]
  %202 = vrot.lane.b32.xlu0 %v198, 16
  %v203 = vpop.permute.xlu0 %202
  %204 = vrot.lane.b32.xlu0 %v201, 16
  %v205 = vpop.permute.xlu0 %204
  %208 = vst [vmem:[#allocation1] ss:$2 sm:$0xff] %v45
  %v209 = vld.sshfl [vmem:[#allocation1] sm:$0xff pattern:$0x75316420]
  %v210 = vld.sshfl [vmem:[#allocation1 + $0x8] sm:$0xff pattern:$0x75316420]
  %s211 = scalar_lea.vmem [#allocation1], 16
  %212 = vst [vmem:[%s211] ss:$2 sm:$0xff] %v46
  %v213 = vld.sshfl [vmem:[#allocation1 + $0x10] sm:$0xff pattern:$0x75316420]
  %v214 = vld.sshfl [vmem:[#allocation1 + $0x18] sm:$0xff pattern:$0x75316420]
  %215 = vrot.lane.b32.xlu0 %v209, 16
  %v216 = vpop.permute.xlu0 %215
  %217 = vrot.lane.b32.xlu0 %v210, 16
  %v218 = vpop.permute.xlu0 %217
  %219 = vrot.lane.b32.xlu0 %v213, 16
  %v220 = vpop.permute.xlu0 %219
  %221 = vrot.lane.b32.xlu0 %v214, 16
  %v222 = vpop.permute.xlu0 %221
  %vm223 = vcmask 130048
  %v224 = vsel %vm223, %v216, %v218
  %v225 = vsel %vm223, %v220, %v222
  %v228 = vsel %vm223, %v203, %v216
  %v229 = vsel %vm223, %v205, %v220
  %v231 = vsel %vm92, %v48, 0
  %v234 = vsel %vm96, %v228, 0
  %v236 = vsel %vm96, %v224, 0
  %238 = vmatpush.msra.mxu0 0.0
  %239 = vmatpush.msra.mxu0 0.0
  %240 = vmatpush.msra.mxu0 0.0
  %241 = vmatpush.msra.mxu0 0.0
  %242 = vmatpush.msra.mxu0 0.0
  %243 = vmatpush.msra.mxu0 0.0
  %244 = vmatpush.msra.mxu0 0.0
  %245 = vmatpush.msra.mxu0 0.0
  %246 = vmatpush.msra.mxu0 0.0
  %247 = vmatpush.msra.mxu0 0.0
  %248 = vmatpush.msra.mxu0 0.0
  %249 = vmatpush.msra.mxu0 0.0
  %250 = vmatpush.msra.mxu0 0.0
  %251 = vmatpush.msra.mxu0 0.0
  %252 = vmatpush.msra.mxu0 0.0
  %253 = vmatpush.msra.mxu0 %v234
  %254 = vmatmul.f32.gmra.mxu0 %v231
  %v255 = vpop.f32.mrf.mxu0
  %v256 = vadd.f32 0.0, %v255
  %257 = vdwg.mxu0
  %258 = vmatpush.msra.mxu0 0.0
  %259 = vmatpush.msra.mxu0 0.0
  %260 = vmatpush.msra.mxu0 0.0
  %261 = vmatpush.msra.mxu0 0.0
  %262 = vmatpush.msra.mxu0 0.0
  %263 = vmatpush.msra.mxu0 0.0
  %264 = vmatpush.msra.mxu0 0.0
  %265 = vmatpush.msra.mxu0 0.0
  %266 = vmatpush.msra.mxu0 0.0
  %267 = vmatpush.msra.mxu0 0.0
  %268 = vmatpush.msra.mxu0 0.0
  %269 = vmatpush.msra.mxu0 0.0
  %270 = vmatpush.msra.mxu0 0.0
  %271 = vmatpush.msra.mxu0 0.0
  %272 = vmatpush.msra.mxu0 0.0
  %273 = vmatpush.msra.mxu0 %v236
  %274 = vmatmul.f32.gmra.mxu0 %v231
  %v275 = vpop.f32.mrf.mxu0
  %v276 = vadd.f32 0.0, %v275
  %277 = vdwg.mxu0
  %v279 = vsel %vm96, %v229, 0
  %v281 = vsel %vm96, %v225, 0
  %283 = vmatpush.msra.mxu0 0.0
  %284 = vmatpush.msra.mxu0 0.0
  %285 = vmatpush.msra.mxu0 0.0
  %286 = vmatpush.msra.mxu0 0.0
  %287 = vmatpush.msra.mxu0 0.0
  %288 = vmatpush.msra.mxu0 0.0
  %289 = vmatpush.msra.mxu0 0.0
  %290 = vmatpush.msra.mxu0 0.0
  %291 = vmatpush.msra.mxu0 0.0
  %292 = vmatpush.msra.mxu0 0.0
  %293 = vmatpush.msra.mxu0 0.0
  %294 = vmatpush.msra.mxu0 0.0
  %295 = vmatpush.msra.mxu0 0.0
  %296 = vmatpush.msra.mxu0 0.0
  %297 = vmatpush.msra.mxu0 0.0
  %298 = vmatpush.msra.mxu0 %v279
  %299 = vmatmul.f32.gmra.mxu0 %v231
  %v300 = vpop.f32.mrf.mxu0
  %v301 = vadd.f32 0.0, %v300
  %302 = vdwg.mxu0
  %303 = vmatpush.msra.mxu0 0.0
  %304 = vmatpush.msra.mxu0 0.0
  %305 = vmatpush.msra.mxu0 0.0
  %306 = vmatpush.msra.mxu0 0.0
  %307 = vmatpush.msra.mxu0 0.0
  %308 = vmatpush.msra.mxu0 0.0
  %309 = vmatpush.msra.mxu0 0.0
  %310 = vmatpush.msra.mxu0 0.0
  %311 = vmatpush.msra.mxu0 0.0
  %312 = vmatpush.msra.mxu0 0.0
  %313 = vmatpush.msra.mxu0 0.0
  %314 = vmatpush.msra.mxu0 0.0
  %315 = vmatpush.msra.mxu0 0.0
  %316 = vmatpush.msra.mxu0 0.0
  %317 = vmatpush.msra.mxu0 0.0
  %318 = vmatpush.msra.mxu0 %v281
  %319 = vmatmul.f32.gmra.mxu0 %v231
  %v320 = vpop.f32.mrf.mxu0
  %v321 = vadd.f32 0.0, %v320
  %322 = vdwg.mxu0
  %v323 = vperm.slane %v41, 1
  %v324 = vperm.slane %v42, 1
  %v325 = vmul.f32 %v256, %v323
  %v326 = vmul.f32 %v276, %v324
  %v327 = vmul.f32 %v301, %v323
  %v328 = vmul.f32 %v321, %v324
  %v329 = vadd.f32 %v193, %v325
  %v330 = vadd.f32 %v194, %v326
  %v331 = vadd.f32 %v195, %v327
  %v332 = vadd.f32 %v196, %v328
  %333 = vst [vmem:[#allocation1] ss:$2 sm:$0xff] %v45
  %v334 = vld.sshfl [vmem:[#allocation1 + $0x8] sm:$0xff pattern:$0x75316420]
  %s335 = scalar_lea.vmem [#allocation1], 16
  %336 = vst [vmem:[%s335] ss:$2 sm:$0xff] %v46
  %v337 = vld.sshfl [vmem:[#allocation1 + $0x18] sm:$0xff pattern:$0x75316420]
  %338 = vrot.lane.b32.xlu0 %v334, 15
  %v339 = vpop.permute.xlu0 %338
  %340 = vrot.lane.b32.xlu0 %v337, 15
  %v341 = vpop.permute.xlu0 %340
  %344 = vst [vmem:[#allocation1] ss:$2 sm:$0xff] %v45
  %v345 = vld.sshfl [vmem:[#allocation1] sm:$0xff pattern:$0x75316420]
  %v346 = vld.sshfl [vmem:[#allocation1 + $0x8] sm:$0xff pattern:$0x75316420]
  %s347 = scalar_lea.vmem [#allocation1], 16
  %348 = vst [vmem:[%s347] ss:$2 sm:$0xff] %v46
  %v349 = vld.sshfl [vmem:[#allocation1 + $0x10] sm:$0xff pattern:$0x75316420]
  %v350 = vld.sshfl [vmem:[#allocation1 + $0x18] sm:$0xff pattern:$0x75316420]
  %351 = vrot.lane.b32.xlu0 %v345, 15
  %v352 = vpop.permute.xlu0 %351
  %353 = vrot.lane.b32.xlu0 %v346, 15
  %v354 = vpop.permute.xlu0 %353
  %355 = vrot.lane.b32.xlu0 %v349, 15
  %v356 = vpop.permute.xlu0 %355
  %357 = vrot.lane.b32.xlu0 %v350, 15
  %v358 = vpop.permute.xlu0 %357
  %vm359 = vcmask 121856
  %v360 = vsel %vm359, %v352, %v354
  %v361 = vsel %vm359, %v356, %v358
  %v364 = vsel %vm359, %v339, %v352
  %v365 = vsel %vm359, %v341, %v356
  %v367 = vsel %vm92, %v49, 0
  %v370 = vsel %vm96, %v364, 0
  %v372 = vsel %vm96, %v360, 0
  %374 = vmatpush.msra.mxu0 0.0
  %375 = vmatpush.msra.mxu0 0.0
  %376 = vmatpush.msra.mxu0 0.0
  %377 = vmatpush.msra.mxu0 0.0
  %378 = vmatpush.msra.mxu0 0.0
  %379 = vmatpush.msra.mxu0 0.0
  %380 = vmatpush.msra.mxu0 0.0
  %381 = vmatpush.msra.mxu0 0.0
  %382 = vmatpush.msra.mxu0 0.0
  %383 = vmatpush.msra.mxu0 0.0
  %384 = vmatpush.msra.mxu0 0.0
  %385 = vmatpush.msra.mxu0 0.0
  %386 = vmatpush.msra.mxu0 0.0
  %387 = vmatpush.msra.mxu0 0.0
  %388 = vmatpush.msra.mxu0 0.0
  %389 = vmatpush.msra.mxu0 %v370
  %390 = vmatmul.f32.gmra.mxu0 %v367
  %v391 = vpop.f32.mrf.mxu0
  %v392 = vadd.f32 0.0, %v391
  %393 = vdwg.mxu0
  %394 = vmatpush.msra.mxu0 0.0
  %395 = vmatpush.msra.mxu0 0.0
  %396 = vmatpush.msra.mxu0 0.0
  %397 = vmatpush.msra.mxu0 0.0
  %398 = vmatpush.msra.mxu0 0.0
  %399 = vmatpush.msra.mxu0 0.0
  %400 = vmatpush.msra.mxu0 0.0
  %401 = vmatpush.msra.mxu0 0.0
  %402 = vmatpush.msra.mxu0 0.0
  %403 = vmatpush.msra.mxu0 0.0
  %404 = vmatpush.msra.mxu0 0.0
  %405 = vmatpush.msra.mxu0 0.0
  %406 = vmatpush.msra.mxu0 0.0
  %407 = vmatpush.msra.mxu0 0.0
  %408 = vmatpush.msra.mxu0 0.0
  %409 = vmatpush.msra.mxu0 %v372
  %410 = vmatmul.f32.gmra.mxu0 %v367
  %v411 = vpop.f32.mrf.mxu0
  %v412 = vadd.f32 0.0, %v411
  %413 = vdwg.mxu0
  %v415 = vsel %vm96, %v365, 0
  %v417 = vsel %vm96, %v361, 0
  %419 = vmatpush.msra.mxu0 0.0
  %420 = vmatpush.msra.mxu0 0.0
  %421 = vmatpush.msra.mxu0 0.0
  %422 = vmatpush.msra.mxu0 0.0
  %423 = vmatpush.msra.mxu0 0.0
  %424 = vmatpush.msra.mxu0 0.0
  %425 = vmatpush.msra.mxu0 0.0
  %426 = vmatpush.msra.mxu0 0.0
  %427 = vmatpush.msra.mxu0 0.0
  %428 = vmatpush.msra.mxu0 0.0
  %429 = vmatpush.msra.mxu0 0.0
  %430 = vmatpush.msra.mxu0 0.0
  %431 = vmatpush.msra.mxu0 0.0
  %432 = vmatpush.msra.mxu0 0.0
  %433 = vmatpush.msra.mxu0 0.0
  %434 = vmatpush.msra.mxu0 %v415
  %435 = vmatmul.f32.gmra.mxu0 %v367
  %v436 = vpop.f32.mrf.mxu0
  %v437 = vadd.f32 0.0, %v436
  %438 = vdwg.mxu0
  %439 = vmatpush.msra.mxu0 0.0
  %440 = vmatpush.msra.mxu0 0.0
  %441 = vmatpush.msra.mxu0 0.0
  %442 = vmatpush.msra.mxu0 0.0
  %443 = vmatpush.msra.mxu0 0.0
  %444 = vmatpush.msra.mxu0 0.0
  %445 = vmatpush.msra.mxu0 0.0
  %446 = vmatpush.msra.mxu0 0.0
  %447 = vmatpush.msra.mxu0 0.0
  %448 = vmatpush.msra.mxu0 0.0
  %449 = vmatpush.msra.mxu0 0.0
  %450 = vmatpush.msra.mxu0 0.0
  %451 = vmatpush.msra.mxu0 0.0
  %452 = vmatpush.msra.mxu0 0.0
  %453 = vmatpush.msra.mxu0 0.0
  %454 = vmatpush.msra.mxu0 %v417
  %455 = vmatmul.f32.gmra.mxu0 %v367
  %v456 = vpop.f32.mrf.mxu0
  %v457 = vadd.f32 0.0, %v456
  %458 = vdwg.mxu0
  %v459 = vperm.slane %v41, 2
  %v460 = vperm.slane %v42, 2
  %v461 = vmul.f32 %v392, %v459
  %v462 = vmul.f32 %v412, %v460
  %v463 = vmul.f32 %v437, %v459
  %v464 = vmul.f32 %v457, %v460
  %v465 = vadd.f32 %v329, %v461
  %v466 = vadd.f32 %v330, %v462
  %v467 = vadd.f32 %v331, %v463
  %v468 = vadd.f32 %v332, %v464
  %469 = vst [vmem:[#allocation1] ss:$2 sm:$0xff] %v45
  %v470 = vld.sshfl [vmem:[#allocation1 + $0x8] sm:$0xff pattern:$0x75316420]
  %s471 = scalar_lea.vmem [#allocation1], 16
  %472 = vst [vmem:[%s471] ss:$2 sm:$0xff] %v46
  %v473 = vld.sshfl [vmem:[#allocation1 + $0x18] sm:$0xff pattern:$0x75316420]
  %474 = vrot.lane.b32.xlu0 %v470, 1
  %v475 = vpop.permute.xlu0 %474
  %476 = vrot.lane.b32.xlu0 %v473, 1
  %v477 = vpop.permute.xlu0 %476
  %480 = vst [vmem:[#allocation1] ss:$2 sm:$0xff] %v45
  %v481 = vld.sshfl [vmem:[#allocation1] sm:$0xff pattern:$0x75316420]
  %v482 = vld.sshfl [vmem:[#allocation1 + $0x8] sm:$0xff pattern:$0x75316420]
  %s483 = scalar_lea.vmem [#allocation1], 16
  %484 = vst [vmem:[%s483] ss:$2 sm:$0xff] %v46
  %v485 = vld.sshfl [vmem:[#allocation1 + $0x10] sm:$0xff pattern:$0x75316420]
  %v486 = vld.sshfl [vmem:[#allocation1 + $0x18] sm:$0xff pattern:$0x75316420]
  %487 = vrot.lane.b32.xlu0 %v481, 1
  %v488 = vpop.permute.xlu0 %487
  %489 = vrot.lane.b32.xlu0 %v482, 1
  %v490 = vpop.permute.xlu0 %489
  %491 = vrot.lane.b32.xlu0 %v485, 1
  %v492 = vpop.permute.xlu0 %491
  %493 = vrot.lane.b32.xlu0 %v486, 1
  %v494 = vpop.permute.xlu0 %493
  %vm495 = vcmask 7168
  %v496 = vsel %vm495, %v488, %v490
  %v497 = vsel %vm495, %v492, %v494
  %v500 = vsel %vm495, %v475, %v488
  %v501 = vsel %vm495, %v477, %v492
  %v503 = vsel %vm92, %v50, 0
  %v506 = vsel %vm96, %v500, 0
  %v508 = vsel %vm96, %v496, 0
  %510 = vmatpush.msra.mxu0 0.0
  %511 = vmatpush.msra.mxu0 0.0
  %512 = vmatpush.msra.mxu0 0.0
  %513 = vmatpush.msra.mxu0 0.0
  %514 = vmatpush.msra.mxu0 0.0
  %515 = vmatpush.msra.mxu0 0.0
  %516 = vmatpush.msra.mxu0 0.0
  %517 = vmatpush.msra.mxu0 0.0
  %518 = vmatpush.msra.mxu0 0.0
  %519 = vmatpush.msra.mxu0 0.0
  %520 = vmatpush.msra.mxu0 0.0
  %521 = vmatpush.msra.mxu0 0.0
  %522 = vmatpush.msra.mxu0 0.0
  %523 = vmatpush.msra.mxu0 0.0
  %524 = vmatpush.msra.mxu0 0.0
  %525 = vmatpush.msra.mxu0 %v506
  %526 = vmatmul.f32.gmra.mxu0 %v503
  %v527 = vpop.f32.mrf.mxu0
  %v528 = vadd.f32 0.0, %v527
  %529 = vdwg.mxu0
  %530 = vmatpush.msra.mxu0 0.0
  %531 = vmatpush.msra.mxu0 0.0
  %532 = vmatpush.msra.mxu0 0.0
  %533 = vmatpush.msra.mxu0 0.0
  %534 = vmatpush.msra.mxu0 0.0
  %535 = vmatpush.msra.mxu0 0.0
  %536 = vmatpush.msra.mxu0 0.0
  %537 = vmatpush.msra.mxu0 0.0
  %538 = vmatpush.msra.mxu0 0.0
  %539 = vmatpush.msra.mxu0 0.0
  %540 = vmatpush.msra.mxu0 0.0
  %541 = vmatpush.msra.mxu0 0.0
  %542 = vmatpush.msra.mxu0 0.0
  %543 = vmatpush.msra.mxu0 0.0
  %544 = vmatpush.msra.mxu0 0.0
  %545 = vmatpush.msra.mxu0 %v508
  %546 = vmatmul.f32.gmra.mxu0 %v503
  %v547 = vpop.f32.mrf.mxu0
  %v548 = vadd.f32 0.0, %v547
  %549 = vdwg.mxu0
  %v551 = vsel %vm96, %v501, 0
  %v553 = vsel %vm96, %v497, 0
  %555 = vmatpush.msra.mxu0 0.0
  %556 = vmatpush.msra.mxu0 0.0
  %557 = vmatpush.msra.mxu0 0.0
  %558 = vmatpush.msra.mxu0 0.0
  %559 = vmatpush.msra.mxu0 0.0
  %560 = vmatpush.msra.mxu0 0.0
  %561 = vmatpush.msra.mxu0 0.0
  %562 = vmatpush.msra.mxu0 0.0
  %563 = vmatpush.msra.mxu0 0.0
  %564 = vmatpush.msra.mxu0 0.0
  %565 = vmatpush.msra.mxu0 0.0
  %566 = vmatpush.msra.mxu0 0.0
  %567 = vmatpush.msra.mxu0 0.0
  %568 = vmatpush.msra.mxu0 0.0
  %569 = vmatpush.msra.mxu0 0.0
  %570 = vmatpush.msra.mxu0 %v551
  %571 = vmatmul.f32.gmra.mxu0 %v503
  %v572 = vpop.f32.mrf.mxu0
  %v573 = vadd.f32 0.0, %v572
  %574 = vdwg.mxu0
  %575 = vmatpush.msra.mxu0 0.0
  %576 = vmatpush.msra.mxu0 0.0
  %577 = vmatpush.msra.mxu0 0.0
  %578 = vmatpush.msra.mxu0 0.0
  %579 = vmatpush.msra.mxu0 0.0
  %580 = vmatpush.msra.mxu0 0.0
  %581 = vmatpush.msra.mxu0 0.0
  %582 = vmatpush.msra.mxu0 0.0
  %583 = vmatpush.msra.mxu0 0.0
  %584 = vmatpush.msra.mxu0 0.0
  %585 = vmatpush.msra.mxu0 0.0
  %586 = vmatpush.msra.mxu0 0.0
  %587 = vmatpush.msra.mxu0 0.0
  %588 = vmatpush.msra.mxu0 0.0
  %589 = vmatpush.msra.mxu0 0.0
  %590 = vmatpush.msra.mxu0 %v553
  %591 = vmatmul.f32.gmra.mxu0 %v503
  %v592 = vpop.f32.mrf.mxu0
  %v593 = vadd.f32 0.0, %v592
  %594 = vdwg.mxu0
  %v595 = vperm.slane %v41, 3
  %v596 = vperm.slane %v42, 3
  %v597 = vmul.f32 %v528, %v595
  %v598 = vmul.f32 %v548, %v596
  %v599 = vmul.f32 %v573, %v595
  %v600 = vmul.f32 %v593, %v596
  %v601 = vadd.f32 %v465, %v597
  %v602 = vadd.f32 %v466, %v598
  %v603 = vadd.f32 %v467, %v599
  %v604 = vadd.f32 %v468, %v600
  %605 = vst [vmem:[#allocation1] ss:$2 sm:$0xff] %v45
  %v606 = vld.sshfl [vmem:[#allocation1] sm:$0xff pattern:$0x75316420]
  %v607 = vld.sshfl [vmem:[#allocation1 + $0x8] sm:$0xff pattern:$0x75316420]
  %v609 = vsel %vm92, %v51, 0
  %v611 = vsel %vm96, %v606, 0
  %v613 = vsel %vm96, %v607, 0
  %615 = vmatpush.msra.mxu0 0.0
  %616 = vmatpush.msra.mxu0 0.0
  %617 = vmatpush.msra.mxu0 0.0
  %618 = vmatpush.msra.mxu0 0.0
  %619 = vmatpush.msra.mxu0 0.0
  %620 = vmatpush.msra.mxu0 0.0
  %621 = vmatpush.msra.mxu0 0.0
  %622 = vmatpush.msra.mxu0 0.0
  %623 = vmatpush.msra.mxu0 0.0
  %624 = vmatpush.msra.mxu0 0.0
  %625 = vmatpush.msra.mxu0 0.0
  %626 = vmatpush.msra.mxu0 0.0
  %627 = vmatpush.msra.mxu0 0.0
  %628 = vmatpush.msra.mxu0 0.0
  %629 = vmatpush.msra.mxu0 0.0
  %630 = vmatpush.msra.mxu0 %v611
  %631 = vmatmul.f32.gmra.mxu0 %v609
  %v632 = vpop.f32.mrf.mxu0
  %v633 = vadd.f32 0.0, %v632
  %634 = vdwg.mxu0
  %635 = vmatpush.msra.mxu0 0.0
  %636 = vmatpush.msra.mxu0 0.0
  %637 = vmatpush.msra.mxu0 0.0
  %638 = vmatpush.msra.mxu0 0.0
  %639 = vmatpush.msra.mxu0 0.0
  %640 = vmatpush.msra.mxu0 0.0
  %641 = vmatpush.msra.mxu0 0.0
  %642 = vmatpush.msra.mxu0 0.0
  %643 = vmatpush.msra.mxu0 0.0
  %644 = vmatpush.msra.mxu0 0.0
  %645 = vmatpush.msra.mxu0 0.0
  %646 = vmatpush.msra.mxu0 0.0
  %647 = vmatpush.msra.mxu0 0.0
  %648 = vmatpush.msra.mxu0 0.0
  %649 = vmatpush.msra.mxu0 0.0
  %650 = vmatpush.msra.mxu0 %v613
  %651 = vmatmul.f32.gmra.mxu0 %v609
  %v652 = vpop.f32.mrf.mxu0
  %v653 = vadd.f32 0.0, %v652
  %654 = vdwg.mxu0
  %655 = vst [vmem:[#allocation1] ss:$2 sm:$0xff] %v46
  %v656 = vld.sshfl [vmem:[#allocation1] sm:$0xff pattern:$0x75316420]
  %v657 = vld.sshfl [vmem:[#allocation1 + $0x8] sm:$0xff pattern:$0x75316420]
  %v658 = vsel %vm96, %v656, 0
  %v660 = vsel %vm96, %v657, 0
  %662 = vmatpush.msra.mxu0 0.0
  %663 = vmatpush.msra.mxu0 0.0
  %664 = vmatpush.msra.mxu0 0.0
  %665 = vmatpush.msra.mxu0 0.0
  %666 = vmatpush.msra.mxu0 0.0
  %667 = vmatpush.msra.mxu0 0.0
  %668 = vmatpush.msra.mxu0 0.0
  %669 = vmatpush.msra.mxu0 0.0
  %670 = vmatpush.msra.mxu0 0.0
  %671 = vmatpush.msra.mxu0 0.0
  %672 = vmatpush.msra.mxu0 0.0
  %673 = vmatpush.msra.mxu0 0.0
  %674 = vmatpush.msra.mxu0 0.0
  %675 = vmatpush.msra.mxu0 0.0
  %676 = vmatpush.msra.mxu0 0.0
  %677 = vmatpush.msra.mxu0 %v658
  %678 = vmatmul.f32.gmra.mxu0 %v609
  %v679 = vpop.f32.mrf.mxu0
  %v680 = vadd.f32 0.0, %v679
  %681 = vdwg.mxu0
  %682 = vmatpush.msra.mxu0 0.0
  %683 = vmatpush.msra.mxu0 0.0
  %684 = vmatpush.msra.mxu0 0.0
  %685 = vmatpush.msra.mxu0 0.0
  %686 = vmatpush.msra.mxu0 0.0
  %687 = vmatpush.msra.mxu0 0.0
  %688 = vmatpush.msra.mxu0 0.0
  %689 = vmatpush.msra.mxu0 0.0
  %690 = vmatpush.msra.mxu0 0.0
  %691 = vmatpush.msra.mxu0 0.0
  %692 = vmatpush.msra.mxu0 0.0
  %693 = vmatpush.msra.mxu0 0.0
  %694 = vmatpush.msra.mxu0 0.0
  %695 = vmatpush.msra.mxu0 0.0
  %696 = vmatpush.msra.mxu0 0.0
  %697 = vmatpush.msra.mxu0 %v660
  %698 = vmatmul.f32.gmra.mxu0 %v609
  %v699 = vpop.f32.mrf.mxu0
  %v700 = vadd.f32 0.0, %v699
  %701 = vdwg.mxu0
  %v702 = vperm.slane %v41, 4
  %v703 = vperm.slane %v42, 4
  %v704 = vmul.f32 %v633, %v702
  %v705 = vmul.f32 %v653, %v703
  %v706 = vmul.f32 %v680, %v702
  %v707 = vmul.f32 %v700, %v703
  %v708 = vadd.f32 %v601, %v704
  %v709 = vadd.f32 %v602, %v705
  %v710 = vadd.f32 %v603, %v706
  %v711 = vadd.f32 %v604, %v707
  %712 = vst [vmem:[#allocation1] ss:$2 sm:$0xff] %v45
  %v713 = vld.sshfl [vmem:[#allocation1] sm:$0xff pattern:$0x75316420]
  %v714 = vld.sshfl [vmem:[#allocation1 + $0x8] sm:$0xff pattern:$0x75316420]
  %s715 = scalar_lea.vmem [#allocation1], 16
  %716 = vst [vmem:[%s715] ss:$2 sm:$0xff] %v46
  %v717 = vld.sshfl [vmem:[#allocation1 + $0x10] sm:$0xff pattern:$0x75316420]
  %v718 = vld.sshfl [vmem:[#allocation1 + $0x18] sm:$0xff pattern:$0x75316420]
  %719 = vrot.lane.b32.xlu0 %v713, 127
  %v720 = vpop.permute.xlu0 %719
  %721 = vrot.lane.b32.xlu0 %v714, 127
  %v722 = vpop.permute.xlu0 %721
  %723 = vrot.lane.b32.xlu0 %v717, 127
  %v724 = vpop.permute.xlu0 %723
  %725 = vrot.lane.b32.xlu0 %v718, 127
  %v726 = vpop.permute.xlu0 %725
  %vm727 = vcmask 1039360
  %v728 = vsel %vm727, %v720, %v722
  %v729 = vsel %vm727, %v724, %v726
  %732 = vst [vmem:[#allocation1] ss:$2 sm:$0xff] %v45
  %v733 = vld.sshfl [vmem:[#allocation1] sm:$0xff pattern:$0x75316420]
  %s734 = scalar_lea.vmem [#allocation1], 16
  %735 = vst [vmem:[%s734] ss:$2 sm:$0xff] %v46
  %v736 = vld.sshfl [vmem:[#allocation1 + $0x10] sm:$0xff pattern:$0x75316420]
  %737 = vrot.lane.b32.xlu0 %v733, 127
  %v738 = vpop.permute.xlu0 %737
  %739 = vrot.lane.b32.xlu0 %v736, 127
  %v740 = vpop.permute.xlu0 %739
  %v743 = vsel %vm727, %v722, %v738
  %v744 = vsel %vm727, %v726, %v740
  %v746 = vsel %vm92, %v52, 0
  %v748 = vsel %vm96, %v728, 0
  %v751 = vsel %vm96, %v743, 0
  %753 = vmatpush.msra.mxu0 0.0
  %754 = vmatpush.msra.mxu0 0.0
  %755 = vmatpush.msra.mxu0 0.0
  %756 = vmatpush.msra.mxu0 0.0
  %757 = vmatpush.msra.mxu0 0.0
  %758 = vmatpush.msra.mxu0 0.0
  %759 = vmatpush.msra.mxu0 0.0
  %760 = vmatpush.msra.mxu0 0.0
  %761 = vmatpush.msra.mxu0 0.0
  %762 = vmatpush.msra.mxu0 0.0
  %763 = vmatpush.msra.mxu0 0.0
  %764 = vmatpush.msra.mxu0 0.0
  %765 = vmatpush.msra.mxu0 0.0
  %766 = vmatpush.msra.mxu0 0.0
  %767 = vmatpush.msra.mxu0 0.0
  %768 = vmatpush.msra.mxu0 %v748
  %769 = vmatmul.f32.gmra.mxu0 %v746
  %v770 = vpop.f32.mrf.mxu0
  %v771 = vadd.f32 0.0, %v770
  %772 = vdwg.mxu0
  %773 = vmatpush.msra.mxu0 0.0
  %774 = vmatpush.msra.mxu0 0.0
  %775 = vmatpush.msra.mxu0 0.0
  %776 = vmatpush.msra.mxu0 0.0
  %777 = vmatpush.msra.mxu0 0.0
  %778 = vmatpush.msra.mxu0 0.0
  %779 = vmatpush.msra.mxu0 0.0
  %780 = vmatpush.msra.mxu0 0.0
  %781 = vmatpush.msra.mxu0 0.0
  %782 = vmatpush.msra.mxu0 0.0
  %783 = vmatpush.msra.mxu0 0.0
  %784 = vmatpush.msra.mxu0 0.0
  %785 = vmatpush.msra.mxu0 0.0
  %786 = vmatpush.msra.mxu0 0.0
  %787 = vmatpush.msra.mxu0 0.0
  %788 = vmatpush.msra.mxu0 %v751
  %789 = vmatmul.f32.gmra.mxu0 %v746
  %v790 = vpop.f32.mrf.mxu0
  %v791 = vadd.f32 0.0, %v790
  %792 = vdwg.mxu0
  %v793 = vsel %vm96, %v729, 0
  %v796 = vsel %vm96, %v744, 0
  %798 = vmatpush.msra.mxu0 0.0
  %799 = vmatpush.msra.mxu0 0.0
  %800 = vmatpush.msra.mxu0 0.0
  %801 = vmatpush.msra.mxu0 0.0
  %802 = vmatpush.msra.mxu0 0.0
  %803 = vmatpush.msra.mxu0 0.0
  %804 = vmatpush.msra.mxu0 0.0
  %805 = vmatpush.msra.mxu0 0.0
  %806 = vmatpush.msra.mxu0 0.0
  %807 = vmatpush.msra.mxu0 0.0
  %808 = vmatpush.msra.mxu0 0.0
  %809 = vmatpush.msra.mxu0 0.0
  %810 = vmatpush.msra.mxu0 0.0
  %811 = vmatpush.msra.mxu0 0.0
  %812 = vmatpush.msra.mxu0 0.0
  %813 = vmatpush.msra.mxu0 %v793
  %814 = vmatmul.f32.gmra.mxu0 %v746
  %v815 = vpop.f32.mrf.mxu0
  %v816 = vadd.f32 0.0, %v815
  %817 = vdwg.mxu0
  %818 = vmatpush.msra.mxu0 0.0
  %819 = vmatpush.msra.mxu0 0.0
  %820 = vmatpush.msra.mxu0 0.0
  %821 = vmatpush.msra.mxu0 0.0
  %822 = vmatpush.msra.mxu0 0.0
  %823 = vmatpush.msra.mxu0 0.0
  %824 = vmatpush.msra.mxu0 0.0
  %825 = vmatpush.msra.mxu0 0.0
  %826 = vmatpush.msra.mxu0 0.0
  %827 = vmatpush.msra.mxu0 0.0
  %828 = vmatpush.msra.mxu0 0.0
  %829 = vmatpush.msra.mxu0 0.0
  %830 = vmatpush.msra.mxu0 0.0
  %831 = vmatpush.msra.mxu0 0.0
  %832 = vmatpush.msra.mxu0 0.0
  %833 = vmatpush.msra.mxu0 %v796
  %834 = vmatmul.f32.gmra.mxu0 %v746
  %v835 = vpop.f32.mrf.mxu0
  %v836 = vadd.f32 0.0, %v835
  %837 = vdwg.mxu0
  %v838 = vperm.slane %v41, 5
  %v839 = vperm.slane %v42, 5
  %v840 = vmul.f32 %v771, %v838
  %v841 = vmul.f32 %v791, %v839
  %v842 = vmul.f32 %v816, %v838
  %v843 = vmul.f32 %v836, %v839
  %v844 = vadd.f32 %v708, %v840
  %v845 = vadd.f32 %v709, %v841
  %v846 = vadd.f32 %v710, %v842
  %v847 = vadd.f32 %v711, %v843
  %848 = vst [vmem:[#allocation1] ss:$2 sm:$0xff] %v45
  %v849 = vld.sshfl [vmem:[#allocation1] sm:$0xff pattern:$0x75316420]
  %v850 = vld.sshfl [vmem:[#allocation1 + $0x8] sm:$0xff pattern:$0x75316420]
  %s851 = scalar_lea.vmem [#allocation1], 16
  %852 = vst [vmem:[%s851] ss:$2 sm:$0xff] %v46
  %v853 = vld.sshfl [vmem:[#allocation1 + $0x10] sm:$0xff pattern:$0x75316420]
  %v854 = vld.sshfl [vmem:[#allocation1 + $0x18] sm:$0xff pattern:$0x75316420]
  %855 = vrot.lane.b32.xlu0 %v849, 113
  %v856 = vpop.permute.xlu0 %855
  %857 = vrot.lane.b32.xlu0 %v850, 113
  %v858 = vpop.permute.xlu0 %857
  %859 = vrot.lane.b32.xlu0 %v853, 113
  %v860 = vpop.permute.xlu0 %859
  %861 = vrot.lane.b32.xlu0 %v854, 113
  %v862 = vpop.permute.xlu0 %861
  %vm863 = vcmask 924672
  %v864 = vsel %vm863, %v856, %v858
  %v865 = vsel %vm863, %v860, %v862
  %868 = vst [vmem:[#allocation1] ss:$2 sm:$0xff] %v45
  %v869 = vld.sshfl [vmem:[#allocation1] sm:$0xff pattern:$0x75316420]
  %s870 = scalar_lea.vmem [#allocation1], 16
  %871 = vst [vmem:[%s870] ss:$2 sm:$0xff] %v46
  %v872 = vld.sshfl [vmem:[#allocation1 + $0x10] sm:$0xff pattern:$0x75316420]
  %873 = vrot.lane.b32.xlu0 %v869, 113
  %v874 = vpop.permute.xlu0 %873
  %875 = vrot.lane.b32.xlu0 %v872, 113
  %v876 = vpop.permute.xlu0 %875
  %v879 = vsel %vm863, %v858, %v874
  %v880 = vsel %vm863, %v862, %v876
  %v882 = vsel %vm92, %v53, 0
  %v884 = vsel %vm96, %v864, 0
  %v887 = vsel %vm96, %v879, 0
  %889 = vmatpush.msra.mxu0 0.0
  %890 = vmatpush.msra.mxu0 0.0
  %891 = vmatpush.msra.mxu0 0.0
  %892 = vmatpush.msra.mxu0 0.0
  %893 = vmatpush.msra.mxu0 0.0
  %894 = vmatpush.msra.mxu0 0.0
  %895 = vmatpush.msra.mxu0 0.0
  %896 = vmatpush.msra.mxu0 0.0
  %897 = vmatpush.msra.mxu0 0.0
  %898 = vmatpush.msra.mxu0 0.0
  %899 = vmatpush.msra.mxu0 0.0
  %900 = vmatpush.msra.mxu0 0.0
  %901 = vmatpush.msra.mxu0 0.0
  %902 = vmatpush.msra.mxu0 0.0
  %903 = vmatpush.msra.mxu0 0.0
  %904 = vmatpush.msra.mxu0 %v884
  %905 = vmatmul.f32.gmra.mxu0 %v882
  %v906 = vpop.f32.mrf.mxu0
  %v907 = vadd.f32 0.0, %v906
  %908 = vdwg.mxu0
  %909 = vmatpush.msra.mxu0 0.0
  %910 = vmatpush.msra.mxu0 0.0
  %911 = vmatpush.msra.mxu0 0.0
  %912 = vmatpush.msra.mxu0 0.0
  %913 = vmatpush.msra.mxu0 0.0
  %914 = vmatpush.msra.mxu0 0.0
  %915 = vmatpush.msra.mxu0 0.0
  %916 = vmatpush.msra.mxu0 0.0
  %917 = vmatpush.msra.mxu0 0.0
  %918 = vmatpush.msra.mxu0 0.0
  %919 = vmatpush.msra.mxu0 0.0
  %920 = vmatpush.msra.mxu0 0.0
  %921 = vmatpush.msra.mxu0 0.0
  %922 = vmatpush.msra.mxu0 0.0
  %923 = vmatpush.msra.mxu0 0.0
  %924 = vmatpush.msra.mxu0 %v887
  %925 = vmatmul.f32.gmra.mxu0 %v882
  %v926 = vpop.f32.mrf.mxu0
  %v927 = vadd.f32 0.0, %v926
  %928 = vdwg.mxu0
  %v929 = vsel %vm96, %v865, 0
  %v932 = vsel %vm96, %v880, 0
  %934 = vmatpush.msra.mxu0 0.0
  %935 = vmatpush.msra.mxu0 0.0
  %936 = vmatpush.msra.mxu0 0.0
  %937 = vmatpush.msra.mxu0 0.0
  %938 = vmatpush.msra.mxu0 0.0
  %939 = vmatpush.msra.mxu0 0.0
  %940 = vmatpush.msra.mxu0 0.0
  %941 = vmatpush.msra.mxu0 0.0
  %942 = vmatpush.msra.mxu0 0.0
  %943 = vmatpush.msra.mxu0 0.0
  %944 = vmatpush.msra.mxu0 0.0
  %945 = vmatpush.msra.mxu0 0.0
  %946 = vmatpush.msra.mxu0 0.0
  %947 = vmatpush.msra.mxu0 0.0
  %948 = vmatpush.msra.mxu0 0.0
  %949 = vmatpush.msra.mxu0 %v929
  %950 = vmatmul.f32.gmra.mxu0 %v882
  %v951 = vpop.f32.mrf.mxu0
  %v952 = vadd.f32 0.0, %v951
  %953 = vdwg.mxu0
  %954 = vmatpush.msra.mxu0 0.0
  %955 = vmatpush.msra.mxu0 0.0
  %956 = vmatpush.msra.mxu0 0.0
  %957 = vmatpush.msra.mxu0 0.0
  %958 = vmatpush.msra.mxu0 0.0
  %959 = vmatpush.msra.mxu0 0.0
  %960 = vmatpush.msra.mxu0 0.0
  %961 = vmatpush.msra.mxu0 0.0
  %962 = vmatpush.msra.mxu0 0.0
  %963 = vmatpush.msra.mxu0 0.0
  %964 = vmatpush.msra.mxu0 0.0
  %965 = vmatpush.msra.mxu0 0.0
  %966 = vmatpush.msra.mxu0 0.0
  %967 = vmatpush.msra.mxu0 0.0
  %968 = vmatpush.msra.mxu0 0.0
  %969 = vmatpush.msra.mxu0 %v932
  %970 = vmatmul.f32.gmra.mxu0 %v882
  %v971 = vpop.f32.mrf.mxu0
  %v972 = vadd.f32 0.0, %v971
  %973 = vdwg.mxu0
  %v974 = vperm.slane %v41, 6
  %v975 = vperm.slane %v42, 6
  %v976 = vmul.f32 %v907, %v974
  %v977 = vmul.f32 %v927, %v975
  %v978 = vmul.f32 %v952, %v974
  %v979 = vmul.f32 %v972, %v975
  %v980 = vadd.f32 %v844, %v976
  %v981 = vadd.f32 %v845, %v977
  %v982 = vadd.f32 %v846, %v978
  %v983 = vadd.f32 %v847, %v979
  %984 = vst [vmem:[#allocation1] ss:$2 sm:$0xff] %v45
  %v985 = vld.sshfl [vmem:[#allocation1] sm:$0xff pattern:$0x75316420]
  %v986 = vld.sshfl [vmem:[#allocation1 + $0x8] sm:$0xff pattern:$0x75316420]
  %s987 = scalar_lea.vmem [#allocation1], 16
  %988 = vst [vmem:[%s987] ss:$2 sm:$0xff] %v46
  %v989 = vld.sshfl [vmem:[#allocation1 + $0x10] sm:$0xff pattern:$0x75316420]
  %v990 = vld.sshfl [vmem:[#allocation1 + $0x18] sm:$0xff pattern:$0x75316420]
  %991 = vrot.lane.b32.xlu0 %v985, 112
  %v992 = vpop.permute.xlu0 %991
  %993 = vrot.lane.b32.xlu0 %v986, 112
  %v994 = vpop.permute.xlu0 %993
  %995 = vrot.lane.b32.xlu0 %v989, 112
  %v996 = vpop.permute.xlu0 %995
  %997 = vrot.lane.b32.xlu0 %v990, 112
  %v998 = vpop.permute.xlu0 %997
  %vm999 = vcmask 916480
  %v1000 = vsel %vm999, %v992, %v994
  %v1001 = vsel %vm999, %v996, %v998
  %1004 = vst [vmem:[#allocation1] ss:$2 sm:$0xff] %v45
  %v1005 = vld.sshfl [vmem:[#allocation1] sm:$0xff pattern:$0x75316420]
  %s1006 = scalar_lea.vmem [#allocation1], 16
  %1007 = vst [vmem:[%s1006] ss:$2 sm:$0xff] %v46
  %v1008 = vld.sshfl [vmem:[#allocation1 + $0x10] sm:$0xff pattern:$0x75316420]
  %1009 = vrot.lane.b32.xlu0 %v1005, 112
  %v1010 = vpop.permute.xlu0 %1009
  %1011 = vrot.lane.b32.xlu0 %v1008, 112
  %v1012 = vpop.permute.xlu0 %1011
  %v1015 = vsel %vm999, %v994, %v1010
  %v1016 = vsel %vm999, %v998, %v1012
  %v1018 = vsel %vm92, %v54, 0
  %v1020 = vsel %vm96, %v1000, 0
  %v1023 = vsel %vm96, %v1015, 0
  %1025 = vmatpush.msra.mxu0 0.0
  %1026 = vmatpush.msra.mxu0 0.0
  %1027 = vmatpush.msra.mxu0 0.0
  %1028 = vmatpush.msra.mxu0 0.0
  %1029 = vmatpush.msra.mxu0 0.0
  %1030 = vmatpush.msra.mxu0 0.0
  %1031 = vmatpush.msra.mxu0 0.0
  %1032 = vmatpush.msra.mxu0 0.0
  %1033 = vmatpush.msra.mxu0 0.0
  %1034 = vmatpush.msra.mxu0 0.0
  %1035 = vmatpush.msra.mxu0 0.0
  %1036 = vmatpush.msra.mxu0 0.0
  %1037 = vmatpush.msra.mxu0 0.0
  %1038 = vmatpush.msra.mxu0 0.0
  %1039 = vmatpush.msra.mxu0 0.0
  %1040 = vmatpush.msra.mxu0 %v1020
  %1041 = vmatmul.f32.gmra.mxu0 %v1018
  %v1042 = vpop.f32.mrf.mxu0
  %v1043 = vadd.f32 0.0, %v1042
  %1044 = vdwg.mxu0
  %1045 = vmatpush.msra.mxu0 0.0
  %1046 = vmatpush.msra.mxu0 0.0
  %1047 = vmatpush.msra.mxu0 0.0
  %1048 = vmatpush.msra.mxu0 0.0
  %1049 = vmatpush.msra.mxu0 0.0
  %1050 = vmatpush.msra.mxu0 0.0
  %1051 = vmatpush.msra.mxu0 0.0
  %1052 = vmatpush.msra.mxu0 0.0
  %1053 = vmatpush.msra.mxu0 0.0
  %1054 = vmatpush.msra.mxu0 0.0
  %1055 = vmatpush.msra.mxu0 0.0
  %1056 = vmatpush.msra.mxu0 0.0
  %1057 = vmatpush.msra.mxu0 0.0
  %1058 = vmatpush.msra.mxu0 0.0
  %1059 = vmatpush.msra.mxu0 0.0
  %1060 = vmatpush.msra.mxu0 %v1023
  %1061 = vmatmul.f32.gmra.mxu0 %v1018
  %v1062 = vpop.f32.mrf.mxu0
  %v1063 = vadd.f32 0.0, %v1062
  %1064 = vdwg.mxu0
  %v1065 = vsel %vm96, %v1001, 0
  %v1068 = vsel %vm96, %v1016, 0
  %1070 = vmatpush.msra.mxu0 0.0
  %1071 = vmatpush.msra.mxu0 0.0
  %1072 = vmatpush.msra.mxu0 0.0
  %1073 = vmatpush.msra.mxu0 0.0
  %1074 = vmatpush.msra.mxu0 0.0
  %1075 = vmatpush.msra.mxu0 0.0
  %1076 = vmatpush.msra.mxu0 0.0
  %1077 = vmatpush.msra.mxu0 0.0
  %1078 = vmatpush.msra.mxu0 0.0
  %1079 = vmatpush.msra.mxu0 0.0
  %1080 = vmatpush.msra.mxu0 0.0
  %1081 = vmatpush.msra.mxu0 0.0
  %1082 = vmatpush.msra.mxu0 0.0
  %1083 = vmatpush.msra.mxu0 0.0
  %1084 = vmatpush.msra.mxu0 0.0
  %1085 = vmatpush.msra.mxu0 %v1065
  %1086 = vmatmul.f32.gmra.mxu0 %v1018
  %v1087 = vpop.f32.mrf.mxu0
  %v1088 = vadd.f32 0.0, %v1087
  %1089 = vdwg.mxu0
  %1090 = vmatpush.msra.mxu0 0.0
  %1091 = vmatpush.msra.mxu0 0.0
  %1092 = vmatpush.msra.mxu0 0.0
  %1093 = vmatpush.msra.mxu0 0.0
  %1094 = vmatpush.msra.mxu0 0.0
  %1095 = vmatpush.msra.mxu0 0.0
  %1096 = vmatpush.msra.mxu0 0.0
  %1097 = vmatpush.msra.mxu0 0.0
  %1098 = vmatpush.msra.mxu0 0.0
  %1099 = vmatpush.msra.mxu0 0.0
  %1100 = vmatpush.msra.mxu0 0.0
  %1101 = vmatpush.msra.mxu0 0.0
  %1102 = vmatpush.msra.mxu0 0.0
  %1103 = vmatpush.msra.mxu0 0.0
  %1104 = vmatpush.msra.mxu0 0.0
  %1105 = vmatpush.msra.mxu0 %v1068
  %1106 = vmatmul.f32.gmra.mxu0 %v1018
  %v1107 = vpop.f32.mrf.mxu0
  %v1108 = vadd.f32 0.0, %v1107
  %1109 = vdwg.mxu0
  %v1110 = vperm.slane %v41, 7
  %v1111 = vperm.slane %v42, 7
  %v1112 = vmul.f32 %v1043, %v1110
  %v1113 = vmul.f32 %v1063, %v1111
  %v1114 = vmul.f32 %v1088, %v1110
  %v1115 = vmul.f32 %v1108, %v1111
  %v1116 = vadd.f32 %v980, %v1112
  %v1117 = vadd.f32 %v981, %v1113
  %v1118 = vadd.f32 %v982, %v1114
  %v1119 = vadd.f32 %v983, %v1115
  %1120 = vst [vmem:[#allocation1] ss:$2 sm:$0xff] %v45
  %v1121 = vld.sshfl [vmem:[#allocation1] sm:$0xff pattern:$0x75316420]
  %v1122 = vld.sshfl [vmem:[#allocation1 + $0x8] sm:$0xff pattern:$0x75316420]
  %s1123 = scalar_lea.vmem [#allocation1], 16
  %1124 = vst [vmem:[%s1123] ss:$2 sm:$0xff] %v46
  %v1125 = vld.sshfl [vmem:[#allocation1 + $0x10] sm:$0xff pattern:$0x75316420]
  %v1126 = vld.sshfl [vmem:[#allocation1 + $0x18] sm:$0xff pattern:$0x75316420]
  %1127 = vrot.lane.b32.xlu0 %v1121, 111
  %v1128 = vpop.permute.xlu0 %1127
  %1129 = vrot.lane.b32.xlu0 %v1122, 111
  %v1130 = vpop.permute.xlu0 %1129
  %1131 = vrot.lane.b32.xlu0 %v1125, 111
  %v1132 = vpop.permute.xlu0 %1131
  %1133 = vrot.lane.b32.xlu0 %v1126, 111
  %v1134 = vpop.permute.xlu0 %1133
  %vm1135 = vcmask 908288
  %v1136 = vsel %vm1135, %v1128, %v1130
  %v1137 = vsel %vm1135, %v1132, %v1134
  %1140 = vst [vmem:[#allocation1] ss:$2 sm:$0xff] %v45
  %v1141 = vld.sshfl [vmem:[#allocation1] sm:$0xff pattern:$0x75316420]
  %s1142 = scalar_lea.vmem [#allocation1], 16
  %1143 = vst [vmem:[%s1142] ss:$2 sm:$0xff] %v46
  %v1144 = vld.sshfl [vmem:[#allocation1 + $0x10] sm:$0xff pattern:$0x75316420]
  %1145 = vrot.lane.b32.xlu0 %v1141, 111
  %v1146 = vpop.permute.xlu0 %1145
  %1147 = vrot.lane.b32.xlu0 %v1144, 111
  %v1148 = vpop.permute.xlu0 %1147
  %v1151 = vsel %vm1135, %v1130, %v1146
  %v1152 = vsel %vm1135, %v1134, %v1148
  %v1154 = vsel %vm92, %v55, 0
  %v1156 = vsel %vm96, %v1136, 0
  %v1159 = vsel %vm96, %v1151, 0
  %1161 = vmatpush.msra.mxu0 0.0
  %1162 = vmatpush.msra.mxu0 0.0
  %1163 = vmatpush.msra.mxu0 0.0
  %1164 = vmatpush.msra.mxu0 0.0
  %1165 = vmatpush.msra.mxu0 0.0
  %1166 = vmatpush.msra.mxu0 0.0
  %1167 = vmatpush.msra.mxu0 0.0
  %1168 = vmatpush.msra.mxu0 0.0
  %1169 = vmatpush.msra.mxu0 0.0
  %1170 = vmatpush.msra.mxu0 0.0
  %1171 = vmatpush.msra.mxu0 0.0
  %1172 = vmatpush.msra.mxu0 0.0
  %1173 = vmatpush.msra.mxu0 0.0
  %1174 = vmatpush.msra.mxu0 0.0
  %1175 = vmatpush.msra.mxu0 0.0
  %1176 = vmatpush.msra.mxu0 %v1156
  %1177 = vmatmul.f32.gmra.mxu0 %v1154
  %v1178 = vpop.f32.mrf.mxu0
  %v1179 = vadd.f32 0.0, %v1178
  %1180 = vdwg.mxu0
  %1181 = vmatpush.msra.mxu0 0.0
  %1182 = vmatpush.msra.mxu0 0.0
  %1183 = vmatpush.msra.mxu0 0.0
  %1184 = vmatpush.msra.mxu0 0.0
  %1185 = vmatpush.msra.mxu0 0.0
  %1186 = vmatpush.msra.mxu0 0.0
  %1187 = vmatpush.msra.mxu0 0.0
  %1188 = vmatpush.msra.mxu0 0.0
  %1189 = vmatpush.msra.mxu0 0.0
  %1190 = vmatpush.msra.mxu0 0.0
  %1191 = vmatpush.msra.mxu0 0.0
  %1192 = vmatpush.msra.mxu0 0.0
  %1193 = vmatpush.msra.mxu0 0.0
  %1194 = vmatpush.msra.mxu0 0.0
  %1195 = vmatpush.msra.mxu0 0.0
  %1196 = vmatpush.msra.mxu0 %v1159
  %1197 = vmatmul.f32.gmra.mxu0 %v1154
  %v1198 = vpop.f32.mrf.mxu0
  %v1199 = vadd.f32 0.0, %v1198
  %1200 = vdwg.mxu0
  %v1201 = vsel %vm96, %v1137, 0
  %v1204 = vsel %vm96, %v1152, 0
  %1206 = vmatpush.msra.mxu0 0.0
  %1207 = vmatpush.msra.mxu0 0.0
  %1208 = vmatpush.msra.mxu0 0.0
  %1209 = vmatpush.msra.mxu0 0.0
  %1210 = vmatpush.msra.mxu0 0.0
  %1211 = vmatpush.msra.mxu0 0.0
  %1212 = vmatpush.msra.mxu0 0.0
  %1213 = vmatpush.msra.mxu0 0.0
  %1214 = vmatpush.msra.mxu0 0.0
  %1215 = vmatpush.msra.mxu0 0.0
  %1216 = vmatpush.msra.mxu0 0.0
  %1217 = vmatpush.msra.mxu0 0.0
  %1218 = vmatpush.msra.mxu0 0.0
  %1219 = vmatpush.msra.mxu0 0.0
  %1220 = vmatpush.msra.mxu0 0.0
  %1221 = vmatpush.msra.mxu0 %v1201
  %1222 = vmatmul.f32.gmra.mxu0 %v1154
  %v1223 = vpop.f32.mrf.mxu0
  %v1224 = vadd.f32 0.0, %v1223
  %1225 = vdwg.mxu0
  %1226 = vmatpush.msra.mxu0 0.0
  %1227 = vmatpush.msra.mxu0 0.0
  %1228 = vmatpush.msra.mxu0 0.0
  %1229 = vmatpush.msra.mxu0 0.0
  %1230 = vmatpush.msra.mxu0 0.0
  %1231 = vmatpush.msra.mxu0 0.0
  %1232 = vmatpush.msra.mxu0 0.0
  %1233 = vmatpush.msra.mxu0 0.0
  %1234 = vmatpush.msra.mxu0 0.0
  %1235 = vmatpush.msra.mxu0 0.0
  %1236 = vmatpush.msra.mxu0 0.0
  %1237 = vmatpush.msra.mxu0 0.0
  %1238 = vmatpush.msra.mxu0 0.0
  %1239 = vmatpush.msra.mxu0 0.0
  %1240 = vmatpush.msra.mxu0 0.0
  %1241 = vmatpush.msra.mxu0 %v1204
  %1242 = vmatmul.f32.gmra.mxu0 %v1154
  %v1243 = vpop.f32.mrf.mxu0
  %v1244 = vadd.f32 0.0, %v1243
  %1245 = vdwg.mxu0
  %v1246 = vperm.slane %v43, 0
  %v1247 = vperm.slane %v44, 0
  %v1248 = vmul.f32 %v1179, %v1246
  %v1249 = vmul.f32 %v1199, %v1247
  %v1250 = vmul.f32 %v1224, %v1246
  %v1251 = vmul.f32 %v1244, %v1247
  %v1252 = vadd.f32 %v1116, %v1248
  %v1253 = vadd.f32 %v1117, %v1249
  %v1254 = vadd.f32 %v1118, %v1250
  %v1255 = vadd.f32 %v1119, %v1251
  %1257 = vset.pattern.permute.xlu0 0
  %1258 = vperm.xlu0 %1257, %v56
  %v1259 = vpop.permute.xlu0 %1258
  %v1261 = vadd.f32 %v1252, %v1259
  %v1262 = vadd.f32 %v1253, %v1259
  %v1263 = vadd.f32 %v1254, %v1259
  %v1264 = vadd.f32 %v1255, %v1259
  %v1265 = vmax.f32 %v1261, 0.0
  %v1266 = vmax.f32 %v1262, 0.0
  %v1267 = vmax.f32 %v1263, 0.0
  %v1268 = vmax.f32 %v1264, 0.0
  %v1269 = vrot.slane %v1265, 4
  %vm1270 = vcmask 1047556
  %v1271 = vsel %vm1270, 0.0, %v1269
  %v1273 = vunpack.c.l.s4 1983009808
  %v1274 = vunpack.c.0.s8 %v1273
  %v1275 = vperm.slane %v1265, %v1274
  %v1277 = vunpack.c.l.s4 1983009808
  %v1278 = vunpack.c.0.s8 %v1277
  %v1279 = vperm.slane %v1271, %v1278
  %v1280 = vrot.slane %v1267, 4
  %v1281 = vsel %vm1270, 0.0, %v1280
  %v1283 = vunpack.c.l.s4 1983009808
  %v1284 = vunpack.c.0.s8 %v1283
  %v1285 = vperm.slane %v1267, %v1284
  %v1287 = vunpack.c.l.s4 1983009808
  %v1288 = vunpack.c.0.s8 %v1287
  %v1289 = vperm.slane %v1281, %v1288
  %v1290 = vrot.slane %v1285, 4
  %v1291 = vsel %vm1270, %v1290, %v1275
  %v1292 = vrot.slane %v1275, 4
  %v1293 = vsel %vm1270, %v1285, %v1292
  %v1295 = vunpack.c.l.s4 1934713408
  %v1296 = vunpack.c.0.s8 %v1295
  %v1297 = vperm.slane %v1291, %v1296
  %v1299 = vunpack.c.l.s4 1934713408
  %v1300 = vunpack.c.0.s8 %v1299
  %v1301 = vperm.slane %v1293, %v1300
  %v1302 = vrot.slane %v1289, 4
  %v1303 = vsel %vm1270, %v1302, %v1279
  %v1304 = vrot.slane %v1279, 4
  %v1305 = vsel %vm1270, %v1289, %v1304
  %v1307 = vunpack.c.l.s4 1934713408
  %v1308 = vunpack.c.0.s8 %v1307
  %v1309 = vperm.slane %v1303, %v1308
  %v1311 = vunpack.c.l.s4 1934713408
  %v1312 = vunpack.c.0.s8 %v1311
  %v1313 = vperm.slane %v1305, %v1312
  %v1314 = vrot.slane %v1297, 4
  %v1315 = vsel %vm1270, 0.0, %v1314
  %v1316 = vrot.slane %v1301, 4
  %v1317 = vsel %vm1270, 0.0, %v1316
  %v1318 = vrot.slane %v1309, 4
  %v1319 = vsel %vm1270, 0.0, %v1318
  %v1320 = vrot.slane %v1313, 4
  %v1321 = vsel %vm1270, 0.0, %v1320
  %v1322 = vrot.slane %v1266, 4
  %v1323 = vsel %vm1270, 0.0, %v1322
  %v1325 = vunpack.c.l.s4 1983009808
  %v1326 = vunpack.c.0.s8 %v1325
  %v1327 = vperm.slane %v1266, %v1326
  %v1329 = vunpack.c.l.s4 1983009808
  %v1330 = vunpack.c.0.s8 %v1329
  %v1331 = vperm.slane %v1323, %v1330
  %v1332 = vrot.slane %v1268, 4
  %v1333 = vsel %vm1270, 0.0, %v1332
  %v1335 = vunpack.c.l.s4 1983009808
  %v1336 = vunpack.c.0.s8 %v1335
  %v1337 = vperm.slane %v1268, %v1336
  %v1339 = vunpack.c.l.s4 1983009808
  %v1340 = vunpack.c.0.s8 %v1339
  %v1341 = vperm.slane %v1333, %v1340
  %v1342 = vrot.slane %v1337, 4
  %v1343 = vsel %vm1270, %v1342, %v1327
  %v1344 = vrot.slane %v1327, 4
  %v1345 = vsel %vm1270, %v1337, %v1344
  %v1347 = vunpack.c.l.s4 1934713408
  %v1348 = vunpack.c.0.s8 %v1347
  %v1349 = vperm.slane %v1343, %v1348
  %v1351 = vunpack.c.l.s4 1934713408
  %v1352 = vunpack.c.0.s8 %v1351
  %v1353 = vperm.slane %v1345, %v1352
  %v1354 = vrot.slane %v1341, 4
  %v1355 = vsel %vm1270, %v1354, %v1331
  %v1356 = vrot.slane %v1331, 4
  %v1357 = vsel %vm1270, %v1341, %v1356
  %v1359 = vunpack.c.l.s4 1934713408
  %v1360 = vunpack.c.0.s8 %v1359
  %v1361 = vperm.slane %v1355, %v1360
  %v1363 = vunpack.c.l.s4 1934713408
  %v1364 = vunpack.c.0.s8 %v1363
  %v1365 = vperm.slane %v1357, %v1364
  %v1366 = vrot.slane %v1349, 4
  %v1367 = vsel %vm1270, 0.0, %v1366
  %v1368 = vrot.slane %v1353, 4
  %v1369 = vsel %vm1270, 0.0, %v1368
  %v1370 = vrot.slane %v1361, 4
  %v1371 = vsel %vm1270, 0.0, %v1370
  %v1372 = vrot.slane %v1365, 4
  %v1373 = vsel %vm1270, 0.0, %v1372
  %v1374 = vpack.c.bf16 %v1349, %v1297
  %v1375 = vpack.c.bf16 %v1367, %v1315
  %v1376 = vpack.c.bf16 %v1353, %v1301
  %v1377 = vpack.c.bf16 %v1369, %v1317
  %v1378 = vpack.c.bf16 %v1361, %v1309
  %v1379 = vpack.c.bf16 %v1371, %v1319
  %v1380 = vpack.c.bf16 %v1365, %v1313
  %v1381 = vpack.c.bf16 %v1373, %v1321
  %v1382 = vld [vmem:[%s4] sm:$0xf]
  %v1383 = vld [vmem:[%s4 + $0x4] sm:$0xf]
  %v1384 = vld [vmem:[%s4 + $0x8] sm:$0xf]
  %v1385 = vld [vmem:[%s4 + $0xc] sm:$0xf]
  %v1386 = vld [vmem:[%s4 + $0x10] sm:$0xf]
  %v1387 = vld [vmem:[%s4 + $0x14] sm:$0xf]
  %v1388 = vld [vmem:[%s4 + $0x18] sm:$0xf]
  %v1389 = vld [vmem:[%s4 + $0x1c] sm:$0xf]
  %v1390 = vld [vmem:[%s4 + $0x20] sm:$0xf]
  %v1391 = vld [vmem:[%s4 + $0x24] sm:$0xf]
  %v1392 = vld [vmem:[%s4 + $0x28] sm:$0xf]
  %v1393 = vld [vmem:[%s4 + $0x2c] sm:$0xf]
  %v1394 = vld [vmem:[%s4 + $0x30] sm:$0xf]
  %v1395 = vld [vmem:[%s4 + $0x34] sm:$0xf]
  %v1396 = vld [vmem:[%s4 + $0x38] sm:$0xf]
  %v1397 = vld [vmem:[%s4 + $0x3c] sm:$0xf]
  %v1398 = vld [vmem:[%s4 + $0x40] sm:$0xf]
  %v1399 = vld [vmem:[%s4 + $0x44] sm:$0xf]
  %v1400 = vld [vmem:[%s4 + $0x48] sm:$0xf]
  %v1401 = vld [vmem:[%s4 + $0x4c] sm:$0xf]
  %v1402 = vld [vmem:[%s4 + $0x50] sm:$0xf]
  %v1403 = vld [vmem:[%s4 + $0x54] sm:$0xf]
  %v1404 = vld [vmem:[%s4 + $0x58] sm:$0xf]
  %v1405 = vld [vmem:[%s4 + $0x5c] sm:$0xf]
  %v1406 = vld [vmem:[%s4 + $0x60] sm:$0xf]
  %v1407 = vld [vmem:[%s4 + $0x64] sm:$0xf]
  %v1408 = vld [vmem:[%s4 + $0x68] sm:$0xf]
  %v1409 = vld [vmem:[%s4 + $0x6c] sm:$0xf]
  %v1410 = vld [vmem:[%s4 + $0x70] sm:$0xf]
  %v1411 = vld [vmem:[%s4 + $0x74] sm:$0xf]
  %v1412 = vld [vmem:[%s4 + $0x78] sm:$0xf]
  %v1413 = vld [vmem:[%s4 + $0x7c] sm:$0xf]
  %v1414 = vld [vmem:[%s4 + $0x80] sm:$0xf]
  %v1415 = vld [vmem:[%s4 + $0x84] sm:$0xf]
  %v1416 = vld [vmem:[%s4 + $0x88] sm:$0xf]
  %v1417 = vld [vmem:[%s4 + $0x8c] sm:$0xf]
  %v1418 = vld [vmem:[%s4 + $0x90] sm:$0xf]
  %v1419 = vld [vmem:[%s4 + $0x94] sm:$0xf]
  %v1420 = vld [vmem:[%s4 + $0x98] sm:$0xf]
  %v1421 = vld [vmem:[%s4 + $0x9c] sm:$0xf]
  %v1422 = vld [vmem:[%s4 + $0xa0] sm:$0xf]
  %v1423 = vld [vmem:[%s4 + $0xa4] sm:$0xf]
  %v1424 = vld [vmem:[%s4 + $0xa8] sm:$0xf]
  %v1425 = vld [vmem:[%s4 + $0xac] sm:$0xf]
  %v1426 = vld [vmem:[%s4 + $0xb0] sm:$0xf]
  %v1427 = vld [vmem:[%s4 + $0xb4] sm:$0xf]
  %v1428 = vld [vmem:[%s4 + $0xb8] sm:$0xf]
  %v1429 = vld [vmem:[%s4 + $0xbc] sm:$0xf]
  %v1430 = vld [vmem:[%s4 + $0xc0] sm:$0xf]
  %v1431 = vld [vmem:[%s4 + $0xc4] sm:$0xf]
  %v1432 = vld [vmem:[%s4 + $0xc8] sm:$0xf]
  %v1433 = vld [vmem:[%s4 + $0xcc] sm:$0xf]
  %v1434 = vld [vmem:[%s4 + $0xd0] sm:$0xf]
  %v1435 = vld [vmem:[%s4 + $0xd4] sm:$0xf]
  %v1436 = vld [vmem:[%s4 + $0xd8] sm:$0xf]
  %v1437 = vld [vmem:[%s4 + $0xdc] sm:$0xf]
  %v1438 = vld [vmem:[%s4 + $0xe0] sm:$0xf]
  %v1439 = vld [vmem:[%s4 + $0xe4] sm:$0xf]
  %v1440 = vld [vmem:[%s4 + $0xe8] sm:$0xf]
  %v1441 = vld [vmem:[%s4 + $0xec] sm:$0xf]
  %v1442 = vld [vmem:[%s4 + $0xf0] sm:$0xf]
  %v1443 = vld [vmem:[%s4 + $0xf4] sm:$0xf]
  %v1444 = vld [vmem:[%s4 + $0xf8] sm:$0xf]
  %v1445 = vld [vmem:[%s4 + $0xfc] sm:$0xf]
  %v1446 = vld [vmem:[%s4 + $0x100] sm:$0xf]
  %v1447 = vld [vmem:[%s4 + $0x104] sm:$0xf]
  %v1448 = vld [vmem:[%s4 + $0x108] sm:$0xf]
  %v1449 = vld [vmem:[%s4 + $0x10c] sm:$0xf]
  %v1450 = vld [vmem:[%s4 + $0x110] sm:$0xf]
  %v1451 = vld [vmem:[%s4 + $0x114] sm:$0xf]
  %v1452 = vld [vmem:[%s4 + $0x118] sm:$0xf]
  %v1453 = vld [vmem:[%s4 + $0x11c] sm:$0xf]
  %v1454 = vld [vmem:[%s4 + $0x120] sm:$0xf]
  %v1455 = vld [vmem:[%s4 + $0x124] sm:$0xf]
  %v1456 = vld [vmem:[%s4 + $0x128] sm:$0xf]
  %v1457 = vld [vmem:[%s4 + $0x12c] sm:$0xf]
  %v1458 = vld [vmem:[%s4 + $0x130] sm:$0xf]
  %v1459 = vld [vmem:[%s4 + $0x134] sm:$0xf]
  %v1460 = vld [vmem:[%s4 + $0x138] sm:$0xf]
  %v1461 = vld [vmem:[%s4 + $0x13c] sm:$0xf]
  %v1462 = vld [vmem:[%s4 + $0x140] sm:$0xf]
  %v1463 = vld [vmem:[%s4 + $0x144] sm:$0xf]
  %v1464 = vld [vmem:[%s4 + $0x148] sm:$0xf]
  %v1465 = vld [vmem:[%s4 + $0x14c] sm:$0xf]
  %v1466 = vld [vmem:[%s4 + $0x150] sm:$0xf]
  %v1467 = vld [vmem:[%s4 + $0x154] sm:$0xf]
  %v1468 = vld [vmem:[%s4 + $0x158] sm:$0xf]
  %v1469 = vld [vmem:[%s4 + $0x15c] sm:$0xf]
  %v1470 = vld [vmem:[%s4 + $0x160] sm:$0xf]
  %v1471 = vld [vmem:[%s4 + $0x164] sm:$0xf]
  %v1472 = vld [vmem:[%s4 + $0x168] sm:$0xf]
  %v1473 = vld [vmem:[%s4 + $0x16c] sm:$0xf]
  %v1474 = vld [vmem:[%s4 + $0x170] sm:$0xf]
  %v1475 = vld [vmem:[%s4 + $0x174] sm:$0xf]
  %v1476 = vld [vmem:[%s4 + $0x178] sm:$0xf]
  %v1477 = vld [vmem:[%s4 + $0x17c] sm:$0xf]
  %v1478 = vld [vmem:[%s4 + $0x180] sm:$0xf]
  %v1479 = vld [vmem:[%s4 + $0x184] sm:$0xf]
  %v1480 = vld [vmem:[%s4 + $0x188] sm:$0xf]
  %v1481 = vld [vmem:[%s4 + $0x18c] sm:$0xf]
  %v1482 = vld [vmem:[%s4 + $0x190] sm:$0xf]
  %v1483 = vld [vmem:[%s4 + $0x194] sm:$0xf]
  %v1484 = vld [vmem:[%s4 + $0x198] sm:$0xf]
  %v1485 = vld [vmem:[%s4 + $0x19c] sm:$0xf]
  %v1486 = vld [vmem:[%s4 + $0x1a0] sm:$0xf]
  %v1487 = vld [vmem:[%s4 + $0x1a4] sm:$0xf]
  %v1488 = vld [vmem:[%s4 + $0x1a8] sm:$0xf]
  %v1489 = vld [vmem:[%s4 + $0x1ac] sm:$0xf]
  %v1490 = vld [vmem:[%s4 + $0x1b0] sm:$0xf]
  %v1491 = vld [vmem:[%s4 + $0x1b4] sm:$0xf]
  %v1492 = vld [vmem:[%s4 + $0x1b8] sm:$0xf]
  %v1493 = vld [vmem:[%s4 + $0x1bc] sm:$0xf]
  %v1494 = vld [vmem:[%s4 + $0x1c0] sm:$0xf]
  %v1495 = vld [vmem:[%s4 + $0x1c4] sm:$0xf]
  %v1496 = vld [vmem:[%s4 + $0x1c8] sm:$0xf]
  %v1497 = vld [vmem:[%s4 + $0x1cc] sm:$0xf]
  %v1498 = vld [vmem:[%s4 + $0x1d0] sm:$0xf]
  %v1499 = vld [vmem:[%s4 + $0x1d4] sm:$0xf]
  %v1500 = vld [vmem:[%s4 + $0x1d8] sm:$0xf]
  %v1501 = vld [vmem:[%s4 + $0x1dc] sm:$0xf]
  %v1502 = vld [vmem:[%s4 + $0x1e0] sm:$0xf]
  %v1503 = vld [vmem:[%s4 + $0x1e4] sm:$0xf]
  %v1504 = vld [vmem:[%s4 + $0x1e8] sm:$0xf]
  %v1505 = vld [vmem:[%s4 + $0x1ec] sm:$0xf]
  %v1506 = vld [vmem:[%s4 + $0x1f0] sm:$0xf]
  %v1507 = vld [vmem:[%s4 + $0x1f4] sm:$0xf]
  %v1508 = vld [vmem:[%s4 + $0x1f8] sm:$0xf]
  %v1509 = vld [vmem:[%s4 + $0x1fc] sm:$0xf]
  %v1510 = vld [vmem:[%s4 + $0x200] sm:$0xf]
  %v1511 = vld [vmem:[%s4 + $0x204] sm:$0xf]
  %v1512 = vld [vmem:[%s4 + $0x208] sm:$0xf]
  %v1513 = vld [vmem:[%s4 + $0x20c] sm:$0xf]
  %v1514 = vld [vmem:[%s4 + $0x210] sm:$0xf]
  %v1515 = vld [vmem:[%s4 + $0x214] sm:$0xf]
  %v1516 = vld [vmem:[%s4 + $0x218] sm:$0xf]
  %v1517 = vld [vmem:[%s4 + $0x21c] sm:$0xf]
  %v1518 = vld [vmem:[%s4 + $0x220] sm:$0xf]
  %v1519 = vld [vmem:[%s4 + $0x224] sm:$0xf]
  %v1520 = vld [vmem:[%s4 + $0x228] sm:$0xf]
  %v1521 = vld [vmem:[%s4 + $0x22c] sm:$0xf]
  %v1522 = vld [vmem:[%s4 + $0x230] sm:$0xf]
  %v1523 = vld [vmem:[%s4 + $0x234] sm:$0xf]
  %v1524 = vld [vmem:[%s4 + $0x238] sm:$0xf]
  %v1525 = vld [vmem:[%s4 + $0x23c] sm:$0xf]
  %v1526 = vld [vmem:[%s4 + $0x240] sm:$0xf]
  %v1527 = vld [vmem:[%s4 + $0x244] sm:$0xf]
  %v1528 = vld [vmem:[%s4 + $0x248] sm:$0xf]
  %v1529 = vld [vmem:[%s4 + $0x24c] sm:$0xf]
  %v1530 = vld [vmem:[%s4 + $0x250] sm:$0xf]
  %v1531 = vld [vmem:[%s4 + $0x254] sm:$0xf]
  %v1532 = vld [vmem:[%s4 + $0x258] sm:$0xf]
  %v1533 = vld [vmem:[%s4 + $0x25c] sm:$0xf]
  %v1534 = vld [vmem:[%s4 + $0x260] sm:$0xf]
  %v1535 = vld [vmem:[%s4 + $0x264] sm:$0xf]
  %v1536 = vld [vmem:[%s4 + $0x268] sm:$0xf]
  %v1537 = vld [vmem:[%s4 + $0x26c] sm:$0xf]
  %v1538 = vld [vmem:[%s4 + $0x270] sm:$0xf]
  %v1539 = vld [vmem:[%s4 + $0x274] sm:$0xf]
  %v1540 = vld [vmem:[%s4 + $0x278] sm:$0xf]
  %v1541 = vld [vmem:[%s4 + $0x27c] sm:$0xf]
  %v1542 = vld [vmem:[%s4 + $0x280] sm:$0xf]
  %v1543 = vld [vmem:[%s4 + $0x284] sm:$0xf]
  %v1544 = vld [vmem:[%s4 + $0x288] sm:$0xf]
  %v1545 = vld [vmem:[%s4 + $0x28c] sm:$0xf]
  %v1546 = vld [vmem:[%s4 + $0x290] sm:$0xf]
  %v1547 = vld [vmem:[%s4 + $0x294] sm:$0xf]
  %v1548 = vld [vmem:[%s4 + $0x298] sm:$0xf]
  %v1549 = vld [vmem:[%s4 + $0x29c] sm:$0xf]
  %v1550 = vld [vmem:[%s4 + $0x2a0] sm:$0xf]
  %v1551 = vld [vmem:[%s4 + $0x2a4] sm:$0xf]
  %v1552 = vld [vmem:[%s4 + $0x2a8] sm:$0xf]
  %v1553 = vld [vmem:[%s4 + $0x2ac] sm:$0xf]
  %v1554 = vld [vmem:[%s4 + $0x2b0] sm:$0xf]
  %v1555 = vld [vmem:[%s4 + $0x2b4] sm:$0xf]
  %v1556 = vld [vmem:[%s4 + $0x2b8] sm:$0xf]
  %v1557 = vld [vmem:[%s4 + $0x2bc] sm:$0xf]
  %v1558 = vld [vmem:[%s4 + $0x2c0] sm:$0xf]
  %v1559 = vld [vmem:[%s4 + $0x2c4] sm:$0xf]
  %v1560 = vld [vmem:[%s4 + $0x2c8] sm:$0xf]
  %v1561 = vld [vmem:[%s4 + $0x2cc] sm:$0xf]
  %v1562 = vld [vmem:[%s4 + $0x2d0] sm:$0xf]
  %v1563 = vld [vmem:[%s4 + $0x2d4] sm:$0xf]
  %v1564 = vld [vmem:[%s4 + $0x2d8] sm:$0xf]
  %v1565 = vld [vmem:[%s4 + $0x2dc] sm:$0xf]
  %v1566 = vld [vmem:[%s4 + $0x2e0] sm:$0xf]
  %v1567 = vld [vmem:[%s4 + $0x2e4] sm:$0xf]
  %v1568 = vld [vmem:[%s4 + $0x2e8] sm:$0xf]
  %v1569 = vld [vmem:[%s4 + $0x2ec] sm:$0xf]
  %v1570 = vld [vmem:[%s4 + $0x2f0] sm:$0xf]
  %v1571 = vld [vmem:[%s4 + $0x2f4] sm:$0xf]
  %v1572 = vld [vmem:[%s4 + $0x2f8] sm:$0xf]
  %v1573 = vld [vmem:[%s4 + $0x2fc] sm:$0xf]
  %v1574 = vld [vmem:[%s4 + $0x300] sm:$0xf]
  %v1575 = vld [vmem:[%s4 + $0x304] sm:$0xf]
  %v1576 = vld [vmem:[%s4 + $0x308] sm:$0xf]
  %v1577 = vld [vmem:[%s4 + $0x30c] sm:$0xf]
  %v1578 = vld [vmem:[%s4 + $0x310] sm:$0xf]
  %v1579 = vld [vmem:[%s4 + $0x314] sm:$0xf]
  %v1580 = vld [vmem:[%s4 + $0x318] sm:$0xf]
  %v1581 = vld [vmem:[%s4 + $0x31c] sm:$0xf]
  %v1582 = vld [vmem:[%s4 + $0x320] sm:$0xf]
  %v1583 = vld [vmem:[%s4 + $0x324] sm:$0xf]
  %v1584 = vld [vmem:[%s4 + $0x328] sm:$0xf]
  %v1585 = vld [vmem:[%s4 + $0x32c] sm:$0xf]
  %v1586 = vld [vmem:[%s4 + $0x330] sm:$0xf]
  %v1587 = vld [vmem:[%s4 + $0x334] sm:$0xf]
  %v1588 = vld [vmem:[%s4 + $0x338] sm:$0xf]
  %v1589 = vld [vmem:[%s4 + $0x33c] sm:$0xf]
  %v1590 = vld [vmem:[%s4 + $0x340] sm:$0xf]
  %v1591 = vld [vmem:[%s4 + $0x344] sm:$0xf]
  %v1592 = vld [vmem:[%s4 + $0x348] sm:$0xf]
  %v1593 = vld [vmem:[%s4 + $0x34c] sm:$0xf]
  %v1594 = vld [vmem:[%s4 + $0x350] sm:$0xf]
  %v1595 = vld [vmem:[%s4 + $0x354] sm:$0xf]
  %v1596 = vld [vmem:[%s4 + $0x358] sm:$0xf]
  %v1597 = vld [vmem:[%s4 + $0x35c] sm:$0xf]
  %v1598 = vld [vmem:[%s4 + $0x360] sm:$0xf]
  %v1599 = vld [vmem:[%s4 + $0x364] sm:$0xf]
  %v1600 = vld [vmem:[%s4 + $0x368] sm:$0xf]
  %v1601 = vld [vmem:[%s4 + $0x36c] sm:$0xf]
  %v1602 = vld [vmem:[%s4 + $0x370] sm:$0xf]
  %v1603 = vld [vmem:[%s4 + $0x374] sm:$0xf]
  %v1604 = vld [vmem:[%s4 + $0x378] sm:$0xf]
  %v1605 = vld [vmem:[%s4 + $0x37c] sm:$0xf]
  %v1606 = vld [vmem:[%s4 + $0x380] sm:$0xf]
  %v1607 = vld [vmem:[%s4 + $0x384] sm:$0xf]
  %v1608 = vld [vmem:[%s4 + $0x388] sm:$0xf]
  %v1609 = vld [vmem:[%s4 + $0x38c] sm:$0xf]
  %v1610 = vld [vmem:[%s4 + $0x390] sm:$0xf]
  %v1611 = vld [vmem:[%s4 + $0x394] sm:$0xf]
  %v1612 = vld [vmem:[%s4 + $0x398] sm:$0xf]
  %v1613 = vld [vmem:[%s4 + $0x39c] sm:$0xf]
  %v1614 = vld [vmem:[%s4 + $0x3a0] sm:$0xf]
  %v1615 = vld [vmem:[%s4 + $0x3a4] sm:$0xf]
  %v1616 = vld [vmem:[%s4 + $0x3a8] sm:$0xf]
  %v1617 = vld [vmem:[%s4 + $0x3ac] sm:$0xf]
  %v1618 = vld [vmem:[%s4 + $0x3b0] sm:$0xf]
  %v1619 = vld [vmem:[%s4 + $0x3b4] sm:$0xf]
  %v1620 = vld [vmem:[%s4 + $0x3b8] sm:$0xf]
  %v1621 = vld [vmem:[%s4 + $0x3bc] sm:$0xf]
  %v1622 = vld [vmem:[%s4 + $0x3c0] sm:$0xf]
  %v1623 = vld [vmem:[%s4 + $0x3c4] sm:$0xf]
  %v1624 = vld [vmem:[%s4 + $0x3c8] sm:$0xf]
  %v1625 = vld [vmem:[%s4 + $0x3cc] sm:$0xf]
  %v1626 = vld [vmem:[%s4 + $0x3d0] sm:$0xf]
  %v1627 = vld [vmem:[%s4 + $0x3d4] sm:$0xf]
  %v1628 = vld [vmem:[%s4 + $0x3d8] sm:$0xf]
  %v1629 = vld [vmem:[%s4 + $0x3dc] sm:$0xf]
  %v1630 = vld [vmem:[%s4 + $0x3e0] sm:$0xf]
  %v1631 = vld [vmem:[%s4 + $0x3e4] sm:$0xf]
  %v1632 = vld [vmem:[%s4 + $0x3e8] sm:$0xf]
  %v1633 = vld [vmem:[%s4 + $0x3ec] sm:$0xf]
  %v1634 = vld [vmem:[%s4 + $0x3f0] sm:$0xf]
  %v1635 = vld [vmem:[%s4 + $0x3f4] sm:$0xf]
  %v1636 = vld [vmem:[%s4 + $0x3f8] sm:$0xf]
  %v1637 = vld [vmem:[%s4 + $0x3fc] sm:$0xf]
  %v1639 = vunpack.c.l.b16 %v1374
  %v1640 = vunpack.c.h.b16 %v1374
  %v1641 = vpack.c.b16 %v1639, %v1639
  %v1642 = vpack.c.b16 %v1640, %v1640
  %v1677 = vunpack.c.l.b16 %v1382
  %v1678 = vunpack.c.l.b16 %v1383
  %v1679 = vunpack.c.l.b16 %v1384
  %v1680 = vunpack.c.l.b16 %v1385
  %v1681 = vunpack.c.l.b16 %v1386
  %v1682 = vunpack.c.l.b16 %v1387
  %v1683 = vunpack.c.l.b16 %v1388
  %v1684 = vunpack.c.l.b16 %v1389
  %v1685 = vunpack.c.l.b16 %v1390
  %v1686 = vunpack.c.l.b16 %v1391
  %v1687 = vunpack.c.l.b16 %v1392
  %v1688 = vunpack.c.l.b16 %v1393
  %v1689 = vunpack.c.l.b16 %v1394
  %v1690 = vunpack.c.l.b16 %v1395
  %v1691 = vunpack.c.l.b16 %v1396
  %v1692 = vunpack.c.l.b16 %v1397
  %v1693 = vunpack.c.l.b16 %v1398
  %v1694 = vunpack.c.l.b16 %v1399
  %v1695 = vunpack.c.l.b16 %v1400
  %v1696 = vunpack.c.l.b16 %v1401
  %v1697 = vunpack.c.l.b16 %v1402
  %v1698 = vunpack.c.l.b16 %v1403
  %v1699 = vunpack.c.l.b16 %v1404
  %v1700 = vunpack.c.l.b16 %v1405
  %v1701 = vunpack.c.l.b16 %v1406
  %v1702 = vunpack.c.l.b16 %v1407
  %v1703 = vunpack.c.l.b16 %v1408
  %v1704 = vunpack.c.l.b16 %v1409
  %v1705 = vunpack.c.l.b16 %v1410
  %v1706 = vunpack.c.l.b16 %v1411
  %v1707 = vunpack.c.l.b16 %v1412
  %v1708 = vunpack.c.l.b16 %v1413
  %v1709 = vpack.c.b16 %v1678, %v1677
  %v1710 = vpack.c.b16 %v1680, %v1679
  %v1711 = vpack.c.b16 %v1682, %v1681
  %v1712 = vpack.c.b16 %v1684, %v1683
  %v1713 = vpack.c.b16 %v1686, %v1685
  %v1714 = vpack.c.b16 %v1688, %v1687
  %v1715 = vpack.c.b16 %v1690, %v1689
  %v1716 = vpack.c.b16 %v1692, %v1691
  %v1717 = vpack.c.b16 %v1694, %v1693
  %v1718 = vpack.c.b16 %v1696, %v1695
  %v1719 = vpack.c.b16 %v1698, %v1697
  %v1720 = vpack.c.b16 %v1700, %v1699
  %v1721 = vpack.c.b16 %v1702, %v1701
  %v1722 = vpack.c.b16 %v1704, %v1703
  %v1723 = vpack.c.b16 %v1706, %v1705
  %v1724 = vpack.c.b16 %v1708, %v1707
  %1741 = vmatpush.bf16.msra.mxu0 %v1716
  %1742 = vmatpush.bf16.msra.mxu0 %v1715
  %1743 = vmatpush.bf16.msra.mxu0 %v1714
  %1744 = vmatpush.bf16.msra.mxu0 %v1713
  %1745 = vmatpush.bf16.msra.mxu0 %v1712
  %1746 = vmatpush.bf16.msra.mxu0 %v1711
  %1747 = vmatpush.bf16.msra.mxu0 %v1710
  %1748 = vmatpush.bf16.msra.mxu0 %v1709
  %1749 = vmatmul.bf16.gmra.mxu0 %v1641
  %v1750 = vpop.f32.mrf.mxu0
  %v1751 = vadd.f32 0.0, %v1750
  %v1752 = vpop.f32.mrf.mxu0
  %1753 = vdwg.mxu0
  %1754 = vmatpush.bf16.msra.mxu0 %v1724
  %1755 = vmatpush.bf16.msra.mxu0 %v1723
  %1756 = vmatpush.bf16.msra.mxu0 %v1722
  %1757 = vmatpush.bf16.msra.mxu0 %v1721
  %1758 = vmatpush.bf16.msra.mxu0 %v1720
  %1759 = vmatpush.bf16.msra.mxu0 %v1719
  %1760 = vmatpush.bf16.msra.mxu0 %v1718
  %1761 = vmatpush.bf16.msra.mxu0 %v1717
  %1762 = vmatmul.bf16.gmra.mxu0 %v1642
  %v1763 = vpop.f32.mrf.mxu0
  %v1764 = vadd.f32 %v1751, %v1763
  %v1765 = vpop.f32.mrf.mxu0
  %1766 = vdwg.mxu0
  %v1768 = vunpack.c.l.b16 %v1375
  %v1769 = vunpack.c.h.b16 %v1375
  %v1770 = vpack.c.b16 %v1768, %v1768
  %v1771 = vpack.c.b16 %v1769, %v1769
  %v1806 = vunpack.c.l.b16 %v1414
  %v1807 = vunpack.c.l.b16 %v1415
  %v1808 = vunpack.c.l.b16 %v1416
  %v1809 = vunpack.c.l.b16 %v1417
  %v1810 = vunpack.c.l.b16 %v1418
  %v1811 = vunpack.c.l.b16 %v1419
  %v1812 = vunpack.c.l.b16 %v1420
  %v1813 = vunpack.c.l.b16 %v1421
  %v1814 = vunpack.c.l.b16 %v1422
  %v1815 = vunpack.c.l.b16 %v1423
  %v1816 = vunpack.c.l.b16 %v1424
  %v1817 = vunpack.c.l.b16 %v1425
  %v1818 = vunpack.c.l.b16 %v1426
  %v1819 = vunpack.c.l.b16 %v1427
  %v1820 = vunpack.c.l.b16 %v1428
  %v1821 = vunpack.c.l.b16 %v1429
  %v1822 = vunpack.c.l.b16 %v1430
  %v1823 = vunpack.c.l.b16 %v1431
  %v1824 = vunpack.c.l.b16 %v1432
  %v1825 = vunpack.c.l.b16 %v1433
  %v1826 = vunpack.c.l.b16 %v1434
  %v1827 = vunpack.c.l.b16 %v1435
  %v1828 = vunpack.c.l.b16 %v1436
  %v1829 = vunpack.c.l.b16 %v1437
  %v1830 = vunpack.c.l.b16 %v1438
  %v1831 = vunpack.c.l.b16 %v1439
  %v1832 = vunpack.c.l.b16 %v1440
  %v1833 = vunpack.c.l.b16 %v1441
  %v1834 = vunpack.c.l.b16 %v1442
  %v1835 = vunpack.c.l.b16 %v1443
  %v1836 = vunpack.c.l.b16 %v1444
  %v1837 = vunpack.c.l.b16 %v1445
  %v1838 = vpack.c.b16 %v1807, %v1806
  %v1839 = vpack.c.b16 %v1809, %v1808
  %v1840 = vpack.c.b16 %v1811, %v1810
  %v1841 = vpack.c.b16 %v1813, %v1812
  %v1842 = vpack.c.b16 %v1815, %v1814
  %v1843 = vpack.c.b16 %v1817, %v1816
  %v1844 = vpack.c.b16 %v1819, %v1818
  %v1845 = vpack.c.b16 %v1821, %v1820
  %v1846 = vpack.c.b16 %v1823, %v1822
  %v1847 = vpack.c.b16 %v1825, %v1824
  %v1848 = vpack.c.b16 %v1827, %v1826
  %v1849 = vpack.c.b16 %v1829, %v1828
  %v1850 = vpack.c.b16 %v1831, %v1830
  %v1851 = vpack.c.b16 %v1833, %v1832
  %v1852 = vpack.c.b16 %v1835, %v1834
  %v1853 = vpack.c.b16 %v1837, %v1836
  %1870 = vmatpush.bf16.msra.mxu0 %v1845
  %1871 = vmatpush.bf16.msra.mxu0 %v1844
  %1872 = vmatpush.bf16.msra.mxu0 %v1843
  %1873 = vmatpush.bf16.msra.mxu0 %v1842
  %1874 = vmatpush.bf16.msra.mxu0 %v1841
  %1875 = vmatpush.bf16.msra.mxu0 %v1840
  %1876 = vmatpush.bf16.msra.mxu0 %v1839
  %1877 = vmatpush.bf16.msra.mxu0 %v1838
  %1878 = vmatmul.bf16.gmra.mxu0 %v1770
  %v1879 = vpop.f32.mrf.mxu0
  %v1880 = vadd.f32 0.0, %v1879
  %v1881 = vpop.f32.mrf.mxu0
  %1882 = vdwg.mxu0
  %1883 = vmatpush.bf16.msra.mxu0 %v1853
  %1884 = vmatpush.bf16.msra.mxu0 %v1852
  %1885 = vmatpush.bf16.msra.mxu0 %v1851
  %1886 = vmatpush.bf16.msra.mxu0 %v1850
  %1887 = vmatpush.bf16.msra.mxu0 %v1849
  %1888 = vmatpush.bf16.msra.mxu0 %v1848
  %1889 = vmatpush.bf16.msra.mxu0 %v1847
  %1890 = vmatpush.bf16.msra.mxu0 %v1846
  %1891 = vmatmul.bf16.gmra.mxu0 %v1771
  %v1892 = vpop.f32.mrf.mxu0
  %v1893 = vadd.f32 %v1880, %v1892
  %v1894 = vpop.f32.mrf.mxu0
  %1895 = vdwg.mxu0
  %v1897 = vunpack.c.l.b16 %v1376
  %v1898 = vunpack.c.h.b16 %v1376
  %v1899 = vpack.c.b16 %v1897, %v1897
  %v1900 = vpack.c.b16 %v1898, %v1898
  %v1935 = vunpack.c.l.b16 %v1446
  %v1936 = vunpack.c.l.b16 %v1447
  %v1937 = vunpack.c.l.b16 %v1448
  %v1938 = vunpack.c.l.b16 %v1449
  %v1939 = vunpack.c.l.b16 %v1450
  %v1940 = vunpack.c.l.b16 %v1451
  %v1941 = vunpack.c.l.b16 %v1452
  %v1942 = vunpack.c.l.b16 %v1453
  %v1943 = vunpack.c.l.b16 %v1454
  %v1944 = vunpack.c.l.b16 %v1455
  %v1945 = vunpack.c.l.b16 %v1456
  %v1946 = vunpack.c.l.b16 %v1457
  %v1947 = vunpack.c.l.b16 %v1458
  %v1948 = vunpack.c.l.b16 %v1459
  %v1949 = vunpack.c.l.b16 %v1460
  %v1950 = vunpack.c.l.b16 %v1461
  %v1951 = vunpack.c.l.b16 %v1462
  %v1952 = vunpack.c.l.b16 %v1463
  %v1953 = vunpack.c.l.b16 %v1464
  %v1954 = vunpack.c.l.b16 %v1465
  %v1955 = vunpack.c.l.b16 %v1466
  %v1956 = vunpack.c.l.b16 %v1467
  %v1957 = vunpack.c.l.b16 %v1468
  %v1958 = vunpack.c.l.b16 %v1469
  %v1959 = vunpack.c.l.b16 %v1470
  %v1960 = vunpack.c.l.b16 %v1471
  %v1961 = vunpack.c.l.b16 %v1472
  %v1962 = vunpack.c.l.b16 %v1473
  %v1963 = vunpack.c.l.b16 %v1474
  %v1964 = vunpack.c.l.b16 %v1475
  %v1965 = vunpack.c.l.b16 %v1476
  %v1966 = vunpack.c.l.b16 %v1477
  %v1967 = vpack.c.b16 %v1936, %v1935
  %v1968 = vpack.c.b16 %v1938, %v1937
  %v1969 = vpack.c.b16 %v1940, %v1939
  %v1970 = vpack.c.b16 %v1942, %v1941
  %v1971 = vpack.c.b16 %v1944, %v1943
  %v1972 = vpack.c.b16 %v1946, %v1945
  %v1973 = vpack.c.b16 %v1948, %v1947
  %v1974 = vpack.c.b16 %v1950, %v1949
  %v1975 = vpack.c.b16 %v1952, %v1951
  %v1976 = vpack.c.b16 %v1954, %v1953
  %v1977 = vpack.c.b16 %v1956, %v1955
  %v1978 = vpack.c.b16 %v1958, %v1957
  %v1979 = vpack.c.b16 %v1960, %v1959
  %v1980 = vpack.c.b16 %v1962, %v1961
  %v1981 = vpack.c.b16 %v1964, %v1963
  %v1982 = vpack.c.b16 %v1966, %v1965
  %1999 = vmatpush.bf16.msra.mxu0 %v1974
  %2000 = vmatpush.bf16.msra.mxu0 %v1973
  %2001 = vmatpush.bf16.msra.mxu0 %v1972
  %2002 = vmatpush.bf16.msra.mxu0 %v1971
  %2003 = vmatpush.bf16.msra.mxu0 %v1970
  %2004 = vmatpush.bf16.msra.mxu0 %v1969
  %2005 = vmatpush.bf16.msra.mxu0 %v1968
  %2006 = vmatpush.bf16.msra.mxu0 %v1967
  %2007 = vmatmul.bf16.gmra.mxu0 %v1899
  %v2008 = vpop.f32.mrf.mxu0
  %v2009 = vadd.f32 0.0, %v2008
  %v2010 = vpop.f32.mrf.mxu0
  %2011 = vdwg.mxu0
  %2012 = vmatpush.bf16.msra.mxu0 %v1982
  %2013 = vmatpush.bf16.msra.mxu0 %v1981
  %2014 = vmatpush.bf16.msra.mxu0 %v1980
  %2015 = vmatpush.bf16.msra.mxu0 %v1979
  %2016 = vmatpush.bf16.msra.mxu0 %v1978
  %2017 = vmatpush.bf16.msra.mxu0 %v1977
  %2018 = vmatpush.bf16.msra.mxu0 %v1976
  %2019 = vmatpush.bf16.msra.mxu0 %v1975
  %2020 = vmatmul.bf16.gmra.mxu0 %v1900
  %v2021 = vpop.f32.mrf.mxu0
  %v2022 = vadd.f32 %v2009, %v2021
  %v2023 = vpop.f32.mrf.mxu0
  %2024 = vdwg.mxu0
  %v2026 = vunpack.c.l.b16 %v1377
  %v2027 = vunpack.c.h.b16 %v1377
  %v2028 = vpack.c.b16 %v2026, %v2026
  %v2029 = vpack.c.b16 %v2027, %v2027
  %v2064 = vunpack.c.l.b16 %v1478
  %v2065 = vunpack.c.l.b16 %v1479
  %v2066 = vunpack.c.l.b16 %v1480
  %v2067 = vunpack.c.l.b16 %v1481
  %v2068 = vunpack.c.l.b16 %v1482
  %v2069 = vunpack.c.l.b16 %v1483
  %v2070 = vunpack.c.l.b16 %v1484
  %v2071 = vunpack.c.l.b16 %v1485
  %v2072 = vunpack.c.l.b16 %v1486
  %v2073 = vunpack.c.l.b16 %v1487
  %v2074 = vunpack.c.l.b16 %v1488
  %v2075 = vunpack.c.l.b16 %v1489
  %v2076 = vunpack.c.l.b16 %v1490
  %v2077 = vunpack.c.l.b16 %v1491
  %v2078 = vunpack.c.l.b16 %v1492
  %v2079 = vunpack.c.l.b16 %v1493
  %v2080 = vunpack.c.l.b16 %v1494
  %v2081 = vunpack.c.l.b16 %v1495
  %v2082 = vunpack.c.l.b16 %v1496
  %v2083 = vunpack.c.l.b16 %v1497
  %v2084 = vunpack.c.l.b16 %v1498
  %v2085 = vunpack.c.l.b16 %v1499
  %v2086 = vunpack.c.l.b16 %v1500
  %v2087 = vunpack.c.l.b16 %v1501
  %v2088 = vunpack.c.l.b16 %v1502
  %v2089 = vunpack.c.l.b16 %v1503
  %v2090 = vunpack.c.l.b16 %v1504
  %v2091 = vunpack.c.l.b16 %v1505
  %v2092 = vunpack.c.l.b16 %v1506
  %v2093 = vunpack.c.l.b16 %v1507
  %v2094 = vunpack.c.l.b16 %v1508
  %v2095 = vunpack.c.l.b16 %v1509
  %v2096 = vpack.c.b16 %v2065, %v2064
  %v2097 = vpack.c.b16 %v2067, %v2066
  %v2098 = vpack.c.b16 %v2069, %v2068
  %v2099 = vpack.c.b16 %v2071, %v2070
  %v2100 = vpack.c.b16 %v2073, %v2072
  %v2101 = vpack.c.b16 %v2075, %v2074
  %v2102 = vpack.c.b16 %v2077, %v2076
  %v2103 = vpack.c.b16 %v2079, %v2078
  %v2104 = vpack.c.b16 %v2081, %v2080
  %v2105 = vpack.c.b16 %v2083, %v2082
  %v2106 = vpack.c.b16 %v2085, %v2084
  %v2107 = vpack.c.b16 %v2087, %v2086
  %v2108 = vpack.c.b16 %v2089, %v2088
  %v2109 = vpack.c.b16 %v2091, %v2090
  %v2110 = vpack.c.b16 %v2093, %v2092
  %v2111 = vpack.c.b16 %v2095, %v2094
  %2128 = vmatpush.bf16.msra.mxu0 %v2103
  %2129 = vmatpush.bf16.msra.mxu0 %v2102
  %2130 = vmatpush.bf16.msra.mxu0 %v2101
  %2131 = vmatpush.bf16.msra.mxu0 %v2100
  %2132 = vmatpush.bf16.msra.mxu0 %v2099
  %2133 = vmatpush.bf16.msra.mxu0 %v2098
  %2134 = vmatpush.bf16.msra.mxu0 %v2097
  %2135 = vmatpush.bf16.msra.mxu0 %v2096
  %2136 = vmatmul.bf16.gmra.mxu0 %v2028
  %v2137 = vpop.f32.mrf.mxu0
  %v2138 = vadd.f32 0.0, %v2137
  %v2139 = vpop.f32.mrf.mxu0
  %2140 = vdwg.mxu0
  %2141 = vmatpush.bf16.msra.mxu0 %v2111
  %2142 = vmatpush.bf16.msra.mxu0 %v2110
  %2143 = vmatpush.bf16.msra.mxu0 %v2109
  %2144 = vmatpush.bf16.msra.mxu0 %v2108
  %2145 = vmatpush.bf16.msra.mxu0 %v2107
  %2146 = vmatpush.bf16.msra.mxu0 %v2106
  %2147 = vmatpush.bf16.msra.mxu0 %v2105
  %2148 = vmatpush.bf16.msra.mxu0 %v2104
  %2149 = vmatmul.bf16.gmra.mxu0 %v2029
  %v2150 = vpop.f32.mrf.mxu0
  %v2151 = vadd.f32 %v2138, %v2150
  %v2152 = vpop.f32.mrf.mxu0
  %2153 = vdwg.mxu0
  %v2155 = vunpack.c.l.b16 %v1378
  %v2156 = vunpack.c.h.b16 %v1378
  %v2157 = vpack.c.b16 %v2155, %v2155
  %v2158 = vpack.c.b16 %v2156, %v2156
  %v2193 = vunpack.c.l.b16 %v1510
  %v2194 = vunpack.c.l.b16 %v1511
  %v2195 = vunpack.c.l.b16 %v1512
  %v2196 = vunpack.c.l.b16 %v1513
  %v2197 = vunpack.c.l.b16 %v1514
  %v2198 = vunpack.c.l.b16 %v1515
  %v2199 = vunpack.c.l.b16 %v1516
  %v2200 = vunpack.c.l.b16 %v1517
  %v2201 = vunpack.c.l.b16 %v1518
  %v2202 = vunpack.c.l.b16 %v1519
  %v2203 = vunpack.c.l.b16 %v1520
  %v2204 = vunpack.c.l.b16 %v1521
  %v2205 = vunpack.c.l.b16 %v1522
  %v2206 = vunpack.c.l.b16 %v1523
  %v2207 = vunpack.c.l.b16 %v1524
  %v2208 = vunpack.c.l.b16 %v1525
  %v2209 = vunpack.c.l.b16 %v1526
  %v2210 = vunpack.c.l.b16 %v1527
  %v2211 = vunpack.c.l.b16 %v1528
  %v2212 = vunpack.c.l.b16 %v1529
  %v2213 = vunpack.c.l.b16 %v1530
  %v2214 = vunpack.c.l.b16 %v1531
  %v2215 = vunpack.c.l.b16 %v1532
  %v2216 = vunpack.c.l.b16 %v1533
  %v2217 = vunpack.c.l.b16 %v1534
  %v2218 = vunpack.c.l.b16 %v1535
  %v2219 = vunpack.c.l.b16 %v1536
  %v2220 = vunpack.c.l.b16 %v1537
  %v2221 = vunpack.c.l.b16 %v1538
  %v2222 = vunpack.c.l.b16 %v1539
  %v2223 = vunpack.c.l.b16 %v1540
  %v2224 = vunpack.c.l.b16 %v1541
  %v2225 = vpack.c.b16 %v2194, %v2193
  %v2226 = vpack.c.b16 %v2196, %v2195
  %v2227 = vpack.c.b16 %v2198, %v2197
  %v2228 = vpack.c.b16 %v2200, %v2199
  %v2229 = vpack.c.b16 %v2202, %v2201
  %v2230 = vpack.c.b16 %v2204, %v2203
  %v2231 = vpack.c.b16 %v2206, %v2205
  %v2232 = vpack.c.b16 %v2208, %v2207
  %v2233 = vpack.c.b16 %v2210, %v2209
  %v2234 = vpack.c.b16 %v2212, %v2211
  %v2235 = vpack.c.b16 %v2214, %v2213
  %v2236 = vpack.c.b16 %v2216, %v2215
  %v2237 = vpack.c.b16 %v2218, %v2217
  %v2238 = vpack.c.b16 %v2220, %v2219
  %v2239 = vpack.c.b16 %v2222, %v2221
  %v2240 = vpack.c.b16 %v2224, %v2223
  %2257 = vmatpush.bf16.msra.mxu0 %v2232
  %2258 = vmatpush.bf16.msra.mxu0 %v2231
  %2259 = vmatpush.bf16.msra.mxu0 %v2230
  %2260 = vmatpush.bf16.msra.mxu0 %v2229
  %2261 = vmatpush.bf16.msra.mxu0 %v2228
  %2262 = vmatpush.bf16.msra.mxu0 %v2227
  %2263 = vmatpush.bf16.msra.mxu0 %v2226
  %2264 = vmatpush.bf16.msra.mxu0 %v2225
  %2265 = vmatmul.bf16.gmra.mxu0 %v2157
  %v2266 = vpop.f32.mrf.mxu0
  %v2267 = vadd.f32 0.0, %v2266
  %v2268 = vpop.f32.mrf.mxu0
  %2269 = vdwg.mxu0
  %2270 = vmatpush.bf16.msra.mxu0 %v2240
  %2271 = vmatpush.bf16.msra.mxu0 %v2239
  %2272 = vmatpush.bf16.msra.mxu0 %v2238
  %2273 = vmatpush.bf16.msra.mxu0 %v2237
  %2274 = vmatpush.bf16.msra.mxu0 %v2236
  %2275 = vmatpush.bf16.msra.mxu0 %v2235
  %2276 = vmatpush.bf16.msra.mxu0 %v2234
  %2277 = vmatpush.bf16.msra.mxu0 %v2233
  %2278 = vmatmul.bf16.gmra.mxu0 %v2158
  %v2279 = vpop.f32.mrf.mxu0
  %v2280 = vadd.f32 %v2267, %v2279
  %v2281 = vpop.f32.mrf.mxu0
  %2282 = vdwg.mxu0
  %v2284 = vunpack.c.l.b16 %v1379
  %v2285 = vunpack.c.h.b16 %v1379
  %v2286 = vpack.c.b16 %v2284, %v2284
  %v2287 = vpack.c.b16 %v2285, %v2285
  %v2322 = vunpack.c.l.b16 %v1542
  %v2323 = vunpack.c.l.b16 %v1543
  %v2324 = vunpack.c.l.b16 %v1544
  %v2325 = vunpack.c.l.b16 %v1545
  %v2326 = vunpack.c.l.b16 %v1546
  %v2327 = vunpack.c.l.b16 %v1547
  %v2328 = vunpack.c.l.b16 %v1548
  %v2329 = vunpack.c.l.b16 %v1549
  %v2330 = vunpack.c.l.b16 %v1550
  %v2331 = vunpack.c.l.b16 %v1551
  %v2332 = vunpack.c.l.b16 %v1552
  %v2333 = vunpack.c.l.b16 %v1553
  %v2334 = vunpack.c.l.b16 %v1554
  %v2335 = vunpack.c.l.b16 %v1555
  %v2336 = vunpack.c.l.b16 %v1556
  %v2337 = vunpack.c.l.b16 %v1557
  %v2338 = vunpack.c.l.b16 %v1558
  %v2339 = vunpack.c.l.b16 %v1559
  %v2340 = vunpack.c.l.b16 %v1560
  %v2341 = vunpack.c.l.b16 %v1561
  %v2342 = vunpack.c.l.b16 %v1562
  %v2343 = vunpack.c.l.b16 %v1563
  %v2344 = vunpack.c.l.b16 %v1564
  %v2345 = vunpack.c.l.b16 %v1565
  %v2346 = vunpack.c.l.b16 %v1566
  %v2347 = vunpack.c.l.b16 %v1567
  %v2348 = vunpack.c.l.b16 %v1568
  %v2349 = vunpack.c.l.b16 %v1569
  %v2350 = vunpack.c.l.b16 %v1570
  %v2351 = vunpack.c.l.b16 %v1571
  %v2352 = vunpack.c.l.b16 %v1572
  %v2353 = vunpack.c.l.b16 %v1573
  %v2354 = vpack.c.b16 %v2323, %v2322
  %v2355 = vpack.c.b16 %v2325, %v2324
  %v2356 = vpack.c.b16 %v2327, %v2326
  %v2357 = vpack.c.b16 %v2329, %v2328
  %v2358 = vpack.c.b16 %v2331, %v2330
  %v2359 = vpack.c.b16 %v2333, %v2332
  %v2360 = vpack.c.b16 %v2335, %v2334
  %v2361 = vpack.c.b16 %v2337, %v2336
  %v2362 = vpack.c.b16 %v2339, %v2338
  %v2363 = vpack.c.b16 %v2341, %v2340
  %v2364 = vpack.c.b16 %v2343, %v2342
  %v2365 = vpack.c.b16 %v2345, %v2344
  %v2366 = vpack.c.b16 %v2347, %v2346
  %v2367 = vpack.c.b16 %v2349, %v2348
  %v2368 = vpack.c.b16 %v2351, %v2350
  %v2369 = vpack.c.b16 %v2353, %v2352
  %2386 = vmatpush.bf16.msra.mxu0 %v2361
  %2387 = vmatpush.bf16.msra.mxu0 %v2360
  %2388 = vmatpush.bf16.msra.mxu0 %v2359
  %2389 = vmatpush.bf16.msra.mxu0 %v2358
  %2390 = vmatpush.bf16.msra.mxu0 %v2357
  %2391 = vmatpush.bf16.msra.mxu0 %v2356
  %2392 = vmatpush.bf16.msra.mxu0 %v2355
  %2393 = vmatpush.bf16.msra.mxu0 %v2354
  %2394 = vmatmul.bf16.gmra.mxu0 %v2286
  %v2395 = vpop.f32.mrf.mxu0
  %v2396 = vadd.f32 0.0, %v2395
  %v2397 = vpop.f32.mrf.mxu0
  %2398 = vdwg.mxu0
  %2399 = vmatpush.bf16.msra.mxu0 %v2369
  %2400 = vmatpush.bf16.msra.mxu0 %v2368
  %2401 = vmatpush.bf16.msra.mxu0 %v2367
  %2402 = vmatpush.bf16.msra.mxu0 %v2366
  %2403 = vmatpush.bf16.msra.mxu0 %v2365
  %2404 = vmatpush.bf16.msra.mxu0 %v2364
  %2405 = vmatpush.bf16.msra.mxu0 %v2363
  %2406 = vmatpush.bf16.msra.mxu0 %v2362
  %2407 = vmatmul.bf16.gmra.mxu0 %v2287
  %v2408 = vpop.f32.mrf.mxu0
  %v2409 = vadd.f32 %v2396, %v2408
  %v2410 = vpop.f32.mrf.mxu0
  %2411 = vdwg.mxu0
  %v2413 = vunpack.c.l.b16 %v1380
  %v2414 = vunpack.c.h.b16 %v1380
  %v2415 = vpack.c.b16 %v2413, %v2413
  %v2416 = vpack.c.b16 %v2414, %v2414
  %v2451 = vunpack.c.l.b16 %v1574
  %v2452 = vunpack.c.l.b16 %v1575
  %v2453 = vunpack.c.l.b16 %v1576
  %v2454 = vunpack.c.l.b16 %v1577
  %v2455 = vunpack.c.l.b16 %v1578
  %v2456 = vunpack.c.l.b16 %v1579
  %v2457 = vunpack.c.l.b16 %v1580
  %v2458 = vunpack.c.l.b16 %v1581
  %v2459 = vunpack.c.l.b16 %v1582
  %v2460 = vunpack.c.l.b16 %v1583
  %v2461 = vunpack.c.l.b16 %v1584
  %v2462 = vunpack.c.l.b16 %v1585
  %v2463 = vunpack.c.l.b16 %v1586
  %v2464 = vunpack.c.l.b16 %v1587
  %v2465 = vunpack.c.l.b16 %v1588
  %v2466 = vunpack.c.l.b16 %v1589
  %v2467 = vunpack.c.l.b16 %v1590
  %v2468 = vunpack.c.l.b16 %v1591
  %v2469 = vunpack.c.l.b16 %v1592
  %v2470 = vunpack.c.l.b16 %v1593
  %v2471 = vunpack.c.l.b16 %v1594
  %v2472 = vunpack.c.l.b16 %v1595
  %v2473 = vunpack.c.l.b16 %v1596
  %v2474 = vunpack.c.l.b16 %v1597
  %v2475 = vunpack.c.l.b16 %v1598
  %v2476 = vunpack.c.l.b16 %v1599
  %v2477 = vunpack.c.l.b16 %v1600
  %v2478 = vunpack.c.l.b16 %v1601
  %v2479 = vunpack.c.l.b16 %v1602
  %v2480 = vunpack.c.l.b16 %v1603
  %v2481 = vunpack.c.l.b16 %v1604
  %v2482 = vunpack.c.l.b16 %v1605
  %v2483 = vpack.c.b16 %v2452, %v2451
  %v2484 = vpack.c.b16 %v2454, %v2453
  %v2485 = vpack.c.b16 %v2456, %v2455
  %v2486 = vpack.c.b16 %v2458, %v2457
  %v2487 = vpack.c.b16 %v2460, %v2459
  %v2488 = vpack.c.b16 %v2462, %v2461
  %v2489 = vpack.c.b16 %v2464, %v2463
  %v2490 = vpack.c.b16 %v2466, %v2465
  %v2491 = vpack.c.b16 %v2468, %v2467
  %v2492 = vpack.c.b16 %v2470, %v2469
  %v2493 = vpack.c.b16 %v2472, %v2471
  %v2494 = vpack.c.b16 %v2474, %v2473
  %v2495 = vpack.c.b16 %v2476, %v2475
  %v2496 = vpack.c.b16 %v2478, %v2477
  %v2497 = vpack.c.b16 %v2480, %v2479
  %v2498 = vpack.c.b16 %v2482, %v2481
  %2515 = vmatpush.bf16.msra.mxu0 %v2490
  %2516 = vmatpush.bf16.msra.mxu0 %v2489
  %2517 = vmatpush.bf16.msra.mxu0 %v2488
  %2518 = vmatpush.bf16.msra.mxu0 %v2487
  %2519 = vmatpush.bf16.msra.mxu0 %v2486
  %2520 = vmatpush.bf16.msra.mxu0 %v2485
  %2521 = vmatpush.bf16.msra.mxu0 %v2484
  %2522 = vmatpush.bf16.msra.mxu0 %v2483
  %2523 = vmatmul.bf16.gmra.mxu0 %v2415
  %v2524 = vpop.f32.mrf.mxu0
  %v2525 = vadd.f32 0.0, %v2524
  %v2526 = vpop.f32.mrf.mxu0
  %2527 = vdwg.mxu0
  %2528 = vmatpush.bf16.msra.mxu0 %v2498
  %2529 = vmatpush.bf16.msra.mxu0 %v2497
  %2530 = vmatpush.bf16.msra.mxu0 %v2496
  %2531 = vmatpush.bf16.msra.mxu0 %v2495
  %2532 = vmatpush.bf16.msra.mxu0 %v2494
  %2533 = vmatpush.bf16.msra.mxu0 %v2493
  %2534 = vmatpush.bf16.msra.mxu0 %v2492
  %2535 = vmatpush.bf16.msra.mxu0 %v2491
  %2536 = vmatmul.bf16.gmra.mxu0 %v2416
  %v2537 = vpop.f32.mrf.mxu0
  %v2538 = vadd.f32 %v2525, %v2537
  %v2539 = vpop.f32.mrf.mxu0
  %2540 = vdwg.mxu0
  %v2542 = vunpack.c.l.b16 %v1381
  %v2543 = vunpack.c.h.b16 %v1381
  %v2544 = vpack.c.b16 %v2542, %v2542
  %v2545 = vpack.c.b16 %v2543, %v2543
  %v2580 = vunpack.c.l.b16 %v1606
  %v2581 = vunpack.c.l.b16 %v1607
  %v2582 = vunpack.c.l.b16 %v1608
  %v2583 = vunpack.c.l.b16 %v1609
  %v2584 = vunpack.c.l.b16 %v1610
  %v2585 = vunpack.c.l.b16 %v1611
  %v2586 = vunpack.c.l.b16 %v1612
  %v2587 = vunpack.c.l.b16 %v1613
  %v2588 = vunpack.c.l.b16 %v1614
  %v2589 = vunpack.c.l.b16 %v1615
  %v2590 = vunpack.c.l.b16 %v1616
  %v2591 = vunpack.c.l.b16 %v1617
  %v2592 = vunpack.c.l.b16 %v1618
  %v2593 = vunpack.c.l.b16 %v1619
  %v2594 = vunpack.c.l.b16 %v1620
  %v2595 = vunpack.c.l.b16 %v1621
  %v2596 = vunpack.c.l.b16 %v1622
  %v2597 = vunpack.c.l.b16 %v1623
  %v2598 = vunpack.c.l.b16 %v1624
  %v2599 = vunpack.c.l.b16 %v1625
  %v2600 = vunpack.c.l.b16 %v1626
  %v2601 = vunpack.c.l.b16 %v1627
  %v2602 = vunpack.c.l.b16 %v1628
  %v2603 = vunpack.c.l.b16 %v1629
  %v2604 = vunpack.c.l.b16 %v1630
  %v2605 = vunpack.c.l.b16 %v1631
  %v2606 = vunpack.c.l.b16 %v1632
  %v2607 = vunpack.c.l.b16 %v1633
  %v2608 = vunpack.c.l.b16 %v1634
  %v2609 = vunpack.c.l.b16 %v1635
  %v2610 = vunpack.c.l.b16 %v1636
  %v2611 = vunpack.c.l.b16 %v1637
  %v2612 = vpack.c.b16 %v2581, %v2580
  %v2613 = vpack.c.b16 %v2583, %v2582
  %v2614 = vpack.c.b16 %v2585, %v2584
  %v2615 = vpack.c.b16 %v2587, %v2586
  %v2616 = vpack.c.b16 %v2589, %v2588
  %v2617 = vpack.c.b16 %v2591, %v2590
  %v2618 = vpack.c.b16 %v2593, %v2592
  %v2619 = vpack.c.b16 %v2595, %v2594
  %v2620 = vpack.c.b16 %v2597, %v2596
  %v2621 = vpack.c.b16 %v2599, %v2598
  %v2622 = vpack.c.b16 %v2601, %v2600
  %v2623 = vpack.c.b16 %v2603, %v2602
  %v2624 = vpack.c.b16 %v2605, %v2604
  %v2625 = vpack.c.b16 %v2607, %v2606
  %v2626 = vpack.c.b16 %v2609, %v2608
  %v2627 = vpack.c.b16 %v2611, %v2610
  %2644 = vmatpush.bf16.msra.mxu0 %v2619
  %2645 = vmatpush.bf16.msra.mxu0 %v2618
  %2646 = vmatpush.bf16.msra.mxu0 %v2617
  %2647 = vmatpush.bf16.msra.mxu0 %v2616
  %2648 = vmatpush.bf16.msra.mxu0 %v2615
  %2649 = vmatpush.bf16.msra.mxu0 %v2614
  %2650 = vmatpush.bf16.msra.mxu0 %v2613
  %2651 = vmatpush.bf16.msra.mxu0 %v2612
  %2652 = vmatmul.bf16.gmra.mxu0 %v2544
  %v2653 = vpop.f32.mrf.mxu0
  %v2654 = vadd.f32 0.0, %v2653
  %v2655 = vpop.f32.mrf.mxu0
  %2656 = vdwg.mxu0
  %2657 = vmatpush.bf16.msra.mxu0 %v2627
  %2658 = vmatpush.bf16.msra.mxu0 %v2626
  %2659 = vmatpush.bf16.msra.mxu0 %v2625
  %2660 = vmatpush.bf16.msra.mxu0 %v2624
  %2661 = vmatpush.bf16.msra.mxu0 %v2623
  %2662 = vmatpush.bf16.msra.mxu0 %v2622
  %2663 = vmatpush.bf16.msra.mxu0 %v2621
  %2664 = vmatpush.bf16.msra.mxu0 %v2620
  %2665 = vmatmul.bf16.gmra.mxu0 %v2545
  %v2666 = vpop.f32.mrf.mxu0
  %v2667 = vadd.f32 %v2654, %v2666
  %v2668 = vpop.f32.mrf.mxu0
  %2669 = vdwg.mxu0
  %vm2670 = vcmask 254976
  %v2671 = vsel %vm2670, %v1764, 0.0
  %v2672 = vsel %vm2670, %v1893, 0.0
  %v2673 = vadd.f32 %v2671, %v2672
  %v2674 = vsel %vm2670, %v2022, 0.0
  %v2675 = vadd.f32 %v2673, %v2674
  %v2676 = vsel %vm2670, %v2151, 0.0
  %v2677 = vadd.f32 %v2675, %v2676
  %v2678 = vsel %vm2670, %v2280, 0.0
  %v2679 = vadd.f32 %v2677, %v2678
  %v2680 = vsel %vm2670, %v2409, 0.0
  %v2681 = vadd.f32 %v2679, %v2680
  %v2682 = vsel %vm2670, %v2538, 0.0
  %v2683 = vadd.f32 %v2681, %v2682
  %v2684 = vsel %vm2670, %v2667, 0.0
  %v2685 = vadd.f32 %v2683, %v2684
  %v2686 = vld [vmem:[%s5] sm:$0x1]
  %v2688 = vperm.slane %v2686, 0
  %v2690 = vadd.f32 %v2685, %v2688
  %2691 = vst.msk [vmem:[%s12] sm:$0x3] %vm2670, %v2690
  %v2692 = vmul.f32 %v2690, 0.5
  %v2693 = vmul.f32 %v2692, 1.442695
  %v2694 = vpow.pop %v2693
  %v2695 = vld [vmem:[%s6] sm:$0x3]
  %2697 = vrot.lane.b32.xlu0 %v2695, 16
  %v2698 = vpop.permute.xlu0 %2697
  %v2700 = vmul.f32 %v2694, %v2698
  %2702 = vrot.lane.b32.xlu0 %v2700, 112
  %v2703 = vpop.permute.xlu0 %2702
  %v2705 = vadd.f32 %v2690, %v2703
  %v2706 = vpack.c.bf16 %v2705, %v2705
  %v2707 = vld [vmem:[%s7] sm:$0xff]
  %v2708 = vld [vmem:[%s7 + $0x8] sm:$0xff]
  %v2709 = vld [vmem:[%s7 + $0x10] sm:$0xff]
  %v2710 = vld [vmem:[%s7 + $0x18] sm:$0xff]
  %v2711 = vld [vmem:[%s7 + $0x20] sm:$0xff]
  %v2712 = vld [vmem:[%s7 + $0x28] sm:$0xff]
  %v2713 = vld [vmem:[%s7 + $0x30] sm:$0xff]
  %v2714 = vld [vmem:[%s7 + $0x38] sm:$0xff]
  %v2715 = vld [vmem:[%s7 + $0x40] sm:$0xff]
  %v2716 = vld [vmem:[%s7 + $0x48] sm:$0xff]
  %v2717 = vld [vmem:[%s7 + $0x50] sm:$0xff]
  %v2718 = vld [vmem:[%s7 + $0x58] sm:$0xff]
  %v2719 = vld [vmem:[%s7 + $0x60] sm:$0xff]
  %v2720 = vld [vmem:[%s7 + $0x68] sm:$0xff]
  %v2721 = vld [vmem:[%s7 + $0x70] sm:$0xff]
  %v2722 = vld [vmem:[%s7 + $0x78] sm:$0xff]
  %v2723 = vld [vmem:[%s8] sm:$0x3]
  %v2724 = vld [vmem:[%s8 + $0x2] sm:$0x3]
  %v2725 = vld [vmem:[%s8 + $0x4] sm:$0x3]
  %v2726 = vld [vmem:[%s8 + $0x6] sm:$0x3]
  %v2727 = vld [vmem:[%s8 + $0x8] sm:$0x3]
  %v2728 = vld [vmem:[%s8 + $0xa] sm:$0x3]
  %v2729 = vld [vmem:[%s8 + $0xc] sm:$0x3]
  %v2730 = vld [vmem:[%s8 + $0xe] sm:$0x3]
  %v2739 = vperm.slane %v2723, 0
  %v2740 = vperm.slane %v2723, 1
  %v2741 = vperm.slane %v2724, 0
  %v2742 = vperm.slane %v2724, 1
  %v2743 = vperm.slane %v2725, 0
  %v2744 = vperm.slane %v2725, 1
  %v2745 = vperm.slane %v2726, 0
  %v2746 = vperm.slane %v2726, 1
  %v2747 = vperm.slane %v2727, 0
  %v2748 = vperm.slane %v2727, 1
  %v2749 = vperm.slane %v2728, 0
  %v2750 = vperm.slane %v2728, 1
  %v2751 = vperm.slane %v2729, 0
  %v2752 = vperm.slane %v2729, 1
  %v2753 = vperm.slane %v2730, 0
  %v2754 = vperm.slane %v2730, 1
  %v2773 = vunpack.c.l.b16 %v2707
  %v2774 = vunpack.c.h.b16 %v2707
  %v2775 = vunpack.c.l.b16 %v2708
  %v2776 = vunpack.c.h.b16 %v2708
  %v2777 = vpack.c.b16 %v2775, %v2773
  %v2778 = vpack.c.b16 %v2776, %v2774
  %v2782 = vsel %vm223, %v2706, 0
  %2784 = vmatpush.bf16.msra.mxu0 0
  %2785 = vmatpush.bf16.msra.mxu0 0
  %2786 = vmatpush.bf16.msra.mxu0 0
  %2787 = vmatpush.bf16.msra.mxu0 0
  %2788 = vmatpush.bf16.msra.mxu0 0
  %2789 = vmatpush.bf16.msra.mxu0 0
  %2790 = vmatpush.bf16.msra.mxu0 0
  %2791 = vmatpush.bf16.msra.mxu0 %v2777
  %2792 = vmatmul.bf16.gmra.mxu0 %v2782
  %v2793 = vpop.f32.mrf.mxu0
  %v2794 = vadd.f32 %v2739, %v2793
  %v2795 = vpop.f32.mrf.mxu0
  %2796 = vdwg.mxu0
  %2797 = vmatpush.bf16.msra.mxu0 0
  %2798 = vmatpush.bf16.msra.mxu0 0
  %2799 = vmatpush.bf16.msra.mxu0 0
  %2800 = vmatpush.bf16.msra.mxu0 0
  %2801 = vmatpush.bf16.msra.mxu0 0
  %2802 = vmatpush.bf16.msra.mxu0 0
  %2803 = vmatpush.bf16.msra.mxu0 0
  %2804 = vmatpush.bf16.msra.mxu0 %v2778
  %2805 = vmatmul.bf16.gmra.mxu0 %v2782
  %v2806 = vpop.f32.mrf.mxu0
  %v2807 = vadd.f32 %v2740, %v2806
  %v2808 = vpop.f32.mrf.mxu0
  %2809 = vdwg.mxu0
  %v2812 = vunpack.c.l.b16 %v2709
  %v2813 = vunpack.c.h.b16 %v2709
  %v2814 = vunpack.c.l.b16 %v2710
  %v2815 = vunpack.c.h.b16 %v2710
  %v2816 = vpack.c.b16 %v2814, %v2812
  %v2817 = vpack.c.b16 %v2815, %v2813
  %2820 = vmatpush.bf16.msra.mxu0 0
  %2821 = vmatpush.bf16.msra.mxu0 0
  %2822 = vmatpush.bf16.msra.mxu0 0
  %2823 = vmatpush.bf16.msra.mxu0 0
  %2824 = vmatpush.bf16.msra.mxu0 0
  %2825 = vmatpush.bf16.msra.mxu0 0
  %2826 = vmatpush.bf16.msra.mxu0 0
  %2827 = vmatpush.bf16.msra.mxu0 %v2816
  %2828 = vmatmul.bf16.gmra.mxu0 %v2782
  %v2829 = vpop.f32.mrf.mxu0
  %v2830 = vadd.f32 %v2741, %v2829
  %v2831 = vpop.f32.mrf.mxu0
  %2832 = vdwg.mxu0
  %2833 = vmatpush.bf16.msra.mxu0 0
  %2834 = vmatpush.bf16.msra.mxu0 0
  %2835 = vmatpush.bf16.msra.mxu0 0
  %2836 = vmatpush.bf16.msra.mxu0 0
  %2837 = vmatpush.bf16.msra.mxu0 0
  %2838 = vmatpush.bf16.msra.mxu0 0
  %2839 = vmatpush.bf16.msra.mxu0 0
  %2840 = vmatpush.bf16.msra.mxu0 %v2817
  %2841 = vmatmul.bf16.gmra.mxu0 %v2782
  %v2842 = vpop.f32.mrf.mxu0
  %v2843 = vadd.f32 %v2742, %v2842
  %v2844 = vpop.f32.mrf.mxu0
  %2845 = vdwg.mxu0
  %v2848 = vunpack.c.l.b16 %v2711
  %v2849 = vunpack.c.h.b16 %v2711
  %v2850 = vunpack.c.l.b16 %v2712
  %v2851 = vunpack.c.h.b16 %v2712
  %v2852 = vpack.c.b16 %v2850, %v2848
  %v2853 = vpack.c.b16 %v2851, %v2849
  %2856 = vmatpush.bf16.msra.mxu0 0
  %2857 = vmatpush.bf16.msra.mxu0 0
  %2858 = vmatpush.bf16.msra.mxu0 0
  %2859 = vmatpush.bf16.msra.mxu0 0
  %2860 = vmatpush.bf16.msra.mxu0 0
  %2861 = vmatpush.bf16.msra.mxu0 0
  %2862 = vmatpush.bf16.msra.mxu0 0
  %2863 = vmatpush.bf16.msra.mxu0 %v2852
  %2864 = vmatmul.bf16.gmra.mxu0 %v2782
  %v2865 = vpop.f32.mrf.mxu0
  %v2866 = vadd.f32 %v2743, %v2865
  %v2867 = vpop.f32.mrf.mxu0
  %2868 = vdwg.mxu0
  %2869 = vmatpush.bf16.msra.mxu0 0
  %2870 = vmatpush.bf16.msra.mxu0 0
  %2871 = vmatpush.bf16.msra.mxu0 0
  %2872 = vmatpush.bf16.msra.mxu0 0
  %2873 = vmatpush.bf16.msra.mxu0 0
  %2874 = vmatpush.bf16.msra.mxu0 0
  %2875 = vmatpush.bf16.msra.mxu0 0
  %2876 = vmatpush.bf16.msra.mxu0 %v2853
  %2877 = vmatmul.bf16.gmra.mxu0 %v2782
  %v2878 = vpop.f32.mrf.mxu0
  %v2879 = vadd.f32 %v2744, %v2878
  %v2880 = vpop.f32.mrf.mxu0
  %2881 = vdwg.mxu0
  %v2884 = vunpack.c.l.b16 %v2713
  %v2885 = vunpack.c.h.b16 %v2713
  %v2886 = vunpack.c.l.b16 %v2714
  %v2887 = vunpack.c.h.b16 %v2714
  %v2888 = vpack.c.b16 %v2886, %v2884
  %v2889 = vpack.c.b16 %v2887, %v2885
  %2892 = vmatpush.bf16.msra.mxu0 0
  %2893 = vmatpush.bf16.msra.mxu0 0
  %2894 = vmatpush.bf16.msra.mxu0 0
  %2895 = vmatpush.bf16.msra.mxu0 0
  %2896 = vmatpush.bf16.msra.mxu0 0
  %2897 = vmatpush.bf16.msra.mxu0 0
  %2898 = vmatpush.bf16.msra.mxu0 0
  %2899 = vmatpush.bf16.msra.mxu0 %v2888
  %2900 = vmatmul.bf16.gmra.mxu0 %v2782
  %v2901 = vpop.f32.mrf.mxu0
  %v2902 = vadd.f32 %v2745, %v2901
  %v2903 = vpop.f32.mrf.mxu0
  %2904 = vdwg.mxu0
  %2905 = vmatpush.bf16.msra.mxu0 0
  %2906 = vmatpush.bf16.msra.mxu0 0
  %2907 = vmatpush.bf16.msra.mxu0 0
  %2908 = vmatpush.bf16.msra.mxu0 0
  %2909 = vmatpush.bf16.msra.mxu0 0
  %2910 = vmatpush.bf16.msra.mxu0 0
  %2911 = vmatpush.bf16.msra.mxu0 0
  %2912 = vmatpush.bf16.msra.mxu0 %v2889
  %2913 = vmatmul.bf16.gmra.mxu0 %v2782
  %v2914 = vpop.f32.mrf.mxu0
  %v2915 = vadd.f32 %v2746, %v2914
  %v2916 = vpop.f32.mrf.mxu0
  %2917 = vdwg.mxu0
  %v2920 = vunpack.c.l.b16 %v2715
  %v2921 = vunpack.c.h.b16 %v2715
  %v2922 = vunpack.c.l.b16 %v2716
  %v2923 = vunpack.c.h.b16 %v2716
  %v2924 = vpack.c.b16 %v2922, %v2920
  %v2925 = vpack.c.b16 %v2923, %v2921
  %2928 = vmatpush.bf16.msra.mxu0 0
  %2929 = vmatpush.bf16.msra.mxu0 0
  %2930 = vmatpush.bf16.msra.mxu0 0
  %2931 = vmatpush.bf16.msra.mxu0 0
  %2932 = vmatpush.bf16.msra.mxu0 0
  %2933 = vmatpush.bf16.msra.mxu0 0
  %2934 = vmatpush.bf16.msra.mxu0 0
  %2935 = vmatpush.bf16.msra.mxu0 %v2924
  %2936 = vmatmul.bf16.gmra.mxu0 %v2782
  %v2937 = vpop.f32.mrf.mxu0
  %v2938 = vadd.f32 %v2747, %v2937
  %v2939 = vpop.f32.mrf.mxu0
  %2940 = vdwg.mxu0
  %2941 = vmatpush.bf16.msra.mxu0 0
  %2942 = vmatpush.bf16.msra.mxu0 0
  %2943 = vmatpush.bf16.msra.mxu0 0
  %2944 = vmatpush.bf16.msra.mxu0 0
  %2945 = vmatpush.bf16.msra.mxu0 0
  %2946 = vmatpush.bf16.msra.mxu0 0
  %2947 = vmatpush.bf16.msra.mxu0 0
  %2948 = vmatpush.bf16.msra.mxu0 %v2925
  %2949 = vmatmul.bf16.gmra.mxu0 %v2782
  %v2950 = vpop.f32.mrf.mxu0
  %v2951 = vadd.f32 %v2748, %v2950
  %v2952 = vpop.f32.mrf.mxu0
  %2953 = vdwg.mxu0
  %v2956 = vunpack.c.l.b16 %v2717
  %v2957 = vunpack.c.h.b16 %v2717
  %v2958 = vunpack.c.l.b16 %v2718
  %v2959 = vunpack.c.h.b16 %v2718
  %v2960 = vpack.c.b16 %v2958, %v2956
  %v2961 = vpack.c.b16 %v2959, %v2957
  %2964 = vmatpush.bf16.msra.mxu0 0
  %2965 = vmatpush.bf16.msra.mxu0 0
  %2966 = vmatpush.bf16.msra.mxu0 0
  %2967 = vmatpush.bf16.msra.mxu0 0
  %2968 = vmatpush.bf16.msra.mxu0 0
  %2969 = vmatpush.bf16.msra.mxu0 0
  %2970 = vmatpush.bf16.msra.mxu0 0
  %2971 = vmatpush.bf16.msra.mxu0 %v2960
  %2972 = vmatmul.bf16.gmra.mxu0 %v2782
  %v2973 = vpop.f32.mrf.mxu0
  %v2974 = vadd.f32 %v2749, %v2973
  %v2975 = vpop.f32.mrf.mxu0
  %2976 = vdwg.mxu0
  %2977 = vmatpush.bf16.msra.mxu0 0
  %2978 = vmatpush.bf16.msra.mxu0 0
  %2979 = vmatpush.bf16.msra.mxu0 0
  %2980 = vmatpush.bf16.msra.mxu0 0
  %2981 = vmatpush.bf16.msra.mxu0 0
  %2982 = vmatpush.bf16.msra.mxu0 0
  %2983 = vmatpush.bf16.msra.mxu0 0
  %2984 = vmatpush.bf16.msra.mxu0 %v2961
  %2985 = vmatmul.bf16.gmra.mxu0 %v2782
  %v2986 = vpop.f32.mrf.mxu0
  %v2987 = vadd.f32 %v2750, %v2986
  %v2988 = vpop.f32.mrf.mxu0
  %2989 = vdwg.mxu0
  %v2992 = vunpack.c.l.b16 %v2719
  %v2993 = vunpack.c.h.b16 %v2719
  %v2994 = vunpack.c.l.b16 %v2720
  %v2995 = vunpack.c.h.b16 %v2720
  %v2996 = vpack.c.b16 %v2994, %v2992
  %v2997 = vpack.c.b16 %v2995, %v2993
  %3000 = vmatpush.bf16.msra.mxu0 0
  %3001 = vmatpush.bf16.msra.mxu0 0
  %3002 = vmatpush.bf16.msra.mxu0 0
  %3003 = vmatpush.bf16.msra.mxu0 0
  %3004 = vmatpush.bf16.msra.mxu0 0
  %3005 = vmatpush.bf16.msra.mxu0 0
  %3006 = vmatpush.bf16.msra.mxu0 0
  %3007 = vmatpush.bf16.msra.mxu0 %v2996
  %3008 = vmatmul.bf16.gmra.mxu0 %v2782
  %v3009 = vpop.f32.mrf.mxu0
  %v3010 = vadd.f32 %v2751, %v3009
  %v3011 = vpop.f32.mrf.mxu0
  %3012 = vdwg.mxu0
  %3013 = vmatpush.bf16.msra.mxu0 0
  %3014 = vmatpush.bf16.msra.mxu0 0
  %3015 = vmatpush.bf16.msra.mxu0 0
  %3016 = vmatpush.bf16.msra.mxu0 0
  %3017 = vmatpush.bf16.msra.mxu0 0
  %3018 = vmatpush.bf16.msra.mxu0 0
  %3019 = vmatpush.bf16.msra.mxu0 0
  %3020 = vmatpush.bf16.msra.mxu0 %v2997
  %3021 = vmatmul.bf16.gmra.mxu0 %v2782
  %v3022 = vpop.f32.mrf.mxu0
  %v3023 = vadd.f32 %v2752, %v3022
  %v3024 = vpop.f32.mrf.mxu0
  %3025 = vdwg.mxu0
  %v3028 = vunpack.c.l.b16 %v2721
  %v3029 = vunpack.c.h.b16 %v2721
  %v3030 = vunpack.c.l.b16 %v2722
  %v3031 = vunpack.c.h.b16 %v2722
  %v3032 = vpack.c.b16 %v3030, %v3028
  %v3033 = vpack.c.b16 %v3031, %v3029
  %3036 = vmatpush.bf16.msra.mxu0 0
  %3037 = vmatpush.bf16.msra.mxu0 0
  %3038 = vmatpush.bf16.msra.mxu0 0
  %3039 = vmatpush.bf16.msra.mxu0 0
  %3040 = vmatpush.bf16.msra.mxu0 0
  %3041 = vmatpush.bf16.msra.mxu0 0
  %3042 = vmatpush.bf16.msra.mxu0 0
  %3043 = vmatpush.bf16.msra.mxu0 %v3032
  %3044 = vmatmul.bf16.gmra.mxu0 %v2782
  %v3045 = vpop.f32.mrf.mxu0
  %v3046 = vadd.f32 %v2753, %v3045
  %v3047 = vpop.f32.mrf.mxu0
  %3048 = vdwg.mxu0
  %3049 = vmatpush.bf16.msra.mxu0 0
  %3050 = vmatpush.bf16.msra.mxu0 0
  %3051 = vmatpush.bf16.msra.mxu0 0
  %3052 = vmatpush.bf16.msra.mxu0 0
  %3053 = vmatpush.bf16.msra.mxu0 0
  %3054 = vmatpush.bf16.msra.mxu0 0
  %3055 = vmatpush.bf16.msra.mxu0 0
  %3056 = vmatpush.bf16.msra.mxu0 %v3033
  %3057 = vmatmul.bf16.gmra.mxu0 %v2782
  %v3058 = vpop.f32.mrf.mxu0
  %v3059 = vadd.f32 %v2754, %v3058
  %v3060 = vpop.f32.mrf.mxu0
  %3061 = vdwg.mxu0
  %v3062 = vrot.slane %v2866, 4
  %v3063 = vsel %vm1270, %v3062, %v2794
  %v3065 = vunpack.c.l.s4 1983009808
  %v3066 = vunpack.c.0.s8 %v3065
  %v3067 = vperm.slane %v3063, %v3066
  %v3068 = vrot.slane %v2902, 4
  %v3069 = vsel %vm1270, %v3068, %v2830
  %v3071 = vunpack.c.l.s4 1983009808
  %v3072 = vunpack.c.0.s8 %v3071
  %v3073 = vperm.slane %v3069, %v3072
  %v3074 = vrot.slane %v3010, 4
  %v3075 = vsel %vm1270, %v3074, %v2938
  %v3077 = vunpack.c.l.s4 1983009808
  %v3078 = vunpack.c.0.s8 %v3077
  %v3079 = vperm.slane %v3075, %v3078
  %v3080 = vrot.slane %v3046, 4
  %v3081 = vsel %vm1270, %v3080, %v2974
  %v3083 = vunpack.c.l.s4 1983009808
  %v3084 = vunpack.c.0.s8 %v3083
  %v3085 = vperm.slane %v3081, %v3084
  %v3086 = vrot.slane %v3073, 4
  %v3087 = vsel %vm1270, %v3086, %v3067
  %v3089 = vunpack.c.l.s4 1934713408
  %v3090 = vunpack.c.0.s8 %v3089
  %v3091 = vperm.slane %v3087, %v3090
  %v3092 = vrot.slane %v3085, 4
  %v3093 = vsel %vm1270, %v3092, %v3079
  %v3095 = vunpack.c.l.s4 1934713408
  %v3096 = vunpack.c.0.s8 %v3095
  %v3097 = vperm.slane %v3093, %v3096
  %v3098 = vrot.slane %v3097, 4
  %v3099 = vsel %vm1270, %v3098, %v3091
  %v3100 = vrot.slane %v3091, 4
  %v3101 = vsel %vm1270, %v3097, %v3100
  %v3102 = vrot.slane %v2879, 4
  %v3103 = vsel %vm1270, %v3102, %v2807
  %v3105 = vunpack.c.l.s4 1983009808
  %v3106 = vunpack.c.0.s8 %v3105
  %v3107 = vperm.slane %v3103, %v3106
  %v3108 = vrot.slane %v2915, 4
  %v3109 = vsel %vm1270, %v3108, %v2843
  %v3111 = vunpack.c.l.s4 1983009808
  %v3112 = vunpack.c.0.s8 %v3111
  %v3113 = vperm.slane %v3109, %v3112
  %v3114 = vrot.slane %v3023, 4
  %v3115 = vsel %vm1270, %v3114, %v2951
  %v3117 = vunpack.c.l.s4 1983009808
  %v3118 = vunpack.c.0.s8 %v3117
  %v3119 = vperm.slane %v3115, %v3118
  %v3120 = vrot.slane %v3059, 4
  %v3121 = vsel %vm1270, %v3120, %v2987
  %v3123 = vunpack.c.l.s4 1983009808
  %v3124 = vunpack.c.0.s8 %v3123
  %v3125 = vperm.slane %v3121, %v3124
  %v3126 = vrot.slane %v3113, 4
  %v3127 = vsel %vm1270, %v3126, %v3107
  %v3129 = vunpack.c.l.s4 1934713408
  %v3130 = vunpack.c.0.s8 %v3129
  %v3131 = vperm.slane %v3127, %v3130
  %v3132 = vrot.slane %v3125, 4
  %v3133 = vsel %vm1270, %v3132, %v3119
  %v3135 = vunpack.c.l.s4 1934713408
  %v3136 = vunpack.c.0.s8 %v3135
  %v3137 = vperm.slane %v3133, %v3136
  %v3138 = vrot.slane %v3137, 4
  %v3139 = vsel %vm1270, %v3138, %v3131
  %v3140 = vrot.slane %v3131, 4
  %v3141 = vsel %vm1270, %v3137, %v3140
  %v3142 = vld [vmem:[%s9] sm:$0xf]
  %v3143 = vld [vmem:[%s9 + $0x4] sm:$0xf]
  %v3144 = vld [vmem:[%s9 + $0x8] sm:$0xf]
  %v3145 = vld [vmem:[%s9 + $0xc] sm:$0xf]
  %v3146 = vld [vmem:[%s9 + $0x10] sm:$0xf]
  %v3147 = vld [vmem:[%s9 + $0x14] sm:$0xf]
  %v3148 = vld [vmem:[%s9 + $0x18] sm:$0xf]
  %v3149 = vld [vmem:[%s9 + $0x1c] sm:$0xf]
  %v3150 = vld [vmem:[%s9 + $0x20] sm:$0xf]
  %v3151 = vld [vmem:[%s10] sm:$0xf]
  %3154 = vrot.lane.b32.xlu0 %v3139, 17
  %v3155 = vpop.permute.xlu0 %3154
  %3156 = vrot.lane.b32.xlu0 %v3141, 17
  %v3157 = vpop.permute.xlu0 %3156
  %3162 = vrot.lane.b32.xlu0 %v3099, 17
  %v3163 = vpop.permute.xlu0 %3162
  %3164 = vrot.lane.b32.xlu0 %v3101, 17
  %v3165 = vpop.permute.xlu0 %3164
  %v3166 = vsel %vm85, %v3163, %v3155
  %v3167 = vsel %vm85, %v3165, %v3157
  %v3172 = vsel %vm85, %v3155, %v3163
  %v3173 = vsel %vm85, %v3157, %v3165
  %vm3174 = vcmask 64512
  %v3176 = vsel %vm3174, %v3142, 0
  %3178 = vmatpush.msra.mxu0 0.0
  %3179 = vmatpush.msra.mxu0 0.0
  %3180 = vmatpush.msra.mxu0 0.0
  %3181 = vmatpush.msra.mxu0 0.0
  %3182 = vmatpush.msra.mxu0 0.0
  %3183 = vmatpush.msra.mxu0 0.0
  %3184 = vmatpush.msra.mxu0 0.0
  %3185 = vmatpush.msra.mxu0 0.0
  %3186 = vmatpush.msra.mxu0 0.0
  %3187 = vmatpush.msra.mxu0 0.0
  %3188 = vmatpush.msra.mxu0 0.0
  %3189 = vmatpush.msra.mxu0 0.0
  %3190 = vmatpush.msra.mxu0 0.0
  %3191 = vmatpush.msra.mxu0 0.0
  %3192 = vmatpush.msra.mxu0 0.0
  %3193 = vmatpush.msra.mxu0 %v3172
  %3194 = vmatmul.f32.gmra.mxu0 %v3176
  %v3195 = vpop.f32.mrf.mxu0
  %v3196 = vadd.f32 0.0, %v3195
  %3197 = vdwg.mxu0
  %3198 = vmatpush.msra.mxu0 0.0
  %3199 = vmatpush.msra.mxu0 0.0
  %3200 = vmatpush.msra.mxu0 0.0
  %3201 = vmatpush.msra.mxu0 0.0
  %3202 = vmatpush.msra.mxu0 0.0
  %3203 = vmatpush.msra.mxu0 0.0
  %3204 = vmatpush.msra.mxu0 0.0
  %3205 = vmatpush.msra.mxu0 0.0
  %3206 = vmatpush.msra.mxu0 0.0
  %3207 = vmatpush.msra.mxu0 0.0
  %3208 = vmatpush.msra.mxu0 0.0
  %3209 = vmatpush.msra.mxu0 0.0
  %3210 = vmatpush.msra.mxu0 0.0
  %3211 = vmatpush.msra.mxu0 0.0
  %3212 = vmatpush.msra.mxu0 0.0
  %3213 = vmatpush.msra.mxu0 %v3166
  %3214 = vmatmul.f32.gmra.mxu0 %v3176
  %v3215 = vpop.f32.mrf.mxu0
  %v3216 = vadd.f32 0.0, %v3215
  %3217 = vdwg.mxu0
  %3218 = vmatpush.msra.mxu0 0.0
  %3219 = vmatpush.msra.mxu0 0.0
  %3220 = vmatpush.msra.mxu0 0.0
  %3221 = vmatpush.msra.mxu0 0.0
  %3222 = vmatpush.msra.mxu0 0.0
  %3223 = vmatpush.msra.mxu0 0.0
  %3224 = vmatpush.msra.mxu0 0.0
  %3225 = vmatpush.msra.mxu0 0.0
  %3226 = vmatpush.msra.mxu0 0.0
  %3227 = vmatpush.msra.mxu0 0.0
  %3228 = vmatpush.msra.mxu0 0.0
  %3229 = vmatpush.msra.mxu0 0.0
  %3230 = vmatpush.msra.mxu0 0.0
  %3231 = vmatpush.msra.mxu0 0.0
  %3232 = vmatpush.msra.mxu0 0.0
  %3233 = vmatpush.msra.mxu0 %v3173
  %3234 = vmatmul.f32.gmra.mxu0 %v3176
  %v3235 = vpop.f32.mrf.mxu0
  %v3236 = vadd.f32 0.0, %v3235
  %3237 = vdwg.mxu0
  %3238 = vmatpush.msra.mxu0 0.0
  %3239 = vmatpush.msra.mxu0 0.0
  %3240 = vmatpush.msra.mxu0 0.0
  %3241 = vmatpush.msra.mxu0 0.0
  %3242 = vmatpush.msra.mxu0 0.0
  %3243 = vmatpush.msra.mxu0 0.0
  %3244 = vmatpush.msra.mxu0 0.0
  %3245 = vmatpush.msra.mxu0 0.0
  %3246 = vmatpush.msra.mxu0 0.0
  %3247 = vmatpush.msra.mxu0 0.0
  %3248 = vmatpush.msra.mxu0 0.0
  %3249 = vmatpush.msra.mxu0 0.0
  %3250 = vmatpush.msra.mxu0 0.0
  %3251 = vmatpush.msra.mxu0 0.0
  %3252 = vmatpush.msra.mxu0 0.0
  %3253 = vmatpush.msra.mxu0 %v3167
  %3254 = vmatmul.f32.gmra.mxu0 %v3176
  %v3255 = vpop.f32.mrf.mxu0
  %v3256 = vadd.f32 0.0, %v3255
  %3257 = vdwg.mxu0
  %v3258 = vmul.f32 %v3196, %v187
  %v3259 = vmul.f32 %v3216, %v188
  %v3260 = vmul.f32 %v3236, %v187
  %v3261 = vmul.f32 %v3256, %v188
  %v3262 = vadd.f32 %v3258, 0.0
  %v3263 = vadd.f32 %v3259, 0.0
  %v3264 = vadd.f32 %v3260, 0.0
  %v3265 = vadd.f32 %v3261, 0.0
  %3266 = vrot.lane.b32.xlu0 %v3139, 16
  %v3267 = vpop.permute.xlu0 %3266
  %3268 = vrot.lane.b32.xlu0 %v3141, 16
  %v3269 = vpop.permute.xlu0 %3268
  %3272 = vrot.lane.b32.xlu0 %v3099, 16
  %v3273 = vpop.permute.xlu0 %3272
  %3274 = vrot.lane.b32.xlu0 %v3101, 16
  %v3275 = vpop.permute.xlu0 %3274
  %v3276 = vsel %vm223, %v3273, %v3267
  %v3277 = vsel %vm223, %v3275, %v3269
  %v3282 = vsel %vm223, %v3267, %v3273
  %v3283 = vsel %vm223, %v3269, %v3275
  %v3285 = vsel %vm3174, %v3143, 0
  %3287 = vmatpush.msra.mxu0 0.0
  %3288 = vmatpush.msra.mxu0 0.0
  %3289 = vmatpush.msra.mxu0 0.0
  %3290 = vmatpush.msra.mxu0 0.0
  %3291 = vmatpush.msra.mxu0 0.0
  %3292 = vmatpush.msra.mxu0 0.0
  %3293 = vmatpush.msra.mxu0 0.0
  %3294 = vmatpush.msra.mxu0 0.0
  %3295 = vmatpush.msra.mxu0 0.0
  %3296 = vmatpush.msra.mxu0 0.0
  %3297 = vmatpush.msra.mxu0 0.0
  %3298 = vmatpush.msra.mxu0 0.0
  %3299 = vmatpush.msra.mxu0 0.0
  %3300 = vmatpush.msra.mxu0 0.0
  %3301 = vmatpush.msra.mxu0 0.0
  %3302 = vmatpush.msra.mxu0 %v3282
  %3303 = vmatmul.f32.gmra.mxu0 %v3285
  %v3304 = vpop.f32.mrf.mxu0
  %v3305 = vadd.f32 0.0, %v3304
  %3306 = vdwg.mxu0
  %3307 = vmatpush.msra.mxu0 0.0
  %3308 = vmatpush.msra.mxu0 0.0
  %3309 = vmatpush.msra.mxu0 0.0
  %3310 = vmatpush.msra.mxu0 0.0
  %3311 = vmatpush.msra.mxu0 0.0
  %3312 = vmatpush.msra.mxu0 0.0
  %3313 = vmatpush.msra.mxu0 0.0
  %3314 = vmatpush.msra.mxu0 0.0
  %3315 = vmatpush.msra.mxu0 0.0
  %3316 = vmatpush.msra.mxu0 0.0
  %3317 = vmatpush.msra.mxu0 0.0
  %3318 = vmatpush.msra.mxu0 0.0
  %3319 = vmatpush.msra.mxu0 0.0
  %3320 = vmatpush.msra.mxu0 0.0
  %3321 = vmatpush.msra.mxu0 0.0
  %3322 = vmatpush.msra.mxu0 %v3276
  %3323 = vmatmul.f32.gmra.mxu0 %v3285
  %v3324 = vpop.f32.mrf.mxu0
  %v3325 = vadd.f32 0.0, %v3324
  %3326 = vdwg.mxu0
  %3327 = vmatpush.msra.mxu0 0.0
  %3328 = vmatpush.msra.mxu0 0.0
  %3329 = vmatpush.msra.mxu0 0.0
  %3330 = vmatpush.msra.mxu0 0.0
  %3331 = vmatpush.msra.mxu0 0.0
  %3332 = vmatpush.msra.mxu0 0.0
  %3333 = vmatpush.msra.mxu0 0.0
  %3334 = vmatpush.msra.mxu0 0.0
  %3335 = vmatpush.msra.mxu0 0.0
  %3336 = vmatpush.msra.mxu0 0.0
  %3337 = vmatpush.msra.mxu0 0.0
  %3338 = vmatpush.msra.mxu0 0.0
  %3339 = vmatpush.msra.mxu0 0.0
  %3340 = vmatpush.msra.mxu0 0.0
  %3341 = vmatpush.msra.mxu0 0.0
  %3342 = vmatpush.msra.mxu0 %v3283
  %3343 = vmatmul.f32.gmra.mxu0 %v3285
  %v3344 = vpop.f32.mrf.mxu0
  %v3345 = vadd.f32 0.0, %v3344
  %3346 = vdwg.mxu0
  %3347 = vmatpush.msra.mxu0 0.0
  %3348 = vmatpush.msra.mxu0 0.0
  %3349 = vmatpush.msra.mxu0 0.0
  %3350 = vmatpush.msra.mxu0 0.0
  %3351 = vmatpush.msra.mxu0 0.0
  %3352 = vmatpush.msra.mxu0 0.0
  %3353 = vmatpush.msra.mxu0 0.0
  %3354 = vmatpush.msra.mxu0 0.0
  %3355 = vmatpush.msra.mxu0 0.0
  %3356 = vmatpush.msra.mxu0 0.0
  %3357 = vmatpush.msra.mxu0 0.0
  %3358 = vmatpush.msra.mxu0 0.0
  %3359 = vmatpush.msra.mxu0 0.0
  %3360 = vmatpush.msra.mxu0 0.0
  %3361 = vmatpush.msra.mxu0 0.0
  %3362 = vmatpush.msra.mxu0 %v3277
  %3363 = vmatmul.f32.gmra.mxu0 %v3285
  %v3364 = vpop.f32.mrf.mxu0
  %v3365 = vadd.f32 0.0, %v3364
  %3366 = vdwg.mxu0
  %v3367 = vmul.f32 %v3305, %v323
  %v3368 = vmul.f32 %v3325, %v324
  %v3369 = vmul.f32 %v3345, %v323
  %v3370 = vmul.f32 %v3365, %v324
  %v3371 = vadd.f32 %v3262, %v3367
  %v3372 = vadd.f32 %v3263, %v3368
  %v3373 = vadd.f32 %v3264, %v3369
  %v3374 = vadd.f32 %v3265, %v3370
  %3375 = vrot.lane.b32.xlu0 %v3139, 15
  %v3376 = vpop.permute.xlu0 %3375
  %3377 = vrot.lane.b32.xlu0 %v3141, 15
  %v3378 = vpop.permute.xlu0 %3377
  %3381 = vrot.lane.b32.xlu0 %v3099, 15
  %v3382 = vpop.permute.xlu0 %3381
  %3383 = vrot.lane.b32.xlu0 %v3101, 15
  %v3384 = vpop.permute.xlu0 %3383
  %v3385 = vsel %vm359, %v3382, %v3376
  %v3386 = vsel %vm359, %v3384, %v3378
  %v3391 = vsel %vm359, %v3376, %v3382
  %v3392 = vsel %vm359, %v3378, %v3384
  %v3394 = vsel %vm3174, %v3144, 0
  %3396 = vmatpush.msra.mxu0 0.0
  %3397 = vmatpush.msra.mxu0 0.0
  %3398 = vmatpush.msra.mxu0 0.0
  %3399 = vmatpush.msra.mxu0 0.0
  %3400 = vmatpush.msra.mxu0 0.0
  %3401 = vmatpush.msra.mxu0 0.0
  %3402 = vmatpush.msra.mxu0 0.0
  %3403 = vmatpush.msra.mxu0 0.0
  %3404 = vmatpush.msra.mxu0 0.0
  %3405 = vmatpush.msra.mxu0 0.0
  %3406 = vmatpush.msra.mxu0 0.0
  %3407 = vmatpush.msra.mxu0 0.0
  %3408 = vmatpush.msra.mxu0 0.0
  %3409 = vmatpush.msra.mxu0 0.0
  %3410 = vmatpush.msra.mxu0 0.0
  %3411 = vmatpush.msra.mxu0 %v3391
  %3412 = vmatmul.f32.gmra.mxu0 %v3394
  %v3413 = vpop.f32.mrf.mxu0
  %v3414 = vadd.f32 0.0, %v3413
  %3415 = vdwg.mxu0
  %3416 = vmatpush.msra.mxu0 0.0
  %3417 = vmatpush.msra.mxu0 0.0
  %3418 = vmatpush.msra.mxu0 0.0
  %3419 = vmatpush.msra.mxu0 0.0
  %3420 = vmatpush.msra.mxu0 0.0
  %3421 = vmatpush.msra.mxu0 0.0
  %3422 = vmatpush.msra.mxu0 0.0
  %3423 = vmatpush.msra.mxu0 0.0
  %3424 = vmatpush.msra.mxu0 0.0
  %3425 = vmatpush.msra.mxu0 0.0
  %3426 = vmatpush.msra.mxu0 0.0
  %3427 = vmatpush.msra.mxu0 0.0
  %3428 = vmatpush.msra.mxu0 0.0
  %3429 = vmatpush.msra.mxu0 0.0
  %3430 = vmatpush.msra.mxu0 0.0
  %3431 = vmatpush.msra.mxu0 %v3385
  %3432 = vmatmul.f32.gmra.mxu0 %v3394
  %v3433 = vpop.f32.mrf.mxu0
  %v3434 = vadd.f32 0.0, %v3433
  %3435 = vdwg.mxu0
  %3436 = vmatpush.msra.mxu0 0.0
  %3437 = vmatpush.msra.mxu0 0.0
  %3438 = vmatpush.msra.mxu0 0.0
  %3439 = vmatpush.msra.mxu0 0.0
  %3440 = vmatpush.msra.mxu0 0.0
  %3441 = vmatpush.msra.mxu0 0.0
  %3442 = vmatpush.msra.mxu0 0.0
  %3443 = vmatpush.msra.mxu0 0.0
  %3444 = vmatpush.msra.mxu0 0.0
  %3445 = vmatpush.msra.mxu0 0.0
  %3446 = vmatpush.msra.mxu0 0.0
  %3447 = vmatpush.msra.mxu0 0.0
  %3448 = vmatpush.msra.mxu0 0.0
  %3449 = vmatpush.msra.mxu0 0.0
  %3450 = vmatpush.msra.mxu0 0.0
  %3451 = vmatpush.msra.mxu0 %v3392
  %3452 = vmatmul.f32.gmra.mxu0 %v3394
  %v3453 = vpop.f32.mrf.mxu0
  %v3454 = vadd.f32 0.0, %v3453
  %3455 = vdwg.mxu0
  %3456 = vmatpush.msra.mxu0 0.0
  %3457 = vmatpush.msra.mxu0 0.0
  %3458 = vmatpush.msra.mxu0 0.0
  %3459 = vmatpush.msra.mxu0 0.0
  %3460 = vmatpush.msra.mxu0 0.0
  %3461 = vmatpush.msra.mxu0 0.0
  %3462 = vmatpush.msra.mxu0 0.0
  %3463 = vmatpush.msra.mxu0 0.0
  %3464 = vmatpush.msra.mxu0 0.0
  %3465 = vmatpush.msra.mxu0 0.0
  %3466 = vmatpush.msra.mxu0 0.0
  %3467 = vmatpush.msra.mxu0 0.0
  %3468 = vmatpush.msra.mxu0 0.0
  %3469 = vmatpush.msra.mxu0 0.0
  %3470 = vmatpush.msra.mxu0 0.0
  %3471 = vmatpush.msra.mxu0 %v3386
  %3472 = vmatmul.f32.gmra.mxu0 %v3394
  %v3473 = vpop.f32.mrf.mxu0
  %v3474 = vadd.f32 0.0, %v3473
  %3475 = vdwg.mxu0
  %v3476 = vmul.f32 %v3414, %v459
  %v3477 = vmul.f32 %v3434, %v460
  %v3478 = vmul.f32 %v3454, %v459
  %v3479 = vmul.f32 %v3474, %v460
  %v3480 = vadd.f32 %v3371, %v3476
  %v3481 = vadd.f32 %v3372, %v3477
  %v3482 = vadd.f32 %v3373, %v3478
  %v3483 = vadd.f32 %v3374, %v3479
  %3484 = vrot.lane.b32.xlu0 %v3139, 1
  %v3485 = vpop.permute.xlu0 %3484
  %3486 = vrot.lane.b32.xlu0 %v3141, 1
  %v3487 = vpop.permute.xlu0 %3486
  %3490 = vrot.lane.b32.xlu0 %v3099, 1
  %v3491 = vpop.permute.xlu0 %3490
  %3492 = vrot.lane.b32.xlu0 %v3101, 1
  %v3493 = vpop.permute.xlu0 %3492
  %v3494 = vsel %vm495, %v3491, %v3485
  %v3495 = vsel %vm495, %v3493, %v3487
  %v3500 = vsel %vm495, %v3485, %v3491
  %v3501 = vsel %vm495, %v3487, %v3493
  %v3503 = vsel %vm3174, %v3145, 0
  %3505 = vmatpush.msra.mxu0 0.0
  %3506 = vmatpush.msra.mxu0 0.0
  %3507 = vmatpush.msra.mxu0 0.0
  %3508 = vmatpush.msra.mxu0 0.0
  %3509 = vmatpush.msra.mxu0 0.0
  %3510 = vmatpush.msra.mxu0 0.0
  %3511 = vmatpush.msra.mxu0 0.0
  %3512 = vmatpush.msra.mxu0 0.0
  %3513 = vmatpush.msra.mxu0 0.0
  %3514 = vmatpush.msra.mxu0 0.0
  %3515 = vmatpush.msra.mxu0 0.0
  %3516 = vmatpush.msra.mxu0 0.0
  %3517 = vmatpush.msra.mxu0 0.0
  %3518 = vmatpush.msra.mxu0 0.0
  %3519 = vmatpush.msra.mxu0 0.0
  %3520 = vmatpush.msra.mxu0 %v3500
  %3521 = vmatmul.f32.gmra.mxu0 %v3503
  %v3522 = vpop.f32.mrf.mxu0
  %v3523 = vadd.f32 0.0, %v3522
  %3524 = vdwg.mxu0
  %3525 = vmatpush.msra.mxu0 0.0
  %3526 = vmatpush.msra.mxu0 0.0
  %3527 = vmatpush.msra.mxu0 0.0
  %3528 = vmatpush.msra.mxu0 0.0
  %3529 = vmatpush.msra.mxu0 0.0
  %3530 = vmatpush.msra.mxu0 0.0
  %3531 = vmatpush.msra.mxu0 0.0
  %3532 = vmatpush.msra.mxu0 0.0
  %3533 = vmatpush.msra.mxu0 0.0
  %3534 = vmatpush.msra.mxu0 0.0
  %3535 = vmatpush.msra.mxu0 0.0
  %3536 = vmatpush.msra.mxu0 0.0
  %3537 = vmatpush.msra.mxu0 0.0
  %3538 = vmatpush.msra.mxu0 0.0
  %3539 = vmatpush.msra.mxu0 0.0
  %3540 = vmatpush.msra.mxu0 %v3494
  %3541 = vmatmul.f32.gmra.mxu0 %v3503
  %v3542 = vpop.f32.mrf.mxu0
  %v3543 = vadd.f32 0.0, %v3542
  %3544 = vdwg.mxu0
  %3545 = vmatpush.msra.mxu0 0.0
  %3546 = vmatpush.msra.mxu0 0.0
  %3547 = vmatpush.msra.mxu0 0.0
  %3548 = vmatpush.msra.mxu0 0.0
  %3549 = vmatpush.msra.mxu0 0.0
  %3550 = vmatpush.msra.mxu0 0.0
  %3551 = vmatpush.msra.mxu0 0.0
  %3552 = vmatpush.msra.mxu0 0.0
  %3553 = vmatpush.msra.mxu0 0.0
  %3554 = vmatpush.msra.mxu0 0.0
  %3555 = vmatpush.msra.mxu0 0.0
  %3556 = vmatpush.msra.mxu0 0.0
  %3557 = vmatpush.msra.mxu0 0.0
  %3558 = vmatpush.msra.mxu0 0.0
  %3559 = vmatpush.msra.mxu0 0.0
  %3560 = vmatpush.msra.mxu0 %v3501
  %3561 = vmatmul.f32.gmra.mxu0 %v3503
  %v3562 = vpop.f32.mrf.mxu0
  %v3563 = vadd.f32 0.0, %v3562
  %3564 = vdwg.mxu0
  %3565 = vmatpush.msra.mxu0 0.0
  %3566 = vmatpush.msra.mxu0 0.0
  %3567 = vmatpush.msra.mxu0 0.0
  %3568 = vmatpush.msra.mxu0 0.0
  %3569 = vmatpush.msra.mxu0 0.0
  %3570 = vmatpush.msra.mxu0 0.0
  %3571 = vmatpush.msra.mxu0 0.0
  %3572 = vmatpush.msra.mxu0 0.0
  %3573 = vmatpush.msra.mxu0 0.0
  %3574 = vmatpush.msra.mxu0 0.0
  %3575 = vmatpush.msra.mxu0 0.0
  %3576 = vmatpush.msra.mxu0 0.0
  %3577 = vmatpush.msra.mxu0 0.0
  %3578 = vmatpush.msra.mxu0 0.0
  %3579 = vmatpush.msra.mxu0 0.0
  %3580 = vmatpush.msra.mxu0 %v3495
  %3581 = vmatmul.f32.gmra.mxu0 %v3503
  %v3582 = vpop.f32.mrf.mxu0
  %v3583 = vadd.f32 0.0, %v3582
  %3584 = vdwg.mxu0
  %v3585 = vmul.f32 %v3523, %v595
  %v3586 = vmul.f32 %v3543, %v596
  %v3587 = vmul.f32 %v3563, %v595
  %v3588 = vmul.f32 %v3583, %v596
  %v3589 = vadd.f32 %v3480, %v3585
  %v3590 = vadd.f32 %v3481, %v3586
  %v3591 = vadd.f32 %v3482, %v3587
  %v3592 = vadd.f32 %v3483, %v3588
  %v3594 = vsel %vm3174, %v3146, 0
  %3596 = vmatpush.msra.mxu0 0.0
  %3597 = vmatpush.msra.mxu0 0.0
  %3598 = vmatpush.msra.mxu0 0.0
  %3599 = vmatpush.msra.mxu0 0.0
  %3600 = vmatpush.msra.mxu0 0.0
  %3601 = vmatpush.msra.mxu0 0.0
  %3602 = vmatpush.msra.mxu0 0.0
  %3603 = vmatpush.msra.mxu0 0.0
  %3604 = vmatpush.msra.mxu0 0.0
  %3605 = vmatpush.msra.mxu0 0.0
  %3606 = vmatpush.msra.mxu0 0.0
  %3607 = vmatpush.msra.mxu0 0.0
  %3608 = vmatpush.msra.mxu0 0.0
  %3609 = vmatpush.msra.mxu0 0.0
  %3610 = vmatpush.msra.mxu0 0.0
  %3611 = vmatpush.msra.mxu0 %v3099
  %3612 = vmatmul.f32.gmra.mxu0 %v3594
  %v3613 = vpop.f32.mrf.mxu0
  %v3614 = vadd.f32 0.0, %v3613
  %3615 = vdwg.mxu0
  %3616 = vmatpush.msra.mxu0 0.0
  %3617 = vmatpush.msra.mxu0 0.0
  %3618 = vmatpush.msra.mxu0 0.0
  %3619 = vmatpush.msra.mxu0 0.0
  %3620 = vmatpush.msra.mxu0 0.0
  %3621 = vmatpush.msra.mxu0 0.0
  %3622 = vmatpush.msra.mxu0 0.0
  %3623 = vmatpush.msra.mxu0 0.0
  %3624 = vmatpush.msra.mxu0 0.0
  %3625 = vmatpush.msra.mxu0 0.0
  %3626 = vmatpush.msra.mxu0 0.0
  %3627 = vmatpush.msra.mxu0 0.0
  %3628 = vmatpush.msra.mxu0 0.0
  %3629 = vmatpush.msra.mxu0 0.0
  %3630 = vmatpush.msra.mxu0 0.0
  %3631 = vmatpush.msra.mxu0 %v3139
  %3632 = vmatmul.f32.gmra.mxu0 %v3594
  %v3633 = vpop.f32.mrf.mxu0
  %v3634 = vadd.f32 0.0, %v3633
  %3635 = vdwg.mxu0
  %3636 = vmatpush.msra.mxu0 0.0
  %3637 = vmatpush.msra.mxu0 0.0
  %3638 = vmatpush.msra.mxu0 0.0
  %3639 = vmatpush.msra.mxu0 0.0
  %3640 = vmatpush.msra.mxu0 0.0
  %3641 = vmatpush.msra.mxu0 0.0
  %3642 = vmatpush.msra.mxu0 0.0
  %3643 = vmatpush.msra.mxu0 0.0
  %3644 = vmatpush.msra.mxu0 0.0
  %3645 = vmatpush.msra.mxu0 0.0
  %3646 = vmatpush.msra.mxu0 0.0
  %3647 = vmatpush.msra.mxu0 0.0
  %3648 = vmatpush.msra.mxu0 0.0
  %3649 = vmatpush.msra.mxu0 0.0
  %3650 = vmatpush.msra.mxu0 0.0
  %3651 = vmatpush.msra.mxu0 %v3101
  %3652 = vmatmul.f32.gmra.mxu0 %v3594
  %v3653 = vpop.f32.mrf.mxu0
  %v3654 = vadd.f32 0.0, %v3653
  %3655 = vdwg.mxu0
  %3656 = vmatpush.msra.mxu0 0.0
  %3657 = vmatpush.msra.mxu0 0.0
  %3658 = vmatpush.msra.mxu0 0.0
  %3659 = vmatpush.msra.mxu0 0.0
  %3660 = vmatpush.msra.mxu0 0.0
  %3661 = vmatpush.msra.mxu0 0.0
  %3662 = vmatpush.msra.mxu0 0.0
  %3663 = vmatpush.msra.mxu0 0.0
  %3664 = vmatpush.msra.mxu0 0.0
  %3665 = vmatpush.msra.mxu0 0.0
  %3666 = vmatpush.msra.mxu0 0.0
  %3667 = vmatpush.msra.mxu0 0.0
  %3668 = vmatpush.msra.mxu0 0.0
  %3669 = vmatpush.msra.mxu0 0.0
  %3670 = vmatpush.msra.mxu0 0.0
  %3671 = vmatpush.msra.mxu0 %v3141
  %3672 = vmatmul.f32.gmra.mxu0 %v3594
  %v3673 = vpop.f32.mrf.mxu0
  %v3674 = vadd.f32 0.0, %v3673
  %3675 = vdwg.mxu0
  %v3676 = vmul.f32 %v3614, %v702
  %v3677 = vmul.f32 %v3634, %v703
  %v3678 = vmul.f32 %v3654, %v702
  %v3679 = vmul.f32 %v3674, %v703
  %v3680 = vadd.f32 %v3589, %v3676
  %v3681 = vadd.f32 %v3590, %v3677
  %v3682 = vadd.f32 %v3591, %v3678
  %v3683 = vadd.f32 %v3592, %v3679
  %3684 = vrot.lane.b32.xlu0 %v3099, 127
  %v3685 = vpop.permute.xlu0 %3684
  %3686 = vrot.lane.b32.xlu0 %v3139, 127
  %v3687 = vpop.permute.xlu0 %3686
  %3688 = vrot.lane.b32.xlu0 %v3101, 127
  %v3689 = vpop.permute.xlu0 %3688
  %3690 = vrot.lane.b32.xlu0 %v3141, 127
  %v3691 = vpop.permute.xlu0 %3690
  %v3692 = vsel %vm727, %v3685, %v3687
  %v3693 = vsel %vm727, %v3689, %v3691
  %v3700 = vsel %vm727, %v3687, %v3685
  %v3701 = vsel %vm727, %v3691, %v3689
  %v3703 = vsel %vm3174, %v3147, 0
  %3705 = vmatpush.msra.mxu0 0.0
  %3706 = vmatpush.msra.mxu0 0.0
  %3707 = vmatpush.msra.mxu0 0.0
  %3708 = vmatpush.msra.mxu0 0.0
  %3709 = vmatpush.msra.mxu0 0.0
  %3710 = vmatpush.msra.mxu0 0.0
  %3711 = vmatpush.msra.mxu0 0.0
  %3712 = vmatpush.msra.mxu0 0.0
  %3713 = vmatpush.msra.mxu0 0.0
  %3714 = vmatpush.msra.mxu0 0.0
  %3715 = vmatpush.msra.mxu0 0.0
  %3716 = vmatpush.msra.mxu0 0.0
  %3717 = vmatpush.msra.mxu0 0.0
  %3718 = vmatpush.msra.mxu0 0.0
  %3719 = vmatpush.msra.mxu0 0.0
  %3720 = vmatpush.msra.mxu0 %v3692
  %3721 = vmatmul.f32.gmra.mxu0 %v3703
  %v3722 = vpop.f32.mrf.mxu0
  %v3723 = vadd.f32 0.0, %v3722
  %3724 = vdwg.mxu0
  %3725 = vmatpush.msra.mxu0 0.0
  %3726 = vmatpush.msra.mxu0 0.0
  %3727 = vmatpush.msra.mxu0 0.0
  %3728 = vmatpush.msra.mxu0 0.0
  %3729 = vmatpush.msra.mxu0 0.0
  %3730 = vmatpush.msra.mxu0 0.0
  %3731 = vmatpush.msra.mxu0 0.0
  %3732 = vmatpush.msra.mxu0 0.0
  %3733 = vmatpush.msra.mxu0 0.0
  %3734 = vmatpush.msra.mxu0 0.0
  %3735 = vmatpush.msra.mxu0 0.0
  %3736 = vmatpush.msra.mxu0 0.0
  %3737 = vmatpush.msra.mxu0 0.0
  %3738 = vmatpush.msra.mxu0 0.0
  %3739 = vmatpush.msra.mxu0 0.0
  %3740 = vmatpush.msra.mxu0 %v3700
  %3741 = vmatmul.f32.gmra.mxu0 %v3703
  %v3742 = vpop.f32.mrf.mxu0
  %v3743 = vadd.f32 0.0, %v3742
  %3744 = vdwg.mxu0
  %3745 = vmatpush.msra.mxu0 0.0
  %3746 = vmatpush.msra.mxu0 0.0
  %3747 = vmatpush.msra.mxu0 0.0
  %3748 = vmatpush.msra.mxu0 0.0
  %3749 = vmatpush.msra.mxu0 0.0
  %3750 = vmatpush.msra.mxu0 0.0
  %3751 = vmatpush.msra.mxu0 0.0
  %3752 = vmatpush.msra.mxu0 0.0
  %3753 = vmatpush.msra.mxu0 0.0
  %3754 = vmatpush.msra.mxu0 0.0
  %3755 = vmatpush.msra.mxu0 0.0
  %3756 = vmatpush.msra.mxu0 0.0
  %3757 = vmatpush.msra.mxu0 0.0
  %3758 = vmatpush.msra.mxu0 0.0
  %3759 = vmatpush.msra.mxu0 0.0
  %3760 = vmatpush.msra.mxu0 %v3693
  %3761 = vmatmul.f32.gmra.mxu0 %v3703
  %v3762 = vpop.f32.mrf.mxu0
  %v3763 = vadd.f32 0.0, %v3762
  %3764 = vdwg.mxu0
  %3765 = vmatpush.msra.mxu0 0.0
  %3766 = vmatpush.msra.mxu0 0.0
  %3767 = vmatpush.msra.mxu0 0.0
  %3768 = vmatpush.msra.mxu0 0.0
  %3769 = vmatpush.msra.mxu0 0.0
  %3770 = vmatpush.msra.mxu0 0.0
  %3771 = vmatpush.msra.mxu0 0.0
  %3772 = vmatpush.msra.mxu0 0.0
  %3773 = vmatpush.msra.mxu0 0.0
  %3774 = vmatpush.msra.mxu0 0.0
  %3775 = vmatpush.msra.mxu0 0.0
  %3776 = vmatpush.msra.mxu0 0.0
  %3777 = vmatpush.msra.mxu0 0.0
  %3778 = vmatpush.msra.mxu0 0.0
  %3779 = vmatpush.msra.mxu0 0.0
  %3780 = vmatpush.msra.mxu0 %v3701
  %3781 = vmatmul.f32.gmra.mxu0 %v3703
  %v3782 = vpop.f32.mrf.mxu0
  %v3783 = vadd.f32 0.0, %v3782
  %3784 = vdwg.mxu0
  %v3785 = vmul.f32 %v3723, %v838
  %v3786 = vmul.f32 %v3743, %v839
  %v3787 = vmul.f32 %v3763, %v838
  %v3788 = vmul.f32 %v3783, %v839
  %v3789 = vadd.f32 %v3680, %v3785
  %v3790 = vadd.f32 %v3681, %v3786
  %v3791 = vadd.f32 %v3682, %v3787
  %v3792 = vadd.f32 %v3683, %v3788
  %3793 = vrot.lane.b32.xlu0 %v3099, 113
  %v3794 = vpop.permute.xlu0 %3793
  %3795 = vrot.lane.b32.xlu0 %v3139, 113
  %v3796 = vpop.permute.xlu0 %3795
  %3797 = vrot.lane.b32.xlu0 %v3101, 113
  %v3798 = vpop.permute.xlu0 %3797
  %3799 = vrot.lane.b32.xlu0 %v3141, 113
  %v3800 = vpop.permute.xlu0 %3799
  %v3801 = vsel %vm863, %v3794, %v3796
  %v3802 = vsel %vm863, %v3798, %v3800
  %v3809 = vsel %vm863, %v3796, %v3794
  %v3810 = vsel %vm863, %v3800, %v3798
  %v3812 = vsel %vm3174, %v3148, 0
  %3814 = vmatpush.msra.mxu0 0.0
  %3815 = vmatpush.msra.mxu0 0.0
  %3816 = vmatpush.msra.mxu0 0.0
  %3817 = vmatpush.msra.mxu0 0.0
  %3818 = vmatpush.msra.mxu0 0.0
  %3819 = vmatpush.msra.mxu0 0.0
  %3820 = vmatpush.msra.mxu0 0.0
  %3821 = vmatpush.msra.mxu0 0.0
  %3822 = vmatpush.msra.mxu0 0.0
  %3823 = vmatpush.msra.mxu0 0.0
  %3824 = vmatpush.msra.mxu0 0.0
  %3825 = vmatpush.msra.mxu0 0.0
  %3826 = vmatpush.msra.mxu0 0.0
  %3827 = vmatpush.msra.mxu0 0.0
  %3828 = vmatpush.msra.mxu0 0.0
  %3829 = vmatpush.msra.mxu0 %v3801
  %3830 = vmatmul.f32.gmra.mxu0 %v3812
  %v3831 = vpop.f32.mrf.mxu0
  %v3832 = vadd.f32 0.0, %v3831
  %3833 = vdwg.mxu0
  %3834 = vmatpush.msra.mxu0 0.0
  %3835 = vmatpush.msra.mxu0 0.0
  %3836 = vmatpush.msra.mxu0 0.0
  %3837 = vmatpush.msra.mxu0 0.0
  %3838 = vmatpush.msra.mxu0 0.0
  %3839 = vmatpush.msra.mxu0 0.0
  %3840 = vmatpush.msra.mxu0 0.0
  %3841 = vmatpush.msra.mxu0 0.0
  %3842 = vmatpush.msra.mxu0 0.0
  %3843 = vmatpush.msra.mxu0 0.0
  %3844 = vmatpush.msra.mxu0 0.0
  %3845 = vmatpush.msra.mxu0 0.0
  %3846 = vmatpush.msra.mxu0 0.0
  %3847 = vmatpush.msra.mxu0 0.0
  %3848 = vmatpush.msra.mxu0 0.0
  %3849 = vmatpush.msra.mxu0 %v3809
  %3850 = vmatmul.f32.gmra.mxu0 %v3812
  %v3851 = vpop.f32.mrf.mxu0
  %v3852 = vadd.f32 0.0, %v3851
  %3853 = vdwg.mxu0
  %3854 = vmatpush.msra.mxu0 0.0
  %3855 = vmatpush.msra.mxu0 0.0
  %3856 = vmatpush.msra.mxu0 0.0
  %3857 = vmatpush.msra.mxu0 0.0
  %3858 = vmatpush.msra.mxu0 0.0
  %3859 = vmatpush.msra.mxu0 0.0
  %3860 = vmatpush.msra.mxu0 0.0
  %3861 = vmatpush.msra.mxu0 0.0
  %3862 = vmatpush.msra.mxu0 0.0
  %3863 = vmatpush.msra.mxu0 0.0
  %3864 = vmatpush.msra.mxu0 0.0
  %3865 = vmatpush.msra.mxu0 0.0
  %3866 = vmatpush.msra.mxu0 0.0
  %3867 = vmatpush.msra.mxu0 0.0
  %3868 = vmatpush.msra.mxu0 0.0
  %3869 = vmatpush.msra.mxu0 %v3802
  %3870 = vmatmul.f32.gmra.mxu0 %v3812
  %v3871 = vpop.f32.mrf.mxu0
  %v3872 = vadd.f32 0.0, %v3871
  %3873 = vdwg.mxu0
  %3874 = vmatpush.msra.mxu0 0.0
  %3875 = vmatpush.msra.mxu0 0.0
  %3876 = vmatpush.msra.mxu0 0.0
  %3877 = vmatpush.msra.mxu0 0.0
  %3878 = vmatpush.msra.mxu0 0.0
  %3879 = vmatpush.msra.mxu0 0.0
  %3880 = vmatpush.msra.mxu0 0.0
  %3881 = vmatpush.msra.mxu0 0.0
  %3882 = vmatpush.msra.mxu0 0.0
  %3883 = vmatpush.msra.mxu0 0.0
  %3884 = vmatpush.msra.mxu0 0.0
  %3885 = vmatpush.msra.mxu0 0.0
  %3886 = vmatpush.msra.mxu0 0.0
  %3887 = vmatpush.msra.mxu0 0.0
  %3888 = vmatpush.msra.mxu0 0.0
  %3889 = vmatpush.msra.mxu0 %v3810
  %3890 = vmatmul.f32.gmra.mxu0 %v3812
  %v3891 = vpop.f32.mrf.mxu0
  %v3892 = vadd.f32 0.0, %v3891
  %3893 = vdwg.mxu0
  %v3894 = vmul.f32 %v3832, %v974
  %v3895 = vmul.f32 %v3852, %v975
  %v3896 = vmul.f32 %v3872, %v974
  %v3897 = vmul.f32 %v3892, %v975
  %v3898 = vadd.f32 %v3789, %v3894
  %v3899 = vadd.f32 %v3790, %v3895
  %v3900 = vadd.f32 %v3791, %v3896
  %v3901 = vadd.f32 %v3792, %v3897
  %3902 = vrot.lane.b32.xlu0 %v3099, 112
  %v3903 = vpop.permute.xlu0 %3902
  %3904 = vrot.lane.b32.xlu0 %v3139, 112
  %v3905 = vpop.permute.xlu0 %3904
  %3906 = vrot.lane.b32.xlu0 %v3101, 112
  %v3907 = vpop.permute.xlu0 %3906
  %3908 = vrot.lane.b32.xlu0 %v3141, 112
  %v3909 = vpop.permute.xlu0 %3908
  %v3910 = vsel %vm999, %v3903, %v3905
  %v3911 = vsel %vm999, %v3907, %v3909
  %v3918 = vsel %vm999, %v3905, %v3903
  %v3919 = vsel %vm999, %v3909, %v3907
  %v3921 = vsel %vm3174, %v3149, 0
  %3923 = vmatpush.msra.mxu0 0.0
  %3924 = vmatpush.msra.mxu0 0.0
  %3925 = vmatpush.msra.mxu0 0.0
  %3926 = vmatpush.msra.mxu0 0.0
  %3927 = vmatpush.msra.mxu0 0.0
  %3928 = vmatpush.msra.mxu0 0.0
  %3929 = vmatpush.msra.mxu0 0.0
  %3930 = vmatpush.msra.mxu0 0.0
  %3931 = vmatpush.msra.mxu0 0.0
  %3932 = vmatpush.msra.mxu0 0.0
  %3933 = vmatpush.msra.mxu0 0.0
  %3934 = vmatpush.msra.mxu0 0.0
  %3935 = vmatpush.msra.mxu0 0.0
  %3936 = vmatpush.msra.mxu0 0.0
  %3937 = vmatpush.msra.mxu0 0.0
  %3938 = vmatpush.msra.mxu0 %v3910
  %3939 = vmatmul.f32.gmra.mxu0 %v3921
  %v3940 = vpop.f32.mrf.mxu0
  %v3941 = vadd.f32 0.0, %v3940
  %3942 = vdwg.mxu0
  %3943 = vmatpush.msra.mxu0 0.0
  %3944 = vmatpush.msra.mxu0 0.0
  %3945 = vmatpush.msra.mxu0 0.0
  %3946 = vmatpush.msra.mxu0 0.0
  %3947 = vmatpush.msra.mxu0 0.0
  %3948 = vmatpush.msra.mxu0 0.0
  %3949 = vmatpush.msra.mxu0 0.0
  %3950 = vmatpush.msra.mxu0 0.0
  %3951 = vmatpush.msra.mxu0 0.0
  %3952 = vmatpush.msra.mxu0 0.0
  %3953 = vmatpush.msra.mxu0 0.0
  %3954 = vmatpush.msra.mxu0 0.0
  %3955 = vmatpush.msra.mxu0 0.0
  %3956 = vmatpush.msra.mxu0 0.0
  %3957 = vmatpush.msra.mxu0 0.0
  %3958 = vmatpush.msra.mxu0 %v3918
  %3959 = vmatmul.f32.gmra.mxu0 %v3921
  %v3960 = vpop.f32.mrf.mxu0
  %v3961 = vadd.f32 0.0, %v3960
  %3962 = vdwg.mxu0
  %3963 = vmatpush.msra.mxu0 0.0
  %3964 = vmatpush.msra.mxu0 0.0
  %3965 = vmatpush.msra.mxu0 0.0
  %3966 = vmatpush.msra.mxu0 0.0
  %3967 = vmatpush.msra.mxu0 0.0
  %3968 = vmatpush.msra.mxu0 0.0
  %3969 = vmatpush.msra.mxu0 0.0
  %3970 = vmatpush.msra.mxu0 0.0
  %3971 = vmatpush.msra.mxu0 0.0
  %3972 = vmatpush.msra.mxu0 0.0
  %3973 = vmatpush.msra.mxu0 0.0
  %3974 = vmatpush.msra.mxu0 0.0
  %3975 = vmatpush.msra.mxu0 0.0
  %3976 = vmatpush.msra.mxu0 0.0
  %3977 = vmatpush.msra.mxu0 0.0
  %3978 = vmatpush.msra.mxu0 %v3911
  %3979 = vmatmul.f32.gmra.mxu0 %v3921
  %v3980 = vpop.f32.mrf.mxu0
  %v3981 = vadd.f32 0.0, %v3980
  %3982 = vdwg.mxu0
  %3983 = vmatpush.msra.mxu0 0.0
  %3984 = vmatpush.msra.mxu0 0.0
  %3985 = vmatpush.msra.mxu0 0.0
  %3986 = vmatpush.msra.mxu0 0.0
  %3987 = vmatpush.msra.mxu0 0.0
  %3988 = vmatpush.msra.mxu0 0.0
  %3989 = vmatpush.msra.mxu0 0.0
  %3990 = vmatpush.msra.mxu0 0.0
  %3991 = vmatpush.msra.mxu0 0.0
  %3992 = vmatpush.msra.mxu0 0.0
  %3993 = vmatpush.msra.mxu0 0.0
  %3994 = vmatpush.msra.mxu0 0.0
  %3995 = vmatpush.msra.mxu0 0.0
  %3996 = vmatpush.msra.mxu0 0.0
  %3997 = vmatpush.msra.mxu0 0.0
  %3998 = vmatpush.msra.mxu0 %v3919
  %3999 = vmatmul.f32.gmra.mxu0 %v3921
  %v4000 = vpop.f32.mrf.mxu0
  %v4001 = vadd.f32 0.0, %v4000
  %4002 = vdwg.mxu0
  %v4003 = vmul.f32 %v3941, %v1110
  %v4004 = vmul.f32 %v3961, %v1111
  %v4005 = vmul.f32 %v3981, %v1110
  %v4006 = vmul.f32 %v4001, %v1111
  %v4007 = vadd.f32 %v3898, %v4003
  %v4008 = vadd.f32 %v3899, %v4004
  %v4009 = vadd.f32 %v3900, %v4005
  %v4010 = vadd.f32 %v3901, %v4006
  %4011 = vrot.lane.b32.xlu0 %v3099, 111
  %v4012 = vpop.permute.xlu0 %4011
  %4013 = vrot.lane.b32.xlu0 %v3139, 111
  %v4014 = vpop.permute.xlu0 %4013
  %4015 = vrot.lane.b32.xlu0 %v3101, 111
  %v4016 = vpop.permute.xlu0 %4015
  %4017 = vrot.lane.b32.xlu0 %v3141, 111
  %v4018 = vpop.permute.xlu0 %4017
  %v4019 = vsel %vm1135, %v4012, %v4014
  %v4020 = vsel %vm1135, %v4016, %v4018
  %v4027 = vsel %vm1135, %v4014, %v4012
  %v4028 = vsel %vm1135, %v4018, %v4016
  %v4030 = vsel %vm3174, %v3150, 0
  %4032 = vmatpush.msra.mxu0 0.0
  %4033 = vmatpush.msra.mxu0 0.0
  %4034 = vmatpush.msra.mxu0 0.0
  %4035 = vmatpush.msra.mxu0 0.0
  %4036 = vmatpush.msra.mxu0 0.0
  %4037 = vmatpush.msra.mxu0 0.0
  %4038 = vmatpush.msra.mxu0 0.0
  %4039 = vmatpush.msra.mxu0 0.0
  %4040 = vmatpush.msra.mxu0 0.0
  %4041 = vmatpush.msra.mxu0 0.0
  %4042 = vmatpush.msra.mxu0 0.0
  %4043 = vmatpush.msra.mxu0 0.0
  %4044 = vmatpush.msra.mxu0 0.0
  %4045 = vmatpush.msra.mxu0 0.0
  %4046 = vmatpush.msra.mxu0 0.0
  %4047 = vmatpush.msra.mxu0 %v4019
  %4048 = vmatmul.f32.gmra.mxu0 %v4030
  %v4049 = vpop.f32.mrf.mxu0
  %v4050 = vadd.f32 0.0, %v4049
  %4051 = vdwg.mxu0
  %4052 = vmatpush.msra.mxu0 0.0
  %4053 = vmatpush.msra.mxu0 0.0
  %4054 = vmatpush.msra.mxu0 0.0
  %4055 = vmatpush.msra.mxu0 0.0
  %4056 = vmatpush.msra.mxu0 0.0
  %4057 = vmatpush.msra.mxu0 0.0
  %4058 = vmatpush.msra.mxu0 0.0
  %4059 = vmatpush.msra.mxu0 0.0
  %4060 = vmatpush.msra.mxu0 0.0
  %4061 = vmatpush.msra.mxu0 0.0
  %4062 = vmatpush.msra.mxu0 0.0
  %4063 = vmatpush.msra.mxu0 0.0
  %4064 = vmatpush.msra.mxu0 0.0
  %4065 = vmatpush.msra.mxu0 0.0
  %4066 = vmatpush.msra.mxu0 0.0
  %4067 = vmatpush.msra.mxu0 %v4027
  %4068 = vmatmul.f32.gmra.mxu0 %v4030
  %v4069 = vpop.f32.mrf.mxu0
  %v4070 = vadd.f32 0.0, %v4069
  %4071 = vdwg.mxu0
  %4072 = vmatpush.msra.mxu0 0.0
  %4073 = vmatpush.msra.mxu0 0.0
  %4074 = vmatpush.msra.mxu0 0.0
  %4075 = vmatpush.msra.mxu0 0.0
  %4076 = vmatpush.msra.mxu0 0.0
  %4077 = vmatpush.msra.mxu0 0.0
  %4078 = vmatpush.msra.mxu0 0.0
  %4079 = vmatpush.msra.mxu0 0.0
  %4080 = vmatpush.msra.mxu0 0.0
  %4081 = vmatpush.msra.mxu0 0.0
  %4082 = vmatpush.msra.mxu0 0.0
  %4083 = vmatpush.msra.mxu0 0.0
  %4084 = vmatpush.msra.mxu0 0.0
  %4085 = vmatpush.msra.mxu0 0.0
  %4086 = vmatpush.msra.mxu0 0.0
  %4087 = vmatpush.msra.mxu0 %v4020
  %4088 = vmatmul.f32.gmra.mxu0 %v4030
  %v4089 = vpop.f32.mrf.mxu0
  %v4090 = vadd.f32 0.0, %v4089
  %4091 = vdwg.mxu0
  %4092 = vmatpush.msra.mxu0 0.0
  %4093 = vmatpush.msra.mxu0 0.0
  %4094 = vmatpush.msra.mxu0 0.0
  %4095 = vmatpush.msra.mxu0 0.0
  %4096 = vmatpush.msra.mxu0 0.0
  %4097 = vmatpush.msra.mxu0 0.0
  %4098 = vmatpush.msra.mxu0 0.0
  %4099 = vmatpush.msra.mxu0 0.0
  %4100 = vmatpush.msra.mxu0 0.0
  %4101 = vmatpush.msra.mxu0 0.0
  %4102 = vmatpush.msra.mxu0 0.0
  %4103 = vmatpush.msra.mxu0 0.0
  %4104 = vmatpush.msra.mxu0 0.0
  %4105 = vmatpush.msra.mxu0 0.0
  %4106 = vmatpush.msra.mxu0 0.0
  %4107 = vmatpush.msra.mxu0 %v4028
  %4108 = vmatmul.f32.gmra.mxu0 %v4030
  %v4109 = vpop.f32.mrf.mxu0
  %v4110 = vadd.f32 0.0, %v4109
  %4111 = vdwg.mxu0
  %v4112 = vmul.f32 %v4050, %v1246
  %v4113 = vmul.f32 %v4070, %v1247
  %v4114 = vmul.f32 %v4090, %v1246
  %v4115 = vmul.f32 %v4110, %v1247
  %v4116 = vadd.f32 %v4007, %v4112
  %v4117 = vadd.f32 %v4008, %v4113
  %v4118 = vadd.f32 %v4009, %v4114
  %v4119 = vadd.f32 %v4010, %v4115
  %4121 = vset.pattern.permute.xlu0 0
  %4122 = vperm.xlu0 %4121, %v3151
  %v4123 = vpop.permute.xlu0 %4122
  %v4125 = vadd.f32 %v4116, %v4123
  %v4126 = vadd.f32 %v4117, %v4123
  %v4127 = vadd.f32 %v4118, %v4123
  %v4128 = vadd.f32 %v4119, %v4123
  %v4129 = vtanh.pop %v4125
  %v4130 = vtanh.pop %v4126
  %v4131 = vtanh.pop %v4127
  %v4132 = vtanh.pop %v4128
  %v4137 = vrot.slane %v4130, 4
  %v4138 = vrot.slane %v4132, 4
  %v4139 = vsel %vm96, %v4129, %v4137
  %v4140 = vsel %vm96, %v4131, %v4138
  %4143 = vst [vmem:[%s11] sm:$0xff] %v4139
  %4144 = vst [vmem:[%s11 + $0x8] sm:$0xff] %v4140
  // Predicated region
  $region46: #{vae_forward.1} parent=0 // pred_check
    _
  $region47: #{vae_forward.1} parent=0 // pred_check_branch
    %4146 = sbr.rel (0) target = $region49
  $region48: #{vae_forward.1} parent=0 // pred_region
    _
  $region49: #{vae_forward.1} parent=0 // pred_fallthru
    _
  // Predicated region
  $region50: #{vae_forward.1} parent=0 // pred_check
    _
  $region51: #{vae_forward.1} parent=0 // pred_check_branch
    %4148 = sbr.rel (0) target = $region53
  $region52: #{vae_forward.1} parent=0 // pred_region
    _
  $region53: #{vae_forward.1} parent=0 // pred_fallthru
    _
  // Predicated region
  $region54: #{vae_forward.1} parent=0 // pred_check
    _
  $region55: #{vae_forward.1} parent=0 // pred_check_branch
    %4150 = sbr.rel (0) target = $region57
  $region56: #{vae_forward.1} parent=0 // pred_region
    _
  $region57: #{vae_forward.1} parent=0 // pred_fallthru
    _
  // Predicated region
  $region58: #{vae_forward.1} parent=0 // pred_check
    _
  $region59: #{vae_forward.1} parent=0 // pred_check_branch
    %4152 = sbr.rel (0) target = $region61
  $region60: #{vae_forward.1} parent=0 // pred_region
    _
  $region61: #{vae_forward.1} parent=0 // pred_fallthru
    _

</llo_original>
